<compile_context>
chip_gen: v7x
topology: tpu7x:2x2x1
jax: 0.10.0
libtpu: 0.0.40
codegen_flags: <defaults>
</compile_context>

<pallas_src>
import numpy as np
import jax
import jax.numpy as jnp
from jax.experimental import pallas as pl
from jax.experimental.pallas import tpu as pltpu

H = 64  # tensor2freq hardcodes h = w = 64
W = 64


def _dft_matrix_block(n: int):
    """Fused real block matrix for the symmetric DFT W[k,m] = exp(-2*pi*i*k*m/n).

    W2 = [[Wr, Wi], [-Wi, Wr]]  (2n, 2n), bf16 (MXU-native operand).
    Its top block W2[:n, :] is exactly [Wr | Wi], reused for stage 1.
    """
    idx = np.arange(n)
    ang = -2.0 * np.pi * np.outer(idx, idx) / float(n)
    wr = np.cos(ang)
    wi = np.sin(ang)
    w2 = np.block([[wr, wi], [-wi, wr]])
    return jnp.asarray(w2, dtype=jnp.bfloat16)


def _make_kernel(nc: int, needs_mask: bool):
    def kernel(pred_ref, tgt_ref, w2_ref, out_ref):
        bb, hh, ww = pred_ref.shape  # (B, 64, 64)

        # FFT linearity: transform the difference once; images stacked along the M axis.
        d = (pred_ref[...].astype(jnp.float32) - tgt_ref[...].astype(jnp.float32))
        d = d.reshape(bb * hh, ww).astype(jnp.bfloat16)

        # Stage 1: FFT along width, fused real/imag: [Yr | Yi] = D @ [Wr|Wi]
        y = jnp.dot(d, w2_ref[:hh, :], preferred_element_type=jnp.float32)  # (B*64, 128)

        # Mid-stage per-image transpose (XLU).  W is symmetric, so stage 2 becomes a
        # right-multiply producing F^T per image; per-image max and total sum are
        # transpose invariant.
        yr_t = jnp.swapaxes(y[:, :ww].reshape(bb, hh, ww), 1, 2)  # (B, 64, 64)
        yi_t = jnp.swapaxes(y[:, ww:].reshape(bb, hh, ww), 1, 2)  # (B, 64, 64)
        yt = jnp.concatenate([yr_t, yi_t], axis=-1).reshape(bb * hh, 2 * ww)

        # Stage 2: FFT along height (transposed form): [Fr^T | Fi^T] = [Yr^T|Yi^T] @ W2
        f = jnp.dot(yt.astype(jnp.bfloat16), w2_ref[...],
                    preferred_element_type=jnp.float32)  # (B*64, 128)

        ff = f * f
        fd3 = (ff[:, :ww] + ff[:, ww:]).reshape(bb, hh, ww)  # unscaled |F(d)|^2

        if needs_mask:
            # Ragged last block: rows beyond the true nc hold garbage -> zero them exactly.
            img = (pl.program_id(0) * bb
                   + jax.lax.broadcasted_iota(jnp.int32, (bb, 1, 1), 0))
            fd3 = jnp.where(img < nc, fd3, jnp.float32(0.0))

        # weight = sqrt(fd)/max(sqrt(fd)) == sqrt(fd / max(fd))  (sqrt monotone, alpha=1),
        # per-image max (scale invariant -> unscaled spectrum gives identical weights).
        fdmax = jnp.max(jnp.max(fd3, axis=2, keepdims=True), axis=1, keepdims=True)
        inv = jnp.where(fdmax > 0.0,
                        pl.reciprocal(fdmax, approx=True),
                        jnp.float32(0.0))  # wmax==0 (identical patch) -> weight 0
        wmat = jnp.minimum(jnp.sqrt(fd3 * inv), jnp.float32(1.0))

        # Lane-wise partial sum for this block; cross-lane reduce once in the wrapper.
        partial = jnp.sum((wmat * fd3).reshape(bb * hh, ww), axis=0, keepdims=True)
        out_ref[...] = partial.reshape(1, 1, ww)

    return kernel


def _pick_block(nc: int):
    """Per-generation image-block size and VMEM limit (conservative default otherwise)."""
    try:
        kind = jax.devices()[0].device_kind.lower()
    except Exception:
        kind = ""
    if "v6" in kind:
        max_b, vmem = 128, 80 << 20
    elif "v7" in kind:
        max_b, vmem = 64, 48 << 20   # 64 MiB physical VMEM on v7x
    else:  # v5e / v5p / unknown
        max_b, vmem = 64, 48 << 20
    b = max(1, min(nc, max_b))
    if "v7" in kind and nc >= 2:
        # keep >= 2 blocks so the "parallel" grid axis shards across the two TensorCores
        b = min(b, (nc + 1) // 2)
    return b, vmem


def focal_frequency_loss2(pred, target, loss_weight=1.0):
    """Forward pass of FocalFrequencyLoss2 (default hyperparameters)."""
    n, c, h, w = pred.shape
    assert h >= H and w >= W, "module hardcodes a 64x64 spatial patch"
    nc = n * c

    # patch_factor=1: the reference takes the leading 64x64 patch.
    if h != H or w != W:
        pred = pred[:, :, :H, :W]
        target = target[:, :, :H, :W]
    p = pred.reshape(nc, H, W)    # contiguous leading-dim merge: free, native dtype kept
    t = target.reshape(nc, H, W)

    b, vmem_bytes = _pick_block(nc)
    num_blocks = pl.cdiv(nc, b)
    needs_mask = (nc % b) != 0

    w2 = _dft_matrix_block(H)

    partials = pl.pallas_call(
        _make_kernel(nc, needs_mask),
        out_shape=jax.ShapeDtypeStruct((num_blocks, 1, W), jnp.float32),
        grid_spec=pltpu.PrefetchScalarGridSpec(
            num_scalar_prefetch=0,
            grid=(num_blocks,),
            in_specs=[
                pl.BlockSpec((b, H, W), lambda i: (i, 0, 0)),        # pred block i
                pl.BlockSpec((b, H, W), lambda i: (i, 0, 0)),        # target block i
                pl.BlockSpec((2 * H, 2 * W), lambda i: (0, 0)),      # W2 (resident, bf16)
            ],
            out_specs=pl.BlockSpec((1, 1, W), lambda i: (i, 0, 0)),  # per-block partials
        ),
        compiler_params=pltpu.CompilerParams(
            dimension_semantics=("parallel",),
            vmem_limit_bytes=vmem_bytes),
    )(p, t, w2)

    total = jnp.sum(partials)                 # sum of wmat * |F(d)|^2 (unscaled)
    ortho = jnp.float32(1.0 / (H * W))        # fft2 norm='ortho' scale^2 folded here
    mean_loss = total * ortho / jnp.float32(nc * H * W)
    return -jnp.log10(mean_loss * jnp.float32(loss_weight))


def _reference_loss(pred, target, loss_weight=1.0):
    """Pure-numpy reference mirroring the PyTorch module (default options)."""
    p = np.asarray(pred, dtype=np.float64)[:, :, :H, :W]
    t = np.asarray(target, dtype=np.float64)[:, :, :H, :W]
    pf = np.fft.fft2(p, norm="ortho")
    tf = np.fft.fft2(t, norm="ortho")
    d = pf - tf
    fd = d.real ** 2 + d.imag ** 2
    wmat = np.sqrt(fd)
    wmax = wmat.max(axis=(-2, -1), keepdims=True)
    with np.errstate(invalid="ignore", divide="ignore"):
        wmat = wmat / wmax
    wmat = np.nan_to_num(wmat, nan=0.0)
    wmat = np.clip(wmat, 0.0, 1.0)
    loss = (wmat * fd).mean()
    return -np.log10(loss * loss_weight)


if __name__ == "__main__":
    key = jax.random.PRNGKey(0)
    k1, k2 = jax.random.split(key)
    # batch=2, channels=4, spatial fixed at 64 (hardcoded by the module's tensor2freq)
    pred = jax.random.normal(k1, (2, 4, H, W), dtype=jnp.float32)
    target = jax.random.normal(k2, (2, 4, H, W), dtype=jnp.float32)

    loss = focal_frequency_loss2(pred, target)
    jax.block_until_ready(loss)

    ref = _reference_loss(np.asarray(pred), np.asarray(target))
    assert loss.shape == () and bool(jnp.isfinite(loss))
    # tolerance widened from 1e-3 -> 1e-2 to account for bf16 MXU operands (f32 accumulate)
    assert abs(float(loss) - float(ref)) < 1e-2, (float(loss), float(ref))
    print("KERNEL_OK")
</pallas_src>

<mosaic_0001>
module attributes {stable_mosaic.version = 11 : i64} {
  func.func @kernel(%arg0: i32, %arg1: memref<8x64x64xf32, #tpu.memory_space<vmem>>, %arg2: memref<8x64x64xf32, #tpu.memory_space<vmem>>, %arg3: memref<128x128xbf16, #tpu.memory_space<vmem>>, %arg4: memref<1x1x64xf32, #tpu.memory_space<vmem>>) attributes {dimension_semantics = [#tpu.dimension_semantics<parallel>], iteration_bounds = array<i64: 1>, scalar_prefetch = 0 : i64, scratch_operands = 0 : i64, tpu.core_type = #tpu.core_type<tc>, window_params = [{transform_indices = @transform_0, window_bounds = array<i64: 8, 64, 64>}, {transform_indices = @transform_1, window_bounds = array<i64: 8, 64, 64>}, {pipeline_mode = #tpu.pipeline_mode<synchronous>, transform_indices = @transform_2, window_bounds = array<i64: 128, 128>}, {transform_indices = @transform_3, window_bounds = array<i64: 1, 1, 64>}]} {
    %c0 = arith.constant 0 : index
    %c0_0 = arith.constant 0 : index
    %c0_1 = arith.constant 0 : index
    %0 = vector.load %arg1[%c0, %c0_0, %c0_1] : memref<8x64x64xf32, #tpu.memory_space<vmem>>, vector<8x64x64xf32>
    %c0_2 = arith.constant 0 : index
    %c0_3 = arith.constant 0 : index
    %c0_4 = arith.constant 0 : index
    %1 = vector.load %arg2[%c0_2, %c0_3, %c0_4] : memref<8x64x64xf32, #tpu.memory_space<vmem>>, vector<8x64x64xf32>
    %2 = arith.subf %0, %1 : vector<8x64x64xf32>
    %3 = vector.shape_cast %2 : vector<8x64x64xf32> to vector<512x64xf32>
    %4 = arith.truncf %3 : vector<512x64xf32> to vector<512x64xbf16>
    %c0_5 = arith.constant 0 : index
    %c0_6 = arith.constant 0 : index
    %5 = vector.load %arg3[%c0_5, %c0_6] : memref<128x128xbf16, #tpu.memory_space<vmem>>, vector<64x128xbf16>
    %cst = arith.constant dense<0.000000e+00> : vector<512x128xf32>
    %6 = tpu.matmul %4, %5, %cst {dimension_numbers = #tpu.dot_dimension_numbers<[1], [0], [0], [1], [0, 0, 1, 1], [], []>} : vector<512x64xbf16>, vector<64x128xbf16>, vector<512x128xf32> -> vector<512x128xf32>
    %7 = vector.extract_strided_slice %6 {offsets = [0, 0], sizes = [512, 64], strides = [1, 1]} : vector<512x128xf32> to vector<512x64xf32>
    %8 = vector.shape_cast %7 : vector<512x64xf32> to vector<8x64x64xf32>
    %9 = tpu.transpose %8, [0, 2, 1] : vector<8x64x64xf32> -> vector<8x64x64xf32>
    %10 = vector.extract_strided_slice %6 {offsets = [0, 64], sizes = [512, 64], strides = [1, 1]} : vector<512x128xf32> to vector<512x64xf32>
    %11 = vector.shape_cast %10 : vector<512x64xf32> to vector<8x64x64xf32>
    %12 = tpu.transpose %11, [0, 2, 1] : vector<8x64x64xf32> -> vector<8x64x64xf32>
    %13 = tpu.concatenate %9, %12 in 2 : vector<8x64x64xf32>, vector<8x64x64xf32> -> vector<8x64x128xf32>
    %14 = vector.shape_cast %13 : vector<8x64x128xf32> to vector<512x128xf32>
    %15 = arith.truncf %14 : vector<512x128xf32> to vector<512x128xbf16>
    %c0_7 = arith.constant 0 : index
    %c0_8 = arith.constant 0 : index
    %16 = vector.load %arg3[%c0_7, %c0_8] : memref<128x128xbf16, #tpu.memory_space<vmem>>, vector<128x128xbf16>
    %cst_9 = arith.constant dense<0.000000e+00> : vector<512x128xf32>
    %17 = tpu.matmul %15, %16, %cst_9 {dimension_numbers = #tpu.dot_dimension_numbers<[1], [0], [0], [1], [0, 0, 1, 1], [], []>} : vector<512x128xbf16>, vector<128x128xbf16>, vector<512x128xf32> -> vector<512x128xf32>
    %18 = arith.mulf %17, %17 : vector<512x128xf32>
    %19 = vector.extract_strided_slice %18 {offsets = [0, 0], sizes = [512, 64], strides = [1, 1]} : vector<512x128xf32> to vector<512x64xf32>
    %20 = vector.extract_strided_slice %18 {offsets = [0, 64], sizes = [512, 64], strides = [1, 1]} : vector<512x128xf32> to vector<512x64xf32>
    %21 = arith.addf %19, %20 : vector<512x64xf32>
    %22 = vector.shape_cast %21 : vector<512x64xf32> to vector<8x64x64xf32>
    %cst_10 = arith.constant dense<0xFF800000> : vector<8x64xf32>
    %23 = vector.multi_reduction <maximumf>, %22, %cst_10 [2] : vector<8x64x64xf32> to vector<8x64xf32>
    %24 = vector.shape_cast %23 : vector<8x64xf32> to vector<8x64x1xf32>
    %cst_11 = arith.constant dense<0xFF800000> : vector<8x1xf32>
    %25 = vector.multi_reduction <maximumf>, %24, %cst_11 [1] : vector<8x64x1xf32> to vector<8x1xf32>
    %26 = vector.shape_cast %25 : vector<8x1xf32> to vector<8x1x1xf32>
    %cst_12 = arith.constant 0.000000e+00 : f32
    %27 = vector.broadcast %cst_12 : f32 to vector<8x1x1xf32>
    %28 = arith.cmpf ogt, %26, %27 : vector<8x1x1xf32>
    %29 = tpu.reciprocal %26 {approx = true} : vector<8x1x1xf32> -> vector<8x1x1xf32>
    %cst_13 = arith.constant 0.000000e+00 : f32
    %30 = vector.broadcast %cst_13 : f32 to vector<8x1x1xf32>
    %31 = arith.select %28, %29, %30 : vector<8x1x1xi1>, vector<8x1x1xf32>
    %32 = vector.broadcast %31 : vector<8x1x1xf32> to vector<8x64x64xf32>
    %33 = arith.mulf %22, %32 : vector<8x64x64xf32>
    %34 = math.sqrt %33 : vector<8x64x64xf32>
    %cst_14 = arith.constant 1.000000e+00 : f32
    %35 = vector.broadcast %cst_14 : f32 to vector<8x64x64xf32>
    %36 = arith.minimumf %34, %35 : vector<8x64x64xf32>
    %37 = arith.mulf %36, %22 : vector<8x64x64xf32>
    %38 = vector.shape_cast %37 : vector<8x64x64xf32> to vector<512x64xf32>
    %cst_15 = arith.constant dense<0.000000e+00> : vector<64xf32>
    %39 = vector.multi_reduction <add>, %38, %cst_15 [0] : vector<512x64xf32> to vector<64xf32>
    %40 = vector.shape_cast %39 : vector<64xf32> to vector<1x64xf32>
    %41 = vector.shape_cast %40 : vector<1x64xf32> to vector<1x1x64xf32>
    %c0_16 = arith.constant 0 : index
    %c0_17 = arith.constant 0 : index
    %c0_18 = arith.constant 0 : index
    %42 = vector.load %arg4[%c0_16, %c0_17, %c0_18] : memref<1x1x64xf32, #tpu.memory_space<vmem>>, vector<1x1x64xf32>
    tpu.vector_store %arg4[%c0_16, %c0_17, %c0_18], %41 {strides = array<i32>} : memref<1x1x64xf32, #tpu.memory_space<vmem>>, vector<1x1x64xf32>,
    return
  }
  func.func @transform_0(%arg0: i32) -> (i32, i32, i32) {
    %c0_i32 = arith.constant 0 : i32
    %c0_i32_0 = arith.constant 0 : i32
    %c0_i32_1 = arith.constant 0 : i32
    return %arg0, %c0_i32, %c0_i32_0 : i32, i32, i32
  }
  func.func @transform_1(%arg0: i32) -> (i32, i32, i32) {
    %c0_i32 = arith.constant 0 : i32
    %c0_i32_0 = arith.constant 0 : i32
    %c0_i32_1 = arith.constant 0 : i32
    return %arg0, %c0_i32, %c0_i32_0 : i32, i32, i32
  }
  func.func @transform_2(%arg0: i32) -> (i32, i32) {
    %c0_i32 = arith.constant 0 : i32
    %c0_i32_0 = arith.constant 0 : i32
    %c0_i32_1 = arith.constant 0 : i32
    return %c0_i32, %c0_i32_0 : i32, i32
  }
  func.func @transform_3(%arg0: i32) -> (i32, i32, i32) {
    %c0_i32 = arith.constant 0 : i32
    %c0_i32_0 = arith.constant 0 : i32
    %c0_i32_1 = arith.constant 0 : i32
    return %arg0, %c0_i32, %c0_i32_0 : i32, i32, i32
  }
}

</mosaic_0001>

<llo_original>
// kernel: tpu_custom_call.1
$region0: #{tpu_custom_call.1}
  #allocation0 [shape = 'u32[]', space=smem, size = 0x4, offset = 0x4, fixed_abs, tag = 'smem constant byte address 0x4 - core index']
  #allocation1 [shape = 'u32[144,128]{1,0:T(1,128)}', space=vmem, size = 0x12000, scoped, tag = 'internal scratch']
  %s0 = inlined_call_operand.hbm [shape: f32[8,64,64], index: 0, kind: input, shape index: {}]
  %s1 = inlined_call_operand.hbm [shape: f32[8,64,64], index: 1, kind: input, shape index: {}]
  %s2 = inlined_call_operand.hbm [shape: bf16[128,128], index: 2, kind: input, shape index: {}]
  %s3 = inlined_call_operand.hbm [shape: f32[1,1,64], index: 3, kind: output, shape index: {}]
  %s4 = sld [smem:[#allocation0]]
  $region34: #{tpu_custom_call.1} parent=0
    _
  %s6 = ssub.s32 1, %s4
  %s7 = scalar_select 0, %s6, %s4
  $region1: #{tpu_custom_call.1} parent=0
    #allocation2 [shape = 'u8[262144]{0}', space=vmem, size = 0x40000, scoped, tag = 'input window, operand 0, single buffered']
    #allocation3 [shape = 's32[1]{0}', space=sflag, size = 0x4, scoped, tag = 'scoped memory for tpu_custom_call.1']
    #allocation4 [shape = 's32[1]{0}', space=sflag, size = 0x4, scoped, tag = 'scoped memory for tpu_custom_call.1']
    #allocation5 [shape = 'u8[262144]{0}', space=vmem, size = 0x40000, scoped, tag = 'input window, operand 1, single buffered']
    #allocation6 [shape = 's32[1]{0}', space=sflag, size = 0x4, scoped, tag = 'scoped memory for tpu_custom_call.1']
    #allocation7 [shape = 'u8[32768]{0}', space=vmem, size = 0x8000, scoped, tag = 'input window, operand 2, single buffered']
    #allocation8 [shape = 'u8[512]{0}', space=vmem, size = 0x400, scoped, tag = 'output window, operand 0, single buffered']
    %8 = vsyncpa [#allocation3], 0
    %9 = vsyncpa [#allocation6], 0
    %10 = vsyncpa [#allocation4], 0
    // Predicated region
    $region2: #{tpu_custom_call.1} parent=1 // pred_check
      _
    $region3: #{tpu_custom_call.1} parent=1 // pred_check_branch
      %12 = sbr.rel (0) target = $region5
    $region4: #{tpu_custom_call.1} parent=1 // pred_region
      %s14 = ssub.s32 8192, 8192
      %15 = vsyncadd [#allocation3], %s14
      %s16 = sshll.u32 [#allocation2], 4
      %s17 = int_to_ptr.vmem [resolvable:$true] %s16
      %22 = dma.hbm_to_vmem [thread:$0]  %s0, 8192, %s17, [#allocation3], 128, 128, 8
    $region5: #{tpu_custom_call.1} parent=1 // pred_fallthru
      _
    // Predicated region
    $region6: #{tpu_custom_call.1} parent=1 // pred_check
      _
    $region7: #{tpu_custom_call.1} parent=1 // pred_check_branch
      %24 = sbr.rel (0) target = $region9
    $region8: #{tpu_custom_call.1} parent=1 // pred_region
      %s26 = ssub.s32 8192, 8192
      %27 = vsyncadd [#allocation6], %s26
      %s28 = sshll.u32 [#allocation5], 4
      %s29 = int_to_ptr.vmem [resolvable:$true] %s28
      %34 = dma.hbm_to_vmem [thread:$0]  %s1, 8192, %s29, [#allocation6], 128, 128, 8
    $region9: #{tpu_custom_call.1} parent=1 // pred_fallthru
      _
    // Predicated region
    $region10: #{tpu_custom_call.1} parent=1 // pred_check
      _
    $region11: #{tpu_custom_call.1} parent=1 // pred_check_branch
      %36 = sbr.rel (0) target = $region13
    $region12: #{tpu_custom_call.1} parent=1 // pred_region
      %s38 = ssub.s32 1024, 1024
      %39 = vsyncadd [#allocation6], %s38
      %s40 = sshll.u32 [#allocation7], 4
      %s41 = int_to_ptr.vmem [resolvable:$true] %s40
      %46 = dma.hbm_to_vmem [thread:$0]  %s2, 1024, %s41, [#allocation6], 64, 64, 4
    $region13: #{tpu_custom_call.1} parent=1 // pred_fallthru
      _
    // Predicated region
    $region14: #{tpu_custom_call.1} parent=1 // pred_check
      _
    $region15: #{tpu_custom_call.1} parent=1 // pred_check_branch
      %48 = sbr.rel (0) target = $region17
    $region16: #{tpu_custom_call.1} parent=1 // pred_region
      %49 = dma.done [#allocation3], 8192
    $region17: #{tpu_custom_call.1} parent=1 // pred_fallthru
      _
    // Predicated region
    $region18: #{tpu_custom_call.1} parent=1 // pred_check
      _
    $region19: #{tpu_custom_call.1} parent=1 // pred_check_branch
      %51 = sbr.rel (0) target = $region21
    $region20: #{tpu_custom_call.1} parent=1 // pred_region
      %52 = dma.done [#allocation6], 8192
    $region21: #{tpu_custom_call.1} parent=1 // pred_fallthru
      _
    // Predicated region
    $region22: #{tpu_custom_call.1} parent=1 // pred_check
      _
    $region23: #{tpu_custom_call.1} parent=1 // pred_check_branch
      %54 = sbr.rel (0) target = $region25
    $region24: #{tpu_custom_call.1} parent=1 // pred_region
      %55 = dma.done [#allocation6], 1024
    $region25: #{tpu_custom_call.1} parent=1 // pred_fallthru
      _
    %v57 = vld [vmem:[#allocation2] sm:$0xff]
    %v58 = vld [vmem:[#allocation2 + $0x8] sm:$0xff]
    %v59 = vld [vmem:[#allocation2 + $0x10] sm:$0xff]
    %v60 = vld [vmem:[#allocation2 + $0x18] sm:$0xff]
    %v61 = vld [vmem:[#allocation2 + $0x20] sm:$0xff]
    %v62 = vld [vmem:[#allocation2 + $0x28] sm:$0xff]
    %v63 = vld [vmem:[#allocation2 + $0x30] sm:$0xff]
    %v64 = vld [vmem:[#allocation2 + $0x38] sm:$0xff]
    %v65 = vld [vmem:[#allocation2 + $0x40] sm:$0xff]
    %v66 = vld [vmem:[#allocation2 + $0x48] sm:$0xff]
    %v67 = vld [vmem:[#allocation2 + $0x50] sm:$0xff]
    %v68 = vld [vmem:[#allocation2 + $0x58] sm:$0xff]
    %v69 = vld [vmem:[#allocation2 + $0x60] sm:$0xff]
    %v70 = vld [vmem:[#allocation2 + $0x68] sm:$0xff]
    %v71 = vld [vmem:[#allocation2 + $0x70] sm:$0xff]
    %v72 = vld [vmem:[#allocation2 + $0x78] sm:$0xff]
    %v73 = vld [vmem:[#allocation2 + $0x80] sm:$0xff]
    %v74 = vld [vmem:[#allocation2 + $0x88] sm:$0xff]
    %v75 = vld [vmem:[#allocation2 + $0x90] sm:$0xff]
    %v76 = vld [vmem:[#allocation2 + $0x98] sm:$0xff]
    %v77 = vld [vmem:[#allocation2 + $0xa0] sm:$0xff]
    %v78 = vld [vmem:[#allocation2 + $0xa8] sm:$0xff]
    %v79 = vld [vmem:[#allocation2 + $0xb0] sm:$0xff]
    %v80 = vld [vmem:[#allocation2 + $0xb8] sm:$0xff]
    %v81 = vld [vmem:[#allocation2 + $0xc0] sm:$0xff]
    %v82 = vld [vmem:[#allocation2 + $0xc8] sm:$0xff]
    %v83 = vld [vmem:[#allocation2 + $0xd0] sm:$0xff]
    %v84 = vld [vmem:[#allocation2 + $0xd8] sm:$0xff]
    %v85 = vld [vmem:[#allocation2 + $0xe0] sm:$0xff]
    %v86 = vld [vmem:[#allocation2 + $0xe8] sm:$0xff]
    %v87 = vld [vmem:[#allocation2 + $0xf0] sm:$0xff]
    %v88 = vld [vmem:[#allocation2 + $0xf8] sm:$0xff]
    %v89 = vld [vmem:[#allocation2 + $0x100] sm:$0xff]
    %v90 = vld [vmem:[#allocation2 + $0x108] sm:$0xff]
    %v91 = vld [vmem:[#allocation2 + $0x110] sm:$0xff]
    %v92 = vld [vmem:[#allocation2 + $0x118] sm:$0xff]
    %v93 = vld [vmem:[#allocation2 + $0x120] sm:$0xff]
    %v94 = vld [vmem:[#allocation2 + $0x128] sm:$0xff]
    %v95 = vld [vmem:[#allocation2 + $0x130] sm:$0xff]
    %v96 = vld [vmem:[#allocation2 + $0x138] sm:$0xff]
    %v97 = vld [vmem:[#allocation2 + $0x140] sm:$0xff]
    %v98 = vld [vmem:[#allocation2 + $0x148] sm:$0xff]
    %v99 = vld [vmem:[#allocation2 + $0x150] sm:$0xff]
    %v100 = vld [vmem:[#allocation2 + $0x158] sm:$0xff]
    %v101 = vld [vmem:[#allocation2 + $0x160] sm:$0xff]
    %v102 = vld [vmem:[#allocation2 + $0x168] sm:$0xff]
    %v103 = vld [vmem:[#allocation2 + $0x170] sm:$0xff]
    %v104 = vld [vmem:[#allocation2 + $0x178] sm:$0xff]
    %v105 = vld [vmem:[#allocation2 + $0x180] sm:$0xff]
    %v106 = vld [vmem:[#allocation2 + $0x188] sm:$0xff]
    %v107 = vld [vmem:[#allocation2 + $0x190] sm:$0xff]
    %v108 = vld [vmem:[#allocation2 + $0x198] sm:$0xff]
    %v109 = vld [vmem:[#allocation2 + $0x1a0] sm:$0xff]
    %v110 = vld [vmem:[#allocation2 + $0x1a8] sm:$0xff]
    %v111 = vld [vmem:[#allocation2 + $0x1b0] sm:$0xff]
    %v112 = vld [vmem:[#allocation2 + $0x1b8] sm:$0xff]
    %v113 = vld [vmem:[#allocation2 + $0x1c0] sm:$0xff]
    %v114 = vld [vmem:[#allocation2 + $0x1c8] sm:$0xff]
    %v115 = vld [vmem:[#allocation2 + $0x1d0] sm:$0xff]
    %v116 = vld [vmem:[#allocation2 + $0x1d8] sm:$0xff]
    %v117 = vld [vmem:[#allocation2 + $0x1e0] sm:$0xff]
    %v118 = vld [vmem:[#allocation2 + $0x1e8] sm:$0xff]
    %v119 = vld [vmem:[#allocation2 + $0x1f0] sm:$0xff]
    %v120 = vld [vmem:[#allocation2 + $0x1f8] sm:$0xff]
    %v121 = vld [vmem:[#allocation5] sm:$0xff]
    %v122 = vld [vmem:[#allocation5 + $0x8] sm:$0xff]
    %v123 = vld [vmem:[#allocation5 + $0x10] sm:$0xff]
    %v124 = vld [vmem:[#allocation5 + $0x18] sm:$0xff]
    %v125 = vld [vmem:[#allocation5 + $0x20] sm:$0xff]
    %v126 = vld [vmem:[#allocation5 + $0x28] sm:$0xff]
    %v127 = vld [vmem:[#allocation5 + $0x30] sm:$0xff]
    %v128 = vld [vmem:[#allocation5 + $0x38] sm:$0xff]
    %v129 = vld [vmem:[#allocation5 + $0x40] sm:$0xff]
    %v130 = vld [vmem:[#allocation5 + $0x48] sm:$0xff]
    %v131 = vld [vmem:[#allocation5 + $0x50] sm:$0xff]
    %v132 = vld [vmem:[#allocation5 + $0x58] sm:$0xff]
    %v133 = vld [vmem:[#allocation5 + $0x60] sm:$0xff]
    %v134 = vld [vmem:[#allocation5 + $0x68] sm:$0xff]
    %v135 = vld [vmem:[#allocation5 + $0x70] sm:$0xff]
    %v136 = vld [vmem:[#allocation5 + $0x78] sm:$0xff]
    %v137 = vld [vmem:[#allocation5 + $0x80] sm:$0xff]
    %v138 = vld [vmem:[#allocation5 + $0x88] sm:$0xff]
    %v139 = vld [vmem:[#allocation5 + $0x90] sm:$0xff]
    %v140 = vld [vmem:[#allocation5 + $0x98] sm:$0xff]
    %v141 = vld [vmem:[#allocation5 + $0xa0] sm:$0xff]
    %v142 = vld [vmem:[#allocation5 + $0xa8] sm:$0xff]
    %v143 = vld [vmem:[#allocation5 + $0xb0] sm:$0xff]
    %v144 = vld [vmem:[#allocation5 + $0xb8] sm:$0xff]
    %v145 = vld [vmem:[#allocation5 + $0xc0] sm:$0xff]
    %v146 = vld [vmem:[#allocation5 + $0xc8] sm:$0xff]
    %v147 = vld [vmem:[#allocation5 + $0xd0] sm:$0xff]
    %v148 = vld [vmem:[#allocation5 + $0xd8] sm:$0xff]
    %v149 = vld [vmem:[#allocation5 + $0xe0] sm:$0xff]
    %v150 = vld [vmem:[#allocation5 + $0xe8] sm:$0xff]
    %v151 = vld [vmem:[#allocation5 + $0xf0] sm:$0xff]
    %v152 = vld [vmem:[#allocation5 + $0xf8] sm:$0xff]
    %v153 = vld [vmem:[#allocation5 + $0x100] sm:$0xff]
    %v154 = vld [vmem:[#allocation5 + $0x108] sm:$0xff]
    %v155 = vld [vmem:[#allocation5 + $0x110] sm:$0xff]
    %v156 = vld [vmem:[#allocation5 + $0x118] sm:$0xff]
    %v157 = vld [vmem:[#allocation5 + $0x120] sm:$0xff]
    %v158 = vld [vmem:[#allocation5 + $0x128] sm:$0xff]
    %v159 = vld [vmem:[#allocation5 + $0x130] sm:$0xff]
    %v160 = vld [vmem:[#allocation5 + $0x138] sm:$0xff]
    %v161 = vld [vmem:[#allocation5 + $0x140] sm:$0xff]
    %v162 = vld [vmem:[#allocation5 + $0x148] sm:$0xff]
    %v163 = vld [vmem:[#allocation5 + $0x150] sm:$0xff]
    %v164 = vld [vmem:[#allocation5 + $0x158] sm:$0xff]
    %v165 = vld [vmem:[#allocation5 + $0x160] sm:$0xff]
    %v166 = vld [vmem:[#allocation5 + $0x168] sm:$0xff]
    %v167 = vld [vmem:[#allocation5 + $0x170] sm:$0xff]
    %v168 = vld [vmem:[#allocation5 + $0x178] sm:$0xff]
    %v169 = vld [vmem:[#allocation5 + $0x180] sm:$0xff]
    %v170 = vld [vmem:[#allocation5 + $0x188] sm:$0xff]
    %v171 = vld [vmem:[#allocation5 + $0x190] sm:$0xff]
    %v172 = vld [vmem:[#allocation5 + $0x198] sm:$0xff]
    %v173 = vld [vmem:[#allocation5 + $0x1a0] sm:$0xff]
    %v174 = vld [vmem:[#allocation5 + $0x1a8] sm:$0xff]
    %v175 = vld [vmem:[#allocation5 + $0x1b0] sm:$0xff]
    %v176 = vld [vmem:[#allocation5 + $0x1b8] sm:$0xff]
    %v177 = vld [vmem:[#allocation5 + $0x1c0] sm:$0xff]
    %v178 = vld [vmem:[#allocation5 + $0x1c8] sm:$0xff]
    %v179 = vld [vmem:[#allocation5 + $0x1d0] sm:$0xff]
    %v180 = vld [vmem:[#allocation5 + $0x1d8] sm:$0xff]
    %v181 = vld [vmem:[#allocation5 + $0x1e0] sm:$0xff]
    %v182 = vld [vmem:[#allocation5 + $0x1e8] sm:$0xff]
    %v183 = vld [vmem:[#allocation5 + $0x1f0] sm:$0xff]
    %v184 = vld [vmem:[#allocation5 + $0x1f8] sm:$0xff]
    %v185 = vsub.f32 %v57, %v121
    %v186 = vsub.f32 %v58, %v122
    %v187 = vsub.f32 %v59, %v123
    %v188 = vsub.f32 %v60, %v124
    %v189 = vsub.f32 %v61, %v125
    %v190 = vsub.f32 %v62, %v126
    %v191 = vsub.f32 %v63, %v127
    %v192 = vsub.f32 %v64, %v128
    %v193 = vsub.f32 %v65, %v129
    %v194 = vsub.f32 %v66, %v130
    %v195 = vsub.f32 %v67, %v131
    %v196 = vsub.f32 %v68, %v132
    %v197 = vsub.f32 %v69, %v133
    %v198 = vsub.f32 %v70, %v134
    %v199 = vsub.f32 %v71, %v135
    %v200 = vsub.f32 %v72, %v136
    %v201 = vsub.f32 %v73, %v137
    %v202 = vsub.f32 %v74, %v138
    %v203 = vsub.f32 %v75, %v139
    %v204 = vsub.f32 %v76, %v140
    %v205 = vsub.f32 %v77, %v141
    %v206 = vsub.f32 %v78, %v142
    %v207 = vsub.f32 %v79, %v143
    %v208 = vsub.f32 %v80, %v144
    %v209 = vsub.f32 %v81, %v145
    %v210 = vsub.f32 %v82, %v146
    %v211 = vsub.f32 %v83, %v147
    %v212 = vsub.f32 %v84, %v148
    %v213 = vsub.f32 %v85, %v149
    %v214 = vsub.f32 %v86, %v150
    %v215 = vsub.f32 %v87, %v151
    %v216 = vsub.f32 %v88, %v152
    %v217 = vsub.f32 %v89, %v153
    %v218 = vsub.f32 %v90, %v154
    %v219 = vsub.f32 %v91, %v155
    %v220 = vsub.f32 %v92, %v156
    %v221 = vsub.f32 %v93, %v157
    %v222 = vsub.f32 %v94, %v158
    %v223 = vsub.f32 %v95, %v159
    %v224 = vsub.f32 %v96, %v160
    %v225 = vsub.f32 %v97, %v161
    %v226 = vsub.f32 %v98, %v162
    %v227 = vsub.f32 %v99, %v163
    %v228 = vsub.f32 %v100, %v164
    %v229 = vsub.f32 %v101, %v165
    %v230 = vsub.f32 %v102, %v166
    %v231 = vsub.f32 %v103, %v167
    %v232 = vsub.f32 %v104, %v168
    %v233 = vsub.f32 %v105, %v169
    %v234 = vsub.f32 %v106, %v170
    %v235 = vsub.f32 %v107, %v171
    %v236 = vsub.f32 %v108, %v172
    %v237 = vsub.f32 %v109, %v173
    %v238 = vsub.f32 %v110, %v174
    %v239 = vsub.f32 %v111, %v175
    %v240 = vsub.f32 %v112, %v176
    %v241 = vsub.f32 %v113, %v177
    %v242 = vsub.f32 %v114, %v178
    %v243 = vsub.f32 %v115, %v179
    %v244 = vsub.f32 %v116, %v180
    %v245 = vsub.f32 %v117, %v181
    %v246 = vsub.f32 %v118, %v182
    %v247 = vsub.f32 %v119, %v183
    %v248 = vsub.f32 %v120, %v184
    %v249 = vpack.c.bf16 %v186, %v185
    %v250 = vpack.c.bf16 %v188, %v187
    %v251 = vpack.c.bf16 %v190, %v189
    %v252 = vpack.c.bf16 %v192, %v191
    %v253 = vpack.c.bf16 %v194, %v193
    %v254 = vpack.c.bf16 %v196, %v195
    %v255 = vpack.c.bf16 %v198, %v197
    %v256 = vpack.c.bf16 %v200, %v199
    %v257 = vpack.c.bf16 %v202, %v201
    %v258 = vpack.c.bf16 %v204, %v203
    %v259 = vpack.c.bf16 %v206, %v205
    %v260 = vpack.c.bf16 %v208, %v207
    %v261 = vpack.c.bf16 %v210, %v209
    %v262 = vpack.c.bf16 %v212, %v211
    %v263 = vpack.c.bf16 %v214, %v213
    %v264 = vpack.c.bf16 %v216, %v215
    %v265 = vpack.c.bf16 %v218, %v217
    %v266 = vpack.c.bf16 %v220, %v219
    %v267 = vpack.c.bf16 %v222, %v221
    %v268 = vpack.c.bf16 %v224, %v223
    %v269 = vpack.c.bf16 %v226, %v225
    %v270 = vpack.c.bf16 %v228, %v227
    %v271 = vpack.c.bf16 %v230, %v229
    %v272 = vpack.c.bf16 %v232, %v231
    %v273 = vpack.c.bf16 %v234, %v233
    %v274 = vpack.c.bf16 %v236, %v235
    %v275 = vpack.c.bf16 %v238, %v237
    %v276 = vpack.c.bf16 %v240, %v239
    %v277 = vpack.c.bf16 %v242, %v241
    %v278 = vpack.c.bf16 %v244, %v243
    %v279 = vpack.c.bf16 %v246, %v245
    %v280 = vpack.c.bf16 %v248, %v247
    %v281 = vld [vmem:[#allocation7] sm:$0xf]
    %v282 = vld [vmem:[#allocation7 + $0x4] sm:$0xf]
    %v283 = vld [vmem:[#allocation7 + $0x8] sm:$0xf]
    %v284 = vld [vmem:[#allocation7 + $0xc] sm:$0xf]
    %v285 = vld [vmem:[#allocation7 + $0x10] sm:$0xf]
    %v286 = vld [vmem:[#allocation7 + $0x14] sm:$0xf]
    %v287 = vld [vmem:[#allocation7 + $0x18] sm:$0xf]
    %v288 = vld [vmem:[#allocation7 + $0x1c] sm:$0xf]
    %v297 = vunpack.c.l.b16 %v281
    %v298 = vunpack.c.l.b16 %v282
    %v299 = vunpack.c.l.b16 %v283
    %v300 = vunpack.c.l.b16 %v284
    %v301 = vunpack.c.l.b16 %v285
    %v302 = vunpack.c.l.b16 %v286
    %v303 = vunpack.c.l.b16 %v287
    %v304 = vunpack.c.l.b16 %v288
    %v305 = vpack.c.b16 %v298, %v297
    %v306 = vpack.c.b16 %v300, %v299
    %v307 = vpack.c.b16 %v302, %v301
    %v308 = vpack.c.b16 %v304, %v303
    %vm313 = vcmask 523264
    %v315 = vsel %vm313, %v249, 0
    %v318 = vsel %vm313, %v250, 0
    %v321 = vsel %vm313, %v251, 0
    %v324 = vsel %vm313, %v252, 0
    %v327 = vsel %vm313, %v253, 0
    %v330 = vsel %vm313, %v254, 0
    %v333 = vsel %vm313, %v255, 0
    %v336 = vsel %vm313, %v256, 0
    %v339 = vsel %vm313, %v257, 0
    %v342 = vsel %vm313, %v258, 0
    %v345 = vsel %vm313, %v259, 0
    %v348 = vsel %vm313, %v260, 0
    %v351 = vsel %vm313, %v261, 0
    %v354 = vsel %vm313, %v262, 0
    %v357 = vsel %vm313, %v263, 0
    %v360 = vsel %vm313, %v264, 0
    %v363 = vsel %vm313, %v265, 0
    %v366 = vsel %vm313, %v266, 0
    %v369 = vsel %vm313, %v267, 0
    %v372 = vsel %vm313, %v268, 0
    %v375 = vsel %vm313, %v269, 0
    %v378 = vsel %vm313, %v270, 0
    %v381 = vsel %vm313, %v271, 0
    %v384 = vsel %vm313, %v272, 0
    %v387 = vsel %vm313, %v273, 0
    %v390 = vsel %vm313, %v274, 0
    %v393 = vsel %vm313, %v275, 0
    %v396 = vsel %vm313, %v276, 0
    %v399 = vsel %vm313, %v277, 0
    %v402 = vsel %vm313, %v278, 0
    %v405 = vsel %vm313, %v279, 0
    %v408 = vsel %vm313, %v280, 0
    %410 = vmatprep.subr.bf16.mxu0 0
    %411 = vmatpush1.bf16.msra.mxu0 %v305
    %412 = vmatprep.subr.bf16.mxu0 0
    %413 = vmatpush1.bf16.msra.mxu0 %v306
    %414 = vmatprep.subr.bf16.mxu0 0
    %415 = vmatpush1.bf16.msra.mxu0 %v307
    %416 = vmatprep.subr.bf16.mxu0 0
    %417 = vmatpush1.bf16.msra.mxu0 %v308
    %418 = vmatprep.subr.bf16.mxu0 0
    %419 = vmatpush1.bf16.msra.mxu0 0
    %420 = vmatprep.subr.bf16.mxu0 0
    %421 = vmatpush1.bf16.msra.mxu0 0
    %422 = vmatprep.subr.bf16.mxu0 0
    %423 = vmatpush1.bf16.msra.mxu0 0
    %424 = vmatprep.subr.bf16.mxu0 0
    %425 = vmatpush1.bf16.msra.mxu0 0
    %426 = vmatprep.subr.bf16.mxu0 0
    %427 = vmatpush1.bf16.msra.mxu0 0
    %428 = vmatprep.subr.bf16.mxu0 0
    %429 = vmatpush1.bf16.msra.mxu0 0
    %430 = vmatprep.subr.bf16.mxu0 0
    %431 = vmatpush1.bf16.msra.mxu0 0
    %432 = vmatprep.subr.bf16.mxu0 0
    %433 = vmatpush1.bf16.msra.mxu0 0
    %434 = vmatprep.subr.bf16.mxu0 0
    %435 = vmatpush1.bf16.msra.mxu0 0
    %436 = vmatprep.subr.bf16.mxu0 0
    %437 = vmatpush1.bf16.msra.mxu0 0
    %438 = vmatprep.subr.bf16.mxu0 0
    %439 = vmatpush1.bf16.msra.mxu0 0
    %440 = vmatprep.subr.bf16.mxu0 0
    %441 = vmatpush1.bf16.msra.mxu0 0
    %442 = vmatprep.mubr.bf16.mxu0 0
    %443 = vmatmul.mubr.bf16.gmra.mrb[0].mxu0 %v315
    %v444 = vpop.f32.mrb[0].mxu0
    %v445 = vadd.f32 0.0, %v444
    %v446 = vpop.f32.mrb[0].mxu0
    %v447 = vpop.f32.mrb[0].mxu0
    %v448 = vadd.f32 0.0, %v447
    %v449 = vpop.f32.mrb[0].mxu0
    %450 = vmatprep.mubr.bf16.mxu0 0
    %451 = vmatmul.mubr.bf16.gmra.mrb[0].mxu0 %v318
    %v452 = vpop.f32.mrb[0].mxu0
    %v453 = vadd.f32 0.0, %v452
    %v454 = vpop.f32.mrb[0].mxu0
    %v455 = vpop.f32.mrb[0].mxu0
    %v456 = vadd.f32 0.0, %v455
    %v457 = vpop.f32.mrb[0].mxu0
    %458 = vmatprep.mubr.bf16.mxu0 0
    %459 = vmatmul.mubr.bf16.gmra.mrb[0].mxu0 %v321
    %v460 = vpop.f32.mrb[0].mxu0
    %v461 = vadd.f32 0.0, %v460
    %v462 = vpop.f32.mrb[0].mxu0
    %v463 = vpop.f32.mrb[0].mxu0
    %v464 = vadd.f32 0.0, %v463
    %v465 = vpop.f32.mrb[0].mxu0
    %466 = vmatprep.mubr.bf16.mxu0 0
    %467 = vmatmul.mubr.bf16.gmra.mrb[0].mxu0 %v324
    %v468 = vpop.f32.mrb[0].mxu0
    %v469 = vadd.f32 0.0, %v468
    %v470 = vpop.f32.mrb[0].mxu0
    %v471 = vpop.f32.mrb[0].mxu0
    %v472 = vadd.f32 0.0, %v471
    %v473 = vpop.f32.mrb[0].mxu0
    %474 = vmatprep.mubr.bf16.mxu0 0
    %475 = vmatmul.mubr.bf16.gmra.mrb[0].mxu0 %v327
    %v476 = vpop.f32.mrb[0].mxu0
    %v477 = vadd.f32 0.0, %v476
    %v478 = vpop.f32.mrb[0].mxu0
    %v479 = vpop.f32.mrb[0].mxu0
    %v480 = vadd.f32 0.0, %v479
    %v481 = vpop.f32.mrb[0].mxu0
    %482 = vmatprep.mubr.bf16.mxu0 0
    %483 = vmatmul.mubr.bf16.gmra.mrb[0].mxu0 %v330
    %v484 = vpop.f32.mrb[0].mxu0
    %v485 = vadd.f32 0.0, %v484
    %v486 = vpop.f32.mrb[0].mxu0
    %v487 = vpop.f32.mrb[0].mxu0
    %v488 = vadd.f32 0.0, %v487
    %v489 = vpop.f32.mrb[0].mxu0
    %490 = vmatprep.mubr.bf16.mxu0 0
    %491 = vmatmul.mubr.bf16.gmra.mrb[0].mxu0 %v333
    %v492 = vpop.f32.mrb[0].mxu0
    %v493 = vadd.f32 0.0, %v492
    %v494 = vpop.f32.mrb[0].mxu0
    %v495 = vpop.f32.mrb[0].mxu0
    %v496 = vadd.f32 0.0, %v495
    %v497 = vpop.f32.mrb[0].mxu0
    %498 = vmatprep.mubr.bf16.mxu0 0
    %499 = vmatmul.mubr.bf16.gmra.mrb[0].mxu0 %v336
    %v500 = vpop.f32.mrb[0].mxu0
    %v501 = vadd.f32 0.0, %v500
    %v502 = vpop.f32.mrb[0].mxu0
    %v503 = vpop.f32.mrb[0].mxu0
    %v504 = vadd.f32 0.0, %v503
    %v505 = vpop.f32.mrb[0].mxu0
    %506 = vmatprep.mubr.bf16.mxu0 0
    %507 = vmatmul.mubr.bf16.gmra.mrb[0].mxu0 %v339
    %v508 = vpop.f32.mrb[0].mxu0
    %v509 = vadd.f32 0.0, %v508
    %v510 = vpop.f32.mrb[0].mxu0
    %v511 = vpop.f32.mrb[0].mxu0
    %v512 = vadd.f32 0.0, %v511
    %v513 = vpop.f32.mrb[0].mxu0
    %514 = vmatprep.mubr.bf16.mxu0 0
    %515 = vmatmul.mubr.bf16.gmra.mrb[0].mxu0 %v342
    %v516 = vpop.f32.mrb[0].mxu0
    %v517 = vadd.f32 0.0, %v516
    %v518 = vpop.f32.mrb[0].mxu0
    %v519 = vpop.f32.mrb[0].mxu0
    %v520 = vadd.f32 0.0, %v519
    %v521 = vpop.f32.mrb[0].mxu0
    %522 = vmatprep.mubr.bf16.mxu0 0
    %523 = vmatmul.mubr.bf16.gmra.mrb[0].mxu0 %v345
    %v524 = vpop.f32.mrb[0].mxu0
    %v525 = vadd.f32 0.0, %v524
    %v526 = vpop.f32.mrb[0].mxu0
    %v527 = vpop.f32.mrb[0].mxu0
    %v528 = vadd.f32 0.0, %v527
    %v529 = vpop.f32.mrb[0].mxu0
    %530 = vmatprep.mubr.bf16.mxu0 0
    %531 = vmatmul.mubr.bf16.gmra.mrb[0].mxu0 %v348
    %v532 = vpop.f32.mrb[0].mxu0
    %v533 = vadd.f32 0.0, %v532
    %v534 = vpop.f32.mrb[0].mxu0
    %v535 = vpop.f32.mrb[0].mxu0
    %v536 = vadd.f32 0.0, %v535
    %v537 = vpop.f32.mrb[0].mxu0
    %538 = vmatprep.mubr.bf16.mxu0 0
    %539 = vmatmul.mubr.bf16.gmra.mrb[0].mxu0 %v351
    %v540 = vpop.f32.mrb[0].mxu0
    %v541 = vadd.f32 0.0, %v540
    %v542 = vpop.f32.mrb[0].mxu0
    %v543 = vpop.f32.mrb[0].mxu0
    %v544 = vadd.f32 0.0, %v543
    %v545 = vpop.f32.mrb[0].mxu0
    %546 = vmatprep.mubr.bf16.mxu0 0
    %547 = vmatmul.mubr.bf16.gmra.mrb[0].mxu0 %v354
    %v548 = vpop.f32.mrb[0].mxu0
    %v549 = vadd.f32 0.0, %v548
    %v550 = vpop.f32.mrb[0].mxu0
    %v551 = vpop.f32.mrb[0].mxu0
    %v552 = vadd.f32 0.0, %v551
    %v553 = vpop.f32.mrb[0].mxu0
    %554 = vmatprep.mubr.bf16.mxu0 0
    %555 = vmatmul.mubr.bf16.gmra.mrb[0].mxu0 %v357
    %v556 = vpop.f32.mrb[0].mxu0
    %v557 = vadd.f32 0.0, %v556
    %v558 = vpop.f32.mrb[0].mxu0
    %v559 = vpop.f32.mrb[0].mxu0
    %v560 = vadd.f32 0.0, %v559
    %v561 = vpop.f32.mrb[0].mxu0
    %562 = vmatprep.mubr.bf16.mxu0 0
    %563 = vmatmul.mubr.bf16.gmra.mrb[0].mxu0 %v360
    %v564 = vpop.f32.mrb[0].mxu0
    %v565 = vadd.f32 0.0, %v564
    %v566 = vpop.f32.mrb[0].mxu0
    %v567 = vpop.f32.mrb[0].mxu0
    %v568 = vadd.f32 0.0, %v567
    %v569 = vpop.f32.mrb[0].mxu0
    %570 = vmatprep.mubr.bf16.mxu0 0
    %571 = vmatmul.mubr.bf16.gmra.mrb[0].mxu0 %v363
    %v572 = vpop.f32.mrb[0].mxu0
    %v573 = vadd.f32 0.0, %v572
    %v574 = vpop.f32.mrb[0].mxu0
    %v575 = vpop.f32.mrb[0].mxu0
    %v576 = vadd.f32 0.0, %v575
    %v577 = vpop.f32.mrb[0].mxu0
    %578 = vmatprep.mubr.bf16.mxu0 0
    %579 = vmatmul.mubr.bf16.gmra.mrb[0].mxu0 %v366
    %v580 = vpop.f32.mrb[0].mxu0
    %v581 = vadd.f32 0.0, %v580
    %v582 = vpop.f32.mrb[0].mxu0
    %v583 = vpop.f32.mrb[0].mxu0
    %v584 = vadd.f32 0.0, %v583
    %v585 = vpop.f32.mrb[0].mxu0
    %586 = vmatprep.mubr.bf16.mxu0 0
    %587 = vmatmul.mubr.bf16.gmra.mrb[0].mxu0 %v369
    %v588 = vpop.f32.mrb[0].mxu0
    %v589 = vadd.f32 0.0, %v588
    %v590 = vpop.f32.mrb[0].mxu0
    %v591 = vpop.f32.mrb[0].mxu0
    %v592 = vadd.f32 0.0, %v591
    %v593 = vpop.f32.mrb[0].mxu0
    %594 = vmatprep.mubr.bf16.mxu0 0
    %595 = vmatmul.mubr.bf16.gmra.mrb[0].mxu0 %v372
    %v596 = vpop.f32.mrb[0].mxu0
    %v597 = vadd.f32 0.0, %v596
    %v598 = vpop.f32.mrb[0].mxu0
    %v599 = vpop.f32.mrb[0].mxu0
    %v600 = vadd.f32 0.0, %v599
    %v601 = vpop.f32.mrb[0].mxu0
    %602 = vmatprep.mubr.bf16.mxu0 0
    %603 = vmatmul.mubr.bf16.gmra.mrb[0].mxu0 %v375
    %v604 = vpop.f32.mrb[0].mxu0
    %v605 = vadd.f32 0.0, %v604
    %v606 = vpop.f32.mrb[0].mxu0
    %v607 = vpop.f32.mrb[0].mxu0
    %v608 = vadd.f32 0.0, %v607
    %v609 = vpop.f32.mrb[0].mxu0
    %610 = vmatprep.mubr.bf16.mxu0 0
    %611 = vmatmul.mubr.bf16.gmra.mrb[0].mxu0 %v378
    %v612 = vpop.f32.mrb[0].mxu0
    %v613 = vadd.f32 0.0, %v612
    %v614 = vpop.f32.mrb[0].mxu0
    %v615 = vpop.f32.mrb[0].mxu0
    %v616 = vadd.f32 0.0, %v615
    %v617 = vpop.f32.mrb[0].mxu0
    %618 = vmatprep.mubr.bf16.mxu0 0
    %619 = vmatmul.mubr.bf16.gmra.mrb[0].mxu0 %v381
    %v620 = vpop.f32.mrb[0].mxu0
    %v621 = vadd.f32 0.0, %v620
    %v622 = vpop.f32.mrb[0].mxu0
    %v623 = vpop.f32.mrb[0].mxu0
    %v624 = vadd.f32 0.0, %v623
    %v625 = vpop.f32.mrb[0].mxu0
    %626 = vmatprep.mubr.bf16.mxu0 0
    %627 = vmatmul.mubr.bf16.gmra.mrb[0].mxu0 %v384
    %v628 = vpop.f32.mrb[0].mxu0
    %v629 = vadd.f32 0.0, %v628
    %v630 = vpop.f32.mrb[0].mxu0
    %v631 = vpop.f32.mrb[0].mxu0
    %v632 = vadd.f32 0.0, %v631
    %v633 = vpop.f32.mrb[0].mxu0
    %634 = vmatprep.mubr.bf16.mxu0 0
    %635 = vmatmul.mubr.bf16.gmra.mrb[0].mxu0 %v387
    %v636 = vpop.f32.mrb[0].mxu0
    %v637 = vadd.f32 0.0, %v636
    %v638 = vpop.f32.mrb[0].mxu0
    %v639 = vpop.f32.mrb[0].mxu0
    %v640 = vadd.f32 0.0, %v639
    %v641 = vpop.f32.mrb[0].mxu0
    %642 = vmatprep.mubr.bf16.mxu0 0
    %643 = vmatmul.mubr.bf16.gmra.mrb[0].mxu0 %v390
    %v644 = vpop.f32.mrb[0].mxu0
    %v645 = vadd.f32 0.0, %v644
    %v646 = vpop.f32.mrb[0].mxu0
    %v647 = vpop.f32.mrb[0].mxu0
    %v648 = vadd.f32 0.0, %v647
    %v649 = vpop.f32.mrb[0].mxu0
    %650 = vmatprep.mubr.bf16.mxu0 0
    %651 = vmatmul.mubr.bf16.gmra.mrb[0].mxu0 %v393
    %v652 = vpop.f32.mrb[0].mxu0
    %v653 = vadd.f32 0.0, %v652
    %v654 = vpop.f32.mrb[0].mxu0
    %v655 = vpop.f32.mrb[0].mxu0
    %v656 = vadd.f32 0.0, %v655
    %v657 = vpop.f32.mrb[0].mxu0
    %658 = vmatprep.mubr.bf16.mxu0 0
    %659 = vmatmul.mubr.bf16.gmra.mrb[0].mxu0 %v396
    %v660 = vpop.f32.mrb[0].mxu0
    %v661 = vadd.f32 0.0, %v660
    %v662 = vpop.f32.mrb[0].mxu0
    %v663 = vpop.f32.mrb[0].mxu0
    %v664 = vadd.f32 0.0, %v663
    %v665 = vpop.f32.mrb[0].mxu0
    %666 = vmatprep.mubr.bf16.mxu0 0
    %667 = vmatmul.mubr.bf16.gmra.mrb[0].mxu0 %v399
    %v668 = vpop.f32.mrb[0].mxu0
    %v669 = vadd.f32 0.0, %v668
    %v670 = vpop.f32.mrb[0].mxu0
    %v671 = vpop.f32.mrb[0].mxu0
    %v672 = vadd.f32 0.0, %v671
    %v673 = vpop.f32.mrb[0].mxu0
    %674 = vmatprep.mubr.bf16.mxu0 0
    %675 = vmatmul.mubr.bf16.gmra.mrb[0].mxu0 %v402
    %v676 = vpop.f32.mrb[0].mxu0
    %v677 = vadd.f32 0.0, %v676
    %v678 = vpop.f32.mrb[0].mxu0
    %v679 = vpop.f32.mrb[0].mxu0
    %v680 = vadd.f32 0.0, %v679
    %v681 = vpop.f32.mrb[0].mxu0
    %682 = vmatprep.mubr.bf16.mxu0 0
    %683 = vmatmul.mubr.bf16.gmra.mrb[0].mxu0 %v405
    %v684 = vpop.f32.mrb[0].mxu0
    %v685 = vadd.f32 0.0, %v684
    %v686 = vpop.f32.mrb[0].mxu0
    %v687 = vpop.f32.mrb[0].mxu0
    %v688 = vadd.f32 0.0, %v687
    %v689 = vpop.f32.mrb[0].mxu0
    %690 = vmatprep.mubr.bf16.mxu0 0
    %691 = vmatmul.mubr.bf16.gmra.mrb[0].mxu0 %v408
    %v692 = vpop.f32.mrb[0].mxu0
    %v693 = vadd.f32 0.0, %v692
    %v694 = vpop.f32.mrb[0].mxu0
    %v695 = vpop.f32.mrb[0].mxu0
    %v696 = vadd.f32 0.0, %v695
    %v697 = vpop.f32.mrb[0].mxu0
    %698 = vdwg.mxu0
    %699 = vxpose.xlu0.b32.start [1/16] %v445, 128
    %700 = vxpose.xlu0.b32.cont [2/16] %v448, 128
    %701 = vxpose.xlu0.b32.cont [3/16] %v453, 128
    %702 = vxpose.xlu0.b32.cont [4/16] %v456, 128
    %703 = vxpose.xlu0.b32.cont [5/16] %v461, 128
    %704 = vxpose.xlu0.b32.cont [6/16] %v464, 128
    %705 = vxpose.xlu0.b32.cont [7/16] %v469, 128
    %706 = vxpose.xlu0.b32.cont [8/16] %v472, 128
    %707 = vxpose.xlu0.b32.cont [9/16] 0.0, 128
    %708 = vxpose.xlu0.b32.cont [10/16] 0.0, 128
    %709 = vxpose.xlu0.b32.cont [11/16] 0.0, 128
    %710 = vxpose.xlu0.b32.cont [12/16] 0.0, 128
    %711 = vxpose.xlu0.b32.cont [13/16] 0.0, 128
    %712 = vxpose.xlu0.b32.cont [14/16] 0.0, 128
    %713 = vxpose.xlu0.b32.cont [15/16] 0.0, 128
    %714 = vxpose.xlu0.b32.end [16/16] 0.0, 128
    %v715 = vpop.trf.xlu0
    %v716 = vpop.trf.xlu0
    %v717 = vpop.trf.xlu0
    %v718 = vpop.trf.xlu0
    %v719 = vpop.trf.xlu0
    %v720 = vpop.trf.xlu0
    %v721 = vpop.trf.xlu0
    %v722 = vpop.trf.xlu0
    %v723 = vpop.trf.xlu0
    %v724 = vpop.trf.xlu0
    %v725 = vpop.trf.xlu0
    %v726 = vpop.trf.xlu0
    %v727 = vpop.trf.xlu0
    %v728 = vpop.trf.xlu0
    %v729 = vpop.trf.xlu0
    %v730 = vpop.trf.xlu0
    %731 = vxpose.xlu0.b32.start [1/16] %v477, 128
    %732 = vxpose.xlu0.b32.cont [2/16] %v480, 128
    %733 = vxpose.xlu0.b32.cont [3/16] %v485, 128
    %734 = vxpose.xlu0.b32.cont [4/16] %v488, 128
    %735 = vxpose.xlu0.b32.cont [5/16] %v493, 128
    %736 = vxpose.xlu0.b32.cont [6/16] %v496, 128
    %737 = vxpose.xlu0.b32.cont [7/16] %v501, 128
    %738 = vxpose.xlu0.b32.cont [8/16] %v504, 128
    %739 = vxpose.xlu0.b32.cont [9/16] 0.0, 128
    %740 = vxpose.xlu0.b32.cont [10/16] 0.0, 128
    %741 = vxpose.xlu0.b32.cont [11/16] 0.0, 128
    %742 = vxpose.xlu0.b32.cont [12/16] 0.0, 128
    %743 = vxpose.xlu0.b32.cont [13/16] 0.0, 128
    %744 = vxpose.xlu0.b32.cont [14/16] 0.0, 128
    %745 = vxpose.xlu0.b32.cont [15/16] 0.0, 128
    %746 = vxpose.xlu0.b32.end [16/16] 0.0, 128
    %v747 = vpop.trf.xlu0
    %v748 = vpop.trf.xlu0
    %v749 = vpop.trf.xlu0
    %v750 = vpop.trf.xlu0
    %v751 = vpop.trf.xlu0
    %v752 = vpop.trf.xlu0
    %v753 = vpop.trf.xlu0
    %v754 = vpop.trf.xlu0
    %v755 = vpop.trf.xlu0
    %v756 = vpop.trf.xlu0
    %v757 = vpop.trf.xlu0
    %v758 = vpop.trf.xlu0
    %v759 = vpop.trf.xlu0
    %v760 = vpop.trf.xlu0
    %v761 = vpop.trf.xlu0
    %v762 = vpop.trf.xlu0
    %763 = vxpose.xlu0.b32.start [1/16] %v509, 128
    %764 = vxpose.xlu0.b32.cont [2/16] %v512, 128
    %765 = vxpose.xlu0.b32.cont [3/16] %v517, 128
    %766 = vxpose.xlu0.b32.cont [4/16] %v520, 128
    %767 = vxpose.xlu0.b32.cont [5/16] %v525, 128
    %768 = vxpose.xlu0.b32.cont [6/16] %v528, 128
    %769 = vxpose.xlu0.b32.cont [7/16] %v533, 128
    %770 = vxpose.xlu0.b32.cont [8/16] %v536, 128
    %771 = vxpose.xlu0.b32.cont [9/16] 0.0, 128
    %772 = vxpose.xlu0.b32.cont [10/16] 0.0, 128
    %773 = vxpose.xlu0.b32.cont [11/16] 0.0, 128
    %774 = vxpose.xlu0.b32.cont [12/16] 0.0, 128
    %775 = vxpose.xlu0.b32.cont [13/16] 0.0, 128
    %776 = vxpose.xlu0.b32.cont [14/16] 0.0, 128
    %777 = vxpose.xlu0.b32.cont [15/16] 0.0, 128
    %778 = vxpose.xlu0.b32.end [16/16] 0.0, 128
    %v779 = vpop.trf.xlu0
    %v780 = vpop.trf.xlu0
    %v781 = vpop.trf.xlu0
    %v782 = vpop.trf.xlu0
    %v783 = vpop.trf.xlu0
    %v784 = vpop.trf.xlu0
    %v785 = vpop.trf.xlu0
    %v786 = vpop.trf.xlu0
    %v787 = vpop.trf.xlu0
    %v788 = vpop.trf.xlu0
    %v789 = vpop.trf.xlu0
    %v790 = vpop.trf.xlu0
    %v791 = vpop.trf.xlu0
    %v792 = vpop.trf.xlu0
    %v793 = vpop.trf.xlu0
    %v794 = vpop.trf.xlu0
    %795 = vxpose.xlu0.b32.start [1/16] %v541, 128
    %796 = vxpose.xlu0.b32.cont [2/16] %v544, 128
    %797 = vxpose.xlu0.b32.cont [3/16] %v549, 128
    %798 = vxpose.xlu0.b32.cont [4/16] %v552, 128
    %799 = vxpose.xlu0.b32.cont [5/16] %v557, 128
    %800 = vxpose.xlu0.b32.cont [6/16] %v560, 128
    %801 = vxpose.xlu0.b32.cont [7/16] %v565, 128
    %802 = vxpose.xlu0.b32.cont [8/16] %v568, 128
    %803 = vxpose.xlu0.b32.cont [9/16] 0.0, 128
    %804 = vxpose.xlu0.b32.cont [10/16] 0.0, 128
    %805 = vxpose.xlu0.b32.cont [11/16] 0.0, 128
    %806 = vxpose.xlu0.b32.cont [12/16] 0.0, 128
    %807 = vxpose.xlu0.b32.cont [13/16] 0.0, 128
    %808 = vxpose.xlu0.b32.cont [14/16] 0.0, 128
    %809 = vxpose.xlu0.b32.cont [15/16] 0.0, 128
    %810 = vxpose.xlu0.b32.end [16/16] 0.0, 128
    %v811 = vpop.trf.xlu0
    %v812 = vpop.trf.xlu0
    %v813 = vpop.trf.xlu0
    %v814 = vpop.trf.xlu0
    %v815 = vpop.trf.xlu0
    %v816 = vpop.trf.xlu0
    %v817 = vpop.trf.xlu0
    %v818 = vpop.trf.xlu0
    %v819 = vpop.trf.xlu0
    %v820 = vpop.trf.xlu0
    %v821 = vpop.trf.xlu0
    %v822 = vpop.trf.xlu0
    %v823 = vpop.trf.xlu0
    %v824 = vpop.trf.xlu0
    %v825 = vpop.trf.xlu0
    %v826 = vpop.trf.xlu0
    %827 = vxpose.xlu0.b32.start [1/16] %v573, 128
    %828 = vxpose.xlu0.b32.cont [2/16] %v576, 128
    %829 = vxpose.xlu0.b32.cont [3/16] %v581, 128
    %830 = vxpose.xlu0.b32.cont [4/16] %v584, 128
    %831 = vxpose.xlu0.b32.cont [5/16] %v589, 128
    %832 = vxpose.xlu0.b32.cont [6/16] %v592, 128
    %833 = vxpose.xlu0.b32.cont [7/16] %v597, 128
    %834 = vxpose.xlu0.b32.cont [8/16] %v600, 128
    %835 = vxpose.xlu0.b32.cont [9/16] 0.0, 128
    %836 = vxpose.xlu0.b32.cont [10/16] 0.0, 128
    %837 = vxpose.xlu0.b32.cont [11/16] 0.0, 128
    %838 = vxpose.xlu0.b32.cont [12/16] 0.0, 128
    %839 = vxpose.xlu0.b32.cont [13/16] 0.0, 128
    %840 = vxpose.xlu0.b32.cont [14/16] 0.0, 128
    %841 = vxpose.xlu0.b32.cont [15/16] 0.0, 128
    %842 = vxpose.xlu0.b32.end [16/16] 0.0, 128
    %v843 = vpop.trf.xlu0
    %v844 = vpop.trf.xlu0
    %v845 = vpop.trf.xlu0
    %v846 = vpop.trf.xlu0
    %v847 = vpop.trf.xlu0
    %v848 = vpop.trf.xlu0
    %v849 = vpop.trf.xlu0
    %v850 = vpop.trf.xlu0
    %v851 = vpop.trf.xlu0
    %v852 = vpop.trf.xlu0
    %v853 = vpop.trf.xlu0
    %v854 = vpop.trf.xlu0
    %v855 = vpop.trf.xlu0
    %v856 = vpop.trf.xlu0
    %v857 = vpop.trf.xlu0
    %v858 = vpop.trf.xlu0
    %859 = vxpose.xlu0.b32.start [1/16] %v605, 128
    %860 = vxpose.xlu0.b32.cont [2/16] %v608, 128
    %861 = vxpose.xlu0.b32.cont [3/16] %v613, 128
    %862 = vxpose.xlu0.b32.cont [4/16] %v616, 128
    %863 = vxpose.xlu0.b32.cont [5/16] %v621, 128
    %864 = vxpose.xlu0.b32.cont [6/16] %v624, 128
    %865 = vxpose.xlu0.b32.cont [7/16] %v629, 128
    %866 = vxpose.xlu0.b32.cont [8/16] %v632, 128
    %867 = vxpose.xlu0.b32.cont [9/16] 0.0, 128
    %868 = vxpose.xlu0.b32.cont [10/16] 0.0, 128
    %869 = vxpose.xlu0.b32.cont [11/16] 0.0, 128
    %870 = vxpose.xlu0.b32.cont [12/16] 0.0, 128
    %871 = vxpose.xlu0.b32.cont [13/16] 0.0, 128
    %872 = vxpose.xlu0.b32.cont [14/16] 0.0, 128
    %873 = vxpose.xlu0.b32.cont [15/16] 0.0, 128
    %874 = vxpose.xlu0.b32.end [16/16] 0.0, 128
    %v875 = vpop.trf.xlu0
    %v876 = vpop.trf.xlu0
    %v877 = vpop.trf.xlu0
    %v878 = vpop.trf.xlu0
    %v879 = vpop.trf.xlu0
    %v880 = vpop.trf.xlu0
    %v881 = vpop.trf.xlu0
    %v882 = vpop.trf.xlu0
    %v883 = vpop.trf.xlu0
    %v884 = vpop.trf.xlu0
    %v885 = vpop.trf.xlu0
    %v886 = vpop.trf.xlu0
    %v887 = vpop.trf.xlu0
    %v888 = vpop.trf.xlu0
    %v889 = vpop.trf.xlu0
    %v890 = vpop.trf.xlu0
    %891 = vxpose.xlu0.b32.start [1/16] %v637, 128
    %892 = vxpose.xlu0.b32.cont [2/16] %v640, 128
    %893 = vxpose.xlu0.b32.cont [3/16] %v645, 128
    %894 = vxpose.xlu0.b32.cont [4/16] %v648, 128
    %895 = vxpose.xlu0.b32.cont [5/16] %v653, 128
    %896 = vxpose.xlu0.b32.cont [6/16] %v656, 128
    %897 = vxpose.xlu0.b32.cont [7/16] %v661, 128
    %898 = vxpose.xlu0.b32.cont [8/16] %v664, 128
    %899 = vxpose.xlu0.b32.cont [9/16] 0.0, 128
    %900 = vxpose.xlu0.b32.cont [10/16] 0.0, 128
    %901 = vxpose.xlu0.b32.cont [11/16] 0.0, 128
    %902 = vxpose.xlu0.b32.cont [12/16] 0.0, 128
    %903 = vxpose.xlu0.b32.cont [13/16] 0.0, 128
    %904 = vxpose.xlu0.b32.cont [14/16] 0.0, 128
    %905 = vxpose.xlu0.b32.cont [15/16] 0.0, 128
    %906 = vxpose.xlu0.b32.end [16/16] 0.0, 128
    %v907 = vpop.trf.xlu0
    %v908 = vpop.trf.xlu0
    %v909 = vpop.trf.xlu0
    %v910 = vpop.trf.xlu0
    %v911 = vpop.trf.xlu0
    %v912 = vpop.trf.xlu0
    %v913 = vpop.trf.xlu0
    %v914 = vpop.trf.xlu0
    %v915 = vpop.trf.xlu0
    %v916 = vpop.trf.xlu0
    %v917 = vpop.trf.xlu0
    %v918 = vpop.trf.xlu0
    %v919 = vpop.trf.xlu0
    %v920 = vpop.trf.xlu0
    %v921 = vpop.trf.xlu0
    %v922 = vpop.trf.xlu0
    %923 = vxpose.xlu0.b32.start [1/16] %v669, 128
    %924 = vxpose.xlu0.b32.cont [2/16] %v672, 128
    %925 = vxpose.xlu0.b32.cont [3/16] %v677, 128
    %926 = vxpose.xlu0.b32.cont [4/16] %v680, 128
    %927 = vxpose.xlu0.b32.cont [5/16] %v685, 128
    %928 = vxpose.xlu0.b32.cont [6/16] %v688, 128
    %929 = vxpose.xlu0.b32.cont [7/16] %v693, 128
    %930 = vxpose.xlu0.b32.cont [8/16] %v696, 128
    %931 = vxpose.xlu0.b32.cont [9/16] 0.0, 128
    %932 = vxpose.xlu0.b32.cont [10/16] 0.0, 128
    %933 = vxpose.xlu0.b32.cont [11/16] 0.0, 128
    %934 = vxpose.xlu0.b32.cont [12/16] 0.0, 128
    %935 = vxpose.xlu0.b32.cont [13/16] 0.0, 128
    %936 = vxpose.xlu0.b32.cont [14/16] 0.0, 128
    %937 = vxpose.xlu0.b32.cont [15/16] 0.0, 128
    %938 = vxpose.xlu0.b32.end [16/16] 0.0, 128
    %v939 = vpop.trf.xlu0
    %v940 = vpop.trf.xlu0
    %v941 = vpop.trf.xlu0
    %v942 = vpop.trf.xlu0
    %v943 = vpop.trf.xlu0
    %v944 = vpop.trf.xlu0
    %v945 = vpop.trf.xlu0
    %v946 = vpop.trf.xlu0
    %v947 = vpop.trf.xlu0
    %v948 = vpop.trf.xlu0
    %v949 = vpop.trf.xlu0
    %v950 = vpop.trf.xlu0
    %v951 = vpop.trf.xlu0
    %v952 = vpop.trf.xlu0
    %v953 = vpop.trf.xlu0
    %v954 = vpop.trf.xlu0
    %1019 = vrot.lane.b32.xlu0 %v445, 64
    %v1020 = vpop.permute.xlu0 %1019
    %1021 = vrot.lane.b32.xlu0 %v448, 64
    %v1022 = vpop.permute.xlu0 %1021
    %1023 = vrot.lane.b32.xlu0 %v453, 64
    %v1024 = vpop.permute.xlu0 %1023
    %1025 = vrot.lane.b32.xlu0 %v456, 64
    %v1026 = vpop.permute.xlu0 %1025
    %1027 = vrot.lane.b32.xlu0 %v461, 64
    %v1028 = vpop.permute.xlu0 %1027
    %1029 = vrot.lane.b32.xlu0 %v464, 64
    %v1030 = vpop.permute.xlu0 %1029
    %1031 = vrot.lane.b32.xlu0 %v469, 64
    %v1032 = vpop.permute.xlu0 %1031
    %1033 = vrot.lane.b32.xlu0 %v472, 64
    %v1034 = vpop.permute.xlu0 %1033
    %1035 = vrot.lane.b32.xlu0 %v477, 64
    %v1036 = vpop.permute.xlu0 %1035
    %1037 = vrot.lane.b32.xlu0 %v480, 64
    %v1038 = vpop.permute.xlu0 %1037
    %1039 = vrot.lane.b32.xlu0 %v485, 64
    %v1040 = vpop.permute.xlu0 %1039
    %1041 = vrot.lane.b32.xlu0 %v488, 64
    %v1042 = vpop.permute.xlu0 %1041
    %1043 = vrot.lane.b32.xlu0 %v493, 64
    %v1044 = vpop.permute.xlu0 %1043
    %1045 = vrot.lane.b32.xlu0 %v496, 64
    %v1046 = vpop.permute.xlu0 %1045
    %1047 = vrot.lane.b32.xlu0 %v501, 64
    %v1048 = vpop.permute.xlu0 %1047
    %1049 = vrot.lane.b32.xlu0 %v504, 64
    %v1050 = vpop.permute.xlu0 %1049
    %1051 = vrot.lane.b32.xlu0 %v509, 64
    %v1052 = vpop.permute.xlu0 %1051
    %1053 = vrot.lane.b32.xlu0 %v512, 64
    %v1054 = vpop.permute.xlu0 %1053
    %1055 = vrot.lane.b32.xlu0 %v517, 64
    %v1056 = vpop.permute.xlu0 %1055
    %1057 = vrot.lane.b32.xlu0 %v520, 64
    %v1058 = vpop.permute.xlu0 %1057
    %1059 = vrot.lane.b32.xlu0 %v525, 64
    %v1060 = vpop.permute.xlu0 %1059
    %1061 = vrot.lane.b32.xlu0 %v528, 64
    %v1062 = vpop.permute.xlu0 %1061
    %1063 = vrot.lane.b32.xlu0 %v533, 64
    %v1064 = vpop.permute.xlu0 %1063
    %1065 = vrot.lane.b32.xlu0 %v536, 64
    %v1066 = vpop.permute.xlu0 %1065
    %1067 = vrot.lane.b32.xlu0 %v541, 64
    %v1068 = vpop.permute.xlu0 %1067
    %1069 = vrot.lane.b32.xlu0 %v544, 64
    %v1070 = vpop.permute.xlu0 %1069
    %1071 = vrot.lane.b32.xlu0 %v549, 64
    %v1072 = vpop.permute.xlu0 %1071
    %1073 = vrot.lane.b32.xlu0 %v552, 64
    %v1074 = vpop.permute.xlu0 %1073
    %1075 = vrot.lane.b32.xlu0 %v557, 64
    %v1076 = vpop.permute.xlu0 %1075
    %1077 = vrot.lane.b32.xlu0 %v560, 64
    %v1078 = vpop.permute.xlu0 %1077
    %1079 = vrot.lane.b32.xlu0 %v565, 64
    %v1080 = vpop.permute.xlu0 %1079
    %1081 = vrot.lane.b32.xlu0 %v568, 64
    %v1082 = vpop.permute.xlu0 %1081
    %1083 = vrot.lane.b32.xlu0 %v573, 64
    %v1084 = vpop.permute.xlu0 %1083
    %1085 = vrot.lane.b32.xlu0 %v576, 64
    %v1086 = vpop.permute.xlu0 %1085
    %1087 = vrot.lane.b32.xlu0 %v581, 64
    %v1088 = vpop.permute.xlu0 %1087
    %1089 = vrot.lane.b32.xlu0 %v584, 64
    %v1090 = vpop.permute.xlu0 %1089
    %1091 = vrot.lane.b32.xlu0 %v589, 64
    %v1092 = vpop.permute.xlu0 %1091
    %1093 = vrot.lane.b32.xlu0 %v592, 64
    %v1094 = vpop.permute.xlu0 %1093
    %1095 = vrot.lane.b32.xlu0 %v597, 64
    %v1096 = vpop.permute.xlu0 %1095
    %1097 = vrot.lane.b32.xlu0 %v600, 64
    %v1098 = vpop.permute.xlu0 %1097
    %1099 = vrot.lane.b32.xlu0 %v605, 64
    %v1100 = vpop.permute.xlu0 %1099
    %1101 = vrot.lane.b32.xlu0 %v608, 64
    %v1102 = vpop.permute.xlu0 %1101
    %1103 = vrot.lane.b32.xlu0 %v613, 64
    %v1104 = vpop.permute.xlu0 %1103
    %1105 = vrot.lane.b32.xlu0 %v616, 64
    %v1106 = vpop.permute.xlu0 %1105
    %1107 = vrot.lane.b32.xlu0 %v621, 64
    %v1108 = vpop.permute.xlu0 %1107
    %1109 = vrot.lane.b32.xlu0 %v624, 64
    %v1110 = vpop.permute.xlu0 %1109
    %1111 = vrot.lane.b32.xlu0 %v629, 64
    %v1112 = vpop.permute.xlu0 %1111
    %1113 = vrot.lane.b32.xlu0 %v632, 64
    %v1114 = vpop.permute.xlu0 %1113
    %1115 = vrot.lane.b32.xlu0 %v637, 64
    %v1116 = vpop.permute.xlu0 %1115
    %1117 = vrot.lane.b32.xlu0 %v640, 64
    %v1118 = vpop.permute.xlu0 %1117
    %1119 = vrot.lane.b32.xlu0 %v645, 64
    %v1120 = vpop.permute.xlu0 %1119
    %1121 = vrot.lane.b32.xlu0 %v648, 64
    %v1122 = vpop.permute.xlu0 %1121
    %1123 = vrot.lane.b32.xlu0 %v653, 64
    %v1124 = vpop.permute.xlu0 %1123
    %1125 = vrot.lane.b32.xlu0 %v656, 64
    %v1126 = vpop.permute.xlu0 %1125
    %1127 = vrot.lane.b32.xlu0 %v661, 64
    %v1128 = vpop.permute.xlu0 %1127
    %1129 = vrot.lane.b32.xlu0 %v664, 64
    %v1130 = vpop.permute.xlu0 %1129
    %1131 = vrot.lane.b32.xlu0 %v669, 64
    %v1132 = vpop.permute.xlu0 %1131
    %1133 = vrot.lane.b32.xlu0 %v672, 64
    %v1134 = vpop.permute.xlu0 %1133
    %1135 = vrot.lane.b32.xlu0 %v677, 64
    %v1136 = vpop.permute.xlu0 %1135
    %1137 = vrot.lane.b32.xlu0 %v680, 64
    %v1138 = vpop.permute.xlu0 %1137
    %1139 = vrot.lane.b32.xlu0 %v685, 64
    %v1140 = vpop.permute.xlu0 %1139
    %1141 = vrot.lane.b32.xlu0 %v688, 64
    %v1142 = vpop.permute.xlu0 %1141
    %1143 = vrot.lane.b32.xlu0 %v693, 64
    %v1144 = vpop.permute.xlu0 %1143
    %1145 = vrot.lane.b32.xlu0 %v696, 64
    %v1146 = vpop.permute.xlu0 %1145
    %1211 = vxpose.xlu0.b32.start [1/16] %v1020, 128
    %1212 = vxpose.xlu0.b32.cont [2/16] %v1022, 128
    %1213 = vxpose.xlu0.b32.cont [3/16] %v1024, 128
    %1214 = vxpose.xlu0.b32.cont [4/16] %v1026, 128
    %1215 = vxpose.xlu0.b32.cont [5/16] %v1028, 128
    %1216 = vxpose.xlu0.b32.cont [6/16] %v1030, 128
    %1217 = vxpose.xlu0.b32.cont [7/16] %v1032, 128
    %1218 = vxpose.xlu0.b32.cont [8/16] %v1034, 128
    %1219 = vxpose.xlu0.b32.cont [9/16] 0.0, 128
    %1220 = vxpose.xlu0.b32.cont [10/16] 0.0, 128
    %1221 = vxpose.xlu0.b32.cont [11/16] 0.0, 128
    %1222 = vxpose.xlu0.b32.cont [12/16] 0.0, 128
    %1223 = vxpose.xlu0.b32.cont [13/16] 0.0, 128
    %1224 = vxpose.xlu0.b32.cont [14/16] 0.0, 128
    %1225 = vxpose.xlu0.b32.cont [15/16] 0.0, 128
    %1226 = vxpose.xlu0.b32.end [16/16] 0.0, 128
    %v1227 = vpop.trf.xlu0
    %v1228 = vpop.trf.xlu0
    %v1229 = vpop.trf.xlu0
    %v1230 = vpop.trf.xlu0
    %v1231 = vpop.trf.xlu0
    %v1232 = vpop.trf.xlu0
    %v1233 = vpop.trf.xlu0
    %v1234 = vpop.trf.xlu0
    %v1235 = vpop.trf.xlu0
    %v1236 = vpop.trf.xlu0
    %v1237 = vpop.trf.xlu0
    %v1238 = vpop.trf.xlu0
    %v1239 = vpop.trf.xlu0
    %v1240 = vpop.trf.xlu0
    %v1241 = vpop.trf.xlu0
    %v1242 = vpop.trf.xlu0
    %1243 = vxpose.xlu0.b32.start [1/16] %v1036, 128
    %1244 = vxpose.xlu0.b32.cont [2/16] %v1038, 128
    %1245 = vxpose.xlu0.b32.cont [3/16] %v1040, 128
    %1246 = vxpose.xlu0.b32.cont [4/16] %v1042, 128
    %1247 = vxpose.xlu0.b32.cont [5/16] %v1044, 128
    %1248 = vxpose.xlu0.b32.cont [6/16] %v1046, 128
    %1249 = vxpose.xlu0.b32.cont [7/16] %v1048, 128
    %1250 = vxpose.xlu0.b32.cont [8/16] %v1050, 128
    %1251 = vxpose.xlu0.b32.cont [9/16] 0.0, 128
    %1252 = vxpose.xlu0.b32.cont [10/16] 0.0, 128
    %1253 = vxpose.xlu0.b32.cont [11/16] 0.0, 128
    %1254 = vxpose.xlu0.b32.cont [12/16] 0.0, 128
    %1255 = vxpose.xlu0.b32.cont [13/16] 0.0, 128
    %1256 = vxpose.xlu0.b32.cont [14/16] 0.0, 128
    %1257 = vxpose.xlu0.b32.cont [15/16] 0.0, 128
    %1258 = vxpose.xlu0.b32.end [16/16] 0.0, 128
    %v1259 = vpop.trf.xlu0
    %v1260 = vpop.trf.xlu0
    %v1261 = vpop.trf.xlu0
    %v1262 = vpop.trf.xlu0
    %v1263 = vpop.trf.xlu0
    %v1264 = vpop.trf.xlu0
    %v1265 = vpop.trf.xlu0
    %v1266 = vpop.trf.xlu0
    %v1267 = vpop.trf.xlu0
    %v1268 = vpop.trf.xlu0
    %v1269 = vpop.trf.xlu0
    %v1270 = vpop.trf.xlu0
    %v1271 = vpop.trf.xlu0
    %v1272 = vpop.trf.xlu0
    %v1273 = vpop.trf.xlu0
    %v1274 = vpop.trf.xlu0
    %1275 = vxpose.xlu0.b32.start [1/16] %v1052, 128
    %1276 = vxpose.xlu0.b32.cont [2/16] %v1054, 128
    %1277 = vxpose.xlu0.b32.cont [3/16] %v1056, 128
    %1278 = vxpose.xlu0.b32.cont [4/16] %v1058, 128
    %1279 = vxpose.xlu0.b32.cont [5/16] %v1060, 128
    %1280 = vxpose.xlu0.b32.cont [6/16] %v1062, 128
    %1281 = vxpose.xlu0.b32.cont [7/16] %v1064, 128
    %1282 = vxpose.xlu0.b32.cont [8/16] %v1066, 128
    %1283 = vxpose.xlu0.b32.cont [9/16] 0.0, 128
    %1284 = vxpose.xlu0.b32.cont [10/16] 0.0, 128
    %1285 = vxpose.xlu0.b32.cont [11/16] 0.0, 128
    %1286 = vxpose.xlu0.b32.cont [12/16] 0.0, 128
    %1287 = vxpose.xlu0.b32.cont [13/16] 0.0, 128
    %1288 = vxpose.xlu0.b32.cont [14/16] 0.0, 128
    %1289 = vxpose.xlu0.b32.cont [15/16] 0.0, 128
    %1290 = vxpose.xlu0.b32.end [16/16] 0.0, 128
    %v1291 = vpop.trf.xlu0
    %v1292 = vpop.trf.xlu0
    %v1293 = vpop.trf.xlu0
    %v1294 = vpop.trf.xlu0
    %v1295 = vpop.trf.xlu0
    %v1296 = vpop.trf.xlu0
    %v1297 = vpop.trf.xlu0
    %v1298 = vpop.trf.xlu0
    %v1299 = vpop.trf.xlu0
    %v1300 = vpop.trf.xlu0
    %v1301 = vpop.trf.xlu0
    %v1302 = vpop.trf.xlu0
    %v1303 = vpop.trf.xlu0
    %v1304 = vpop.trf.xlu0
    %v1305 = vpop.trf.xlu0
    %v1306 = vpop.trf.xlu0
    %1307 = vxpose.xlu0.b32.start [1/16] %v1068, 128
    %1308 = vxpose.xlu0.b32.cont [2/16] %v1070, 128
    %1309 = vxpose.xlu0.b32.cont [3/16] %v1072, 128
    %1310 = vxpose.xlu0.b32.cont [4/16] %v1074, 128
    %1311 = vxpose.xlu0.b32.cont [5/16] %v1076, 128
    %1312 = vxpose.xlu0.b32.cont [6/16] %v1078, 128
    %1313 = vxpose.xlu0.b32.cont [7/16] %v1080, 128
    %1314 = vxpose.xlu0.b32.cont [8/16] %v1082, 128
    %1315 = vxpose.xlu0.b32.cont [9/16] 0.0, 128
    %1316 = vxpose.xlu0.b32.cont [10/16] 0.0, 128
    %1317 = vxpose.xlu0.b32.cont [11/16] 0.0, 128
    %1318 = vxpose.xlu0.b32.cont [12/16] 0.0, 128
    %1319 = vxpose.xlu0.b32.cont [13/16] 0.0, 128
    %1320 = vxpose.xlu0.b32.cont [14/16] 0.0, 128
    %1321 = vxpose.xlu0.b32.cont [15/16] 0.0, 128
    %1322 = vxpose.xlu0.b32.end [16/16] 0.0, 128
    %v1323 = vpop.trf.xlu0
    %v1324 = vpop.trf.xlu0
    %v1325 = vpop.trf.xlu0
    %v1326 = vpop.trf.xlu0
    %v1327 = vpop.trf.xlu0
    %v1328 = vpop.trf.xlu0
    %v1329 = vpop.trf.xlu0
    %v1330 = vpop.trf.xlu0
    %v1331 = vpop.trf.xlu0
    %v1332 = vpop.trf.xlu0
    %v1333 = vpop.trf.xlu0
    %v1334 = vpop.trf.xlu0
    %v1335 = vpop.trf.xlu0
    %v1336 = vpop.trf.xlu0
    %v1337 = vpop.trf.xlu0
    %v1338 = vpop.trf.xlu0
    %1339 = vxpose.xlu0.b32.start [1/16] %v1084, 128
    %1340 = vxpose.xlu0.b32.cont [2/16] %v1086, 128
    %1341 = vxpose.xlu0.b32.cont [3/16] %v1088, 128
    %1342 = vxpose.xlu0.b32.cont [4/16] %v1090, 128
    %1343 = vxpose.xlu0.b32.cont [5/16] %v1092, 128
    %1344 = vxpose.xlu0.b32.cont [6/16] %v1094, 128
    %1345 = vxpose.xlu0.b32.cont [7/16] %v1096, 128
    %1346 = vxpose.xlu0.b32.cont [8/16] %v1098, 128
    %1347 = vxpose.xlu0.b32.cont [9/16] 0.0, 128
    %1348 = vxpose.xlu0.b32.cont [10/16] 0.0, 128
    %1349 = vxpose.xlu0.b32.cont [11/16] 0.0, 128
    %1350 = vxpose.xlu0.b32.cont [12/16] 0.0, 128
    %1351 = vxpose.xlu0.b32.cont [13/16] 0.0, 128
    %1352 = vxpose.xlu0.b32.cont [14/16] 0.0, 128
    %1353 = vxpose.xlu0.b32.cont [15/16] 0.0, 128
    %1354 = vxpose.xlu0.b32.end [16/16] 0.0, 128
    %v1355 = vpop.trf.xlu0
    %v1356 = vpop.trf.xlu0
    %v1357 = vpop.trf.xlu0
    %v1358 = vpop.trf.xlu0
    %v1359 = vpop.trf.xlu0
    %v1360 = vpop.trf.xlu0
    %v1361 = vpop.trf.xlu0
    %v1362 = vpop.trf.xlu0
    %v1363 = vpop.trf.xlu0
    %v1364 = vpop.trf.xlu0
    %v1365 = vpop.trf.xlu0
    %v1366 = vpop.trf.xlu0
    %v1367 = vpop.trf.xlu0
    %v1368 = vpop.trf.xlu0
    %v1369 = vpop.trf.xlu0
    %v1370 = vpop.trf.xlu0
    %1371 = vxpose.xlu0.b32.start [1/16] %v1100, 128
    %1372 = vxpose.xlu0.b32.cont [2/16] %v1102, 128
    %1373 = vxpose.xlu0.b32.cont [3/16] %v1104, 128
    %1374 = vxpose.xlu0.b32.cont [4/16] %v1106, 128
    %1375 = vxpose.xlu0.b32.cont [5/16] %v1108, 128
    %1376 = vxpose.xlu0.b32.cont [6/16] %v1110, 128
    %1377 = vxpose.xlu0.b32.cont [7/16] %v1112, 128
    %1378 = vxpose.xlu0.b32.cont [8/16] %v1114, 128
    %1379 = vxpose.xlu0.b32.cont [9/16] 0.0, 128
    %1380 = vxpose.xlu0.b32.cont [10/16] 0.0, 128
    %1381 = vxpose.xlu0.b32.cont [11/16] 0.0, 128
    %1382 = vxpose.xlu0.b32.cont [12/16] 0.0, 128
    %1383 = vxpose.xlu0.b32.cont [13/16] 0.0, 128
    %1384 = vxpose.xlu0.b32.cont [14/16] 0.0, 128
    %1385 = vxpose.xlu0.b32.cont [15/16] 0.0, 128
    %1386 = vxpose.xlu0.b32.end [16/16] 0.0, 128
    %v1387 = vpop.trf.xlu0
    %v1388 = vpop.trf.xlu0
    %v1389 = vpop.trf.xlu0
    %v1390 = vpop.trf.xlu0
    %v1391 = vpop.trf.xlu0
    %v1392 = vpop.trf.xlu0
    %v1393 = vpop.trf.xlu0
    %v1394 = vpop.trf.xlu0
    %v1395 = vpop.trf.xlu0
    %v1396 = vpop.trf.xlu0
    %v1397 = vpop.trf.xlu0
    %v1398 = vpop.trf.xlu0
    %v1399 = vpop.trf.xlu0
    %v1400 = vpop.trf.xlu0
    %v1401 = vpop.trf.xlu0
    %v1402 = vpop.trf.xlu0
    %1403 = vxpose.xlu0.b32.start [1/16] %v1116, 128
    %1404 = vxpose.xlu0.b32.cont [2/16] %v1118, 128
    %1405 = vxpose.xlu0.b32.cont [3/16] %v1120, 128
    %1406 = vxpose.xlu0.b32.cont [4/16] %v1122, 128
    %1407 = vxpose.xlu0.b32.cont [5/16] %v1124, 128
    %1408 = vxpose.xlu0.b32.cont [6/16] %v1126, 128
    %1409 = vxpose.xlu0.b32.cont [7/16] %v1128, 128
    %1410 = vxpose.xlu0.b32.cont [8/16] %v1130, 128
    %1411 = vxpose.xlu0.b32.cont [9/16] 0.0, 128
    %1412 = vxpose.xlu0.b32.cont [10/16] 0.0, 128
    %1413 = vxpose.xlu0.b32.cont [11/16] 0.0, 128
    %1414 = vxpose.xlu0.b32.cont [12/16] 0.0, 128
    %1415 = vxpose.xlu0.b32.cont [13/16] 0.0, 128
    %1416 = vxpose.xlu0.b32.cont [14/16] 0.0, 128
    %1417 = vxpose.xlu0.b32.cont [15/16] 0.0, 128
    %1418 = vxpose.xlu0.b32.end [16/16] 0.0, 128
    %v1419 = vpop.trf.xlu0
    %v1420 = vpop.trf.xlu0
    %v1421 = vpop.trf.xlu0
    %v1422 = vpop.trf.xlu0
    %v1423 = vpop.trf.xlu0
    %v1424 = vpop.trf.xlu0
    %v1425 = vpop.trf.xlu0
    %v1426 = vpop.trf.xlu0
    %v1427 = vpop.trf.xlu0
    %v1428 = vpop.trf.xlu0
    %v1429 = vpop.trf.xlu0
    %v1430 = vpop.trf.xlu0
    %v1431 = vpop.trf.xlu0
    %v1432 = vpop.trf.xlu0
    %v1433 = vpop.trf.xlu0
    %v1434 = vpop.trf.xlu0
    %1435 = vxpose.xlu0.b32.start [1/16] %v1132, 128
    %1436 = vxpose.xlu0.b32.cont [2/16] %v1134, 128
    %1437 = vxpose.xlu0.b32.cont [3/16] %v1136, 128
    %1438 = vxpose.xlu0.b32.cont [4/16] %v1138, 128
    %1439 = vxpose.xlu0.b32.cont [5/16] %v1140, 128
    %1440 = vxpose.xlu0.b32.cont [6/16] %v1142, 128
    %1441 = vxpose.xlu0.b32.cont [7/16] %v1144, 128
    %1442 = vxpose.xlu0.b32.cont [8/16] %v1146, 128
    %1443 = vxpose.xlu0.b32.cont [9/16] 0.0, 128
    %1444 = vxpose.xlu0.b32.cont [10/16] 0.0, 128
    %1445 = vxpose.xlu0.b32.cont [11/16] 0.0, 128
    %1446 = vxpose.xlu0.b32.cont [12/16] 0.0, 128
    %1447 = vxpose.xlu0.b32.cont [13/16] 0.0, 128
    %1448 = vxpose.xlu0.b32.cont [14/16] 0.0, 128
    %1449 = vxpose.xlu0.b32.cont [15/16] 0.0, 128
    %1450 = vxpose.xlu0.b32.end [16/16] 0.0, 128
    %v1451 = vpop.trf.xlu0
    %v1452 = vpop.trf.xlu0
    %v1453 = vpop.trf.xlu0
    %v1454 = vpop.trf.xlu0
    %v1455 = vpop.trf.xlu0
    %v1456 = vpop.trf.xlu0
    %v1457 = vpop.trf.xlu0
    %v1458 = vpop.trf.xlu0
    %v1459 = vpop.trf.xlu0
    %v1460 = vpop.trf.xlu0
    %v1461 = vpop.trf.xlu0
    %v1462 = vpop.trf.xlu0
    %v1463 = vpop.trf.xlu0
    %v1464 = vpop.trf.xlu0
    %v1465 = vpop.trf.xlu0
    %v1466 = vpop.trf.xlu0
    %1531 = vrot.lane.b32.xlu0 %v1227, 64
    %v1532 = vpop.permute.xlu0 %1531
    %1533 = vrot.lane.b32.xlu0 %v1228, 64
    %v1534 = vpop.permute.xlu0 %1533
    %1535 = vrot.lane.b32.xlu0 %v1229, 64
    %v1536 = vpop.permute.xlu0 %1535
    %1537 = vrot.lane.b32.xlu0 %v1230, 64
    %v1538 = vpop.permute.xlu0 %1537
    %1539 = vrot.lane.b32.xlu0 %v1231, 64
    %v1540 = vpop.permute.xlu0 %1539
    %1541 = vrot.lane.b32.xlu0 %v1232, 64
    %v1542 = vpop.permute.xlu0 %1541
    %1543 = vrot.lane.b32.xlu0 %v1233, 64
    %v1544 = vpop.permute.xlu0 %1543
    %1545 = vrot.lane.b32.xlu0 %v1234, 64
    %v1546 = vpop.permute.xlu0 %1545
    %1547 = vrot.lane.b32.xlu0 %v1259, 64
    %v1548 = vpop.permute.xlu0 %1547
    %1549 = vrot.lane.b32.xlu0 %v1260, 64
    %v1550 = vpop.permute.xlu0 %1549
    %1551 = vrot.lane.b32.xlu0 %v1261, 64
    %v1552 = vpop.permute.xlu0 %1551
    %1553 = vrot.lane.b32.xlu0 %v1262, 64
    %v1554 = vpop.permute.xlu0 %1553
    %1555 = vrot.lane.b32.xlu0 %v1263, 64
    %v1556 = vpop.permute.xlu0 %1555
    %1557 = vrot.lane.b32.xlu0 %v1264, 64
    %v1558 = vpop.permute.xlu0 %1557
    %1559 = vrot.lane.b32.xlu0 %v1265, 64
    %v1560 = vpop.permute.xlu0 %1559
    %1561 = vrot.lane.b32.xlu0 %v1266, 64
    %v1562 = vpop.permute.xlu0 %1561
    %1563 = vrot.lane.b32.xlu0 %v1291, 64
    %v1564 = vpop.permute.xlu0 %1563
    %1565 = vrot.lane.b32.xlu0 %v1292, 64
    %v1566 = vpop.permute.xlu0 %1565
    %1567 = vrot.lane.b32.xlu0 %v1293, 64
    %v1568 = vpop.permute.xlu0 %1567
    %1569 = vrot.lane.b32.xlu0 %v1294, 64
    %v1570 = vpop.permute.xlu0 %1569
    %1571 = vrot.lane.b32.xlu0 %v1295, 64
    %v1572 = vpop.permute.xlu0 %1571
    %1573 = vrot.lane.b32.xlu0 %v1296, 64
    %v1574 = vpop.permute.xlu0 %1573
    %1575 = vrot.lane.b32.xlu0 %v1297, 64
    %v1576 = vpop.permute.xlu0 %1575
    %1577 = vrot.lane.b32.xlu0 %v1298, 64
    %v1578 = vpop.permute.xlu0 %1577
    %1579 = vrot.lane.b32.xlu0 %v1323, 64
    %v1580 = vpop.permute.xlu0 %1579
    %1581 = vrot.lane.b32.xlu0 %v1324, 64
    %v1582 = vpop.permute.xlu0 %1581
    %1583 = vrot.lane.b32.xlu0 %v1325, 64
    %v1584 = vpop.permute.xlu0 %1583
    %1585 = vrot.lane.b32.xlu0 %v1326, 64
    %v1586 = vpop.permute.xlu0 %1585
    %1587 = vrot.lane.b32.xlu0 %v1327, 64
    %v1588 = vpop.permute.xlu0 %1587
    %1589 = vrot.lane.b32.xlu0 %v1328, 64
    %v1590 = vpop.permute.xlu0 %1589
    %1591 = vrot.lane.b32.xlu0 %v1329, 64
    %v1592 = vpop.permute.xlu0 %1591
    %1593 = vrot.lane.b32.xlu0 %v1330, 64
    %v1594 = vpop.permute.xlu0 %1593
    %1595 = vrot.lane.b32.xlu0 %v1355, 64
    %v1596 = vpop.permute.xlu0 %1595
    %1597 = vrot.lane.b32.xlu0 %v1356, 64
    %v1598 = vpop.permute.xlu0 %1597
    %1599 = vrot.lane.b32.xlu0 %v1357, 64
    %v1600 = vpop.permute.xlu0 %1599
    %1601 = vrot.lane.b32.xlu0 %v1358, 64
    %v1602 = vpop.permute.xlu0 %1601
    %1603 = vrot.lane.b32.xlu0 %v1359, 64
    %v1604 = vpop.permute.xlu0 %1603
    %1605 = vrot.lane.b32.xlu0 %v1360, 64
    %v1606 = vpop.permute.xlu0 %1605
    %1607 = vrot.lane.b32.xlu0 %v1361, 64
    %v1608 = vpop.permute.xlu0 %1607
    %1609 = vrot.lane.b32.xlu0 %v1362, 64
    %v1610 = vpop.permute.xlu0 %1609
    %1611 = vrot.lane.b32.xlu0 %v1387, 64
    %v1612 = vpop.permute.xlu0 %1611
    %1613 = vrot.lane.b32.xlu0 %v1388, 64
    %v1614 = vpop.permute.xlu0 %1613
    %1615 = vrot.lane.b32.xlu0 %v1389, 64
    %v1616 = vpop.permute.xlu0 %1615
    %1617 = vrot.lane.b32.xlu0 %v1390, 64
    %v1618 = vpop.permute.xlu0 %1617
    %1619 = vrot.lane.b32.xlu0 %v1391, 64
    %v1620 = vpop.permute.xlu0 %1619
    %1621 = vrot.lane.b32.xlu0 %v1392, 64
    %v1622 = vpop.permute.xlu0 %1621
    %1623 = vrot.lane.b32.xlu0 %v1393, 64
    %v1624 = vpop.permute.xlu0 %1623
    %1625 = vrot.lane.b32.xlu0 %v1394, 64
    %v1626 = vpop.permute.xlu0 %1625
    %1627 = vrot.lane.b32.xlu0 %v1419, 64
    %v1628 = vpop.permute.xlu0 %1627
    %1629 = vrot.lane.b32.xlu0 %v1420, 64
    %v1630 = vpop.permute.xlu0 %1629
    %1631 = vrot.lane.b32.xlu0 %v1421, 64
    %v1632 = vpop.permute.xlu0 %1631
    %1633 = vrot.lane.b32.xlu0 %v1422, 64
    %v1634 = vpop.permute.xlu0 %1633
    %1635 = vrot.lane.b32.xlu0 %v1423, 64
    %v1636 = vpop.permute.xlu0 %1635
    %1637 = vrot.lane.b32.xlu0 %v1424, 64
    %v1638 = vpop.permute.xlu0 %1637
    %1639 = vrot.lane.b32.xlu0 %v1425, 64
    %v1640 = vpop.permute.xlu0 %1639
    %1641 = vrot.lane.b32.xlu0 %v1426, 64
    %v1642 = vpop.permute.xlu0 %1641
    %1643 = vrot.lane.b32.xlu0 %v1451, 64
    %v1644 = vpop.permute.xlu0 %1643
    %1645 = vrot.lane.b32.xlu0 %v1452, 64
    %v1646 = vpop.permute.xlu0 %1645
    %1647 = vrot.lane.b32.xlu0 %v1453, 64
    %v1648 = vpop.permute.xlu0 %1647
    %1649 = vrot.lane.b32.xlu0 %v1454, 64
    %v1650 = vpop.permute.xlu0 %1649
    %1651 = vrot.lane.b32.xlu0 %v1455, 64
    %v1652 = vpop.permute.xlu0 %1651
    %1653 = vrot.lane.b32.xlu0 %v1456, 64
    %v1654 = vpop.permute.xlu0 %1653
    %1655 = vrot.lane.b32.xlu0 %v1457, 64
    %v1656 = vpop.permute.xlu0 %1655
    %1657 = vrot.lane.b32.xlu0 %v1458, 64
    %v1658 = vpop.permute.xlu0 %1657
    %v1723 = vsel %vm313, %v715, %v1532
    %v1724 = vsel %vm313, %v716, %v1534
    %v1725 = vsel %vm313, %v717, %v1536
    %v1726 = vsel %vm313, %v718, %v1538
    %v1727 = vsel %vm313, %v719, %v1540
    %v1728 = vsel %vm313, %v720, %v1542
    %v1729 = vsel %vm313, %v721, %v1544
    %v1730 = vsel %vm313, %v722, %v1546
    %v1731 = vsel %vm313, %v747, %v1548
    %v1732 = vsel %vm313, %v748, %v1550
    %v1733 = vsel %vm313, %v749, %v1552
    %v1734 = vsel %vm313, %v750, %v1554
    %v1735 = vsel %vm313, %v751, %v1556
    %v1736 = vsel %vm313, %v752, %v1558
    %v1737 = vsel %vm313, %v753, %v1560
    %v1738 = vsel %vm313, %v754, %v1562
    %v1739 = vsel %vm313, %v779, %v1564
    %v1740 = vsel %vm313, %v780, %v1566
    %v1741 = vsel %vm313, %v781, %v1568
    %v1742 = vsel %vm313, %v782, %v1570
    %v1743 = vsel %vm313, %v783, %v1572
    %v1744 = vsel %vm313, %v784, %v1574
    %v1745 = vsel %vm313, %v785, %v1576
    %v1746 = vsel %vm313, %v786, %v1578
    %v1747 = vsel %vm313, %v811, %v1580
    %v1748 = vsel %vm313, %v812, %v1582
    %v1749 = vsel %vm313, %v813, %v1584
    %v1750 = vsel %vm313, %v814, %v1586
    %v1751 = vsel %vm313, %v815, %v1588
    %v1752 = vsel %vm313, %v816, %v1590
    %v1753 = vsel %vm313, %v817, %v1592
    %v1754 = vsel %vm313, %v818, %v1594
    %v1755 = vsel %vm313, %v843, %v1596
    %v1756 = vsel %vm313, %v844, %v1598
    %v1757 = vsel %vm313, %v845, %v1600
    %v1758 = vsel %vm313, %v846, %v1602
    %v1759 = vsel %vm313, %v847, %v1604
    %v1760 = vsel %vm313, %v848, %v1606
    %v1761 = vsel %vm313, %v849, %v1608
    %v1762 = vsel %vm313, %v850, %v1610
    %v1763 = vsel %vm313, %v875, %v1612
    %v1764 = vsel %vm313, %v876, %v1614
    %v1765 = vsel %vm313, %v877, %v1616
    %v1766 = vsel %vm313, %v878, %v1618
    %v1767 = vsel %vm313, %v879, %v1620
    %v1768 = vsel %vm313, %v880, %v1622
    %v1769 = vsel %vm313, %v881, %v1624
    %v1770 = vsel %vm313, %v882, %v1626
    %v1771 = vsel %vm313, %v907, %v1628
    %v1772 = vsel %vm313, %v908, %v1630
    %v1773 = vsel %vm313, %v909, %v1632
    %v1774 = vsel %vm313, %v910, %v1634
    %v1775 = vsel %vm313, %v911, %v1636
    %v1776 = vsel %vm313, %v912, %v1638
    %v1777 = vsel %vm313, %v913, %v1640
    %v1778 = vsel %vm313, %v914, %v1642
    %v1779 = vsel %vm313, %v939, %v1644
    %v1780 = vsel %vm313, %v940, %v1646
    %v1781 = vsel %vm313, %v941, %v1648
    %v1782 = vsel %vm313, %v942, %v1650
    %v1783 = vsel %vm313, %v943, %v1652
    %v1784 = vsel %vm313, %v944, %v1654
    %v1785 = vsel %vm313, %v945, %v1656
    %v1786 = vsel %vm313, %v946, %v1658
    %v1787 = vpack.c.bf16 %v1724, %v1723
    %v1788 = vpack.c.bf16 %v1726, %v1725
    %v1789 = vpack.c.bf16 %v1728, %v1727
    %v1790 = vpack.c.bf16 %v1730, %v1729
    %v1791 = vpack.c.bf16 %v1732, %v1731
    %v1792 = vpack.c.bf16 %v1734, %v1733
    %v1793 = vpack.c.bf16 %v1736, %v1735
    %v1794 = vpack.c.bf16 %v1738, %v1737
    %v1795 = vpack.c.bf16 %v1740, %v1739
    %v1796 = vpack.c.bf16 %v1742, %v1741
    %v1797 = vpack.c.bf16 %v1744, %v1743
    %v1798 = vpack.c.bf16 %v1746, %v1745
    %v1799 = vpack.c.bf16 %v1748, %v1747
    %v1800 = vpack.c.bf16 %v1750, %v1749
    %v1801 = vpack.c.bf16 %v1752, %v1751
    %v1802 = vpack.c.bf16 %v1754, %v1753
    %v1803 = vpack.c.bf16 %v1756, %v1755
    %v1804 = vpack.c.bf16 %v1758, %v1757
    %v1805 = vpack.c.bf16 %v1760, %v1759
    %v1806 = vpack.c.bf16 %v1762, %v1761
    %v1807 = vpack.c.bf16 %v1764, %v1763
    %v1808 = vpack.c.bf16 %v1766, %v1765
    %v1809 = vpack.c.bf16 %v1768, %v1767
    %v1810 = vpack.c.bf16 %v1770, %v1769
    %v1811 = vpack.c.bf16 %v1772, %v1771
    %v1812 = vpack.c.bf16 %v1774, %v1773
    %v1813 = vpack.c.bf16 %v1776, %v1775
    %v1814 = vpack.c.bf16 %v1778, %v1777
    %v1815 = vpack.c.bf16 %v1780, %v1779
    %v1816 = vpack.c.bf16 %v1782, %v1781
    %v1817 = vpack.c.bf16 %v1784, %v1783
    %v1818 = vpack.c.bf16 %v1786, %v1785
    %v1819 = vld [vmem:[#allocation7] sm:$0xf]
    %v1820 = vld [vmem:[#allocation7 + $0x4] sm:$0xf]
    %v1821 = vld [vmem:[#allocation7 + $0x8] sm:$0xf]
    %v1822 = vld [vmem:[#allocation7 + $0xc] sm:$0xf]
    %v1823 = vld [vmem:[#allocation7 + $0x10] sm:$0xf]
    %v1824 = vld [vmem:[#allocation7 + $0x14] sm:$0xf]
    %v1825 = vld [vmem:[#allocation7 + $0x18] sm:$0xf]
    %v1826 = vld [vmem:[#allocation7 + $0x1c] sm:$0xf]
    %v1827 = vld [vmem:[#allocation7 + $0x20] sm:$0xf]
    %v1828 = vld [vmem:[#allocation7 + $0x24] sm:$0xf]
    %v1829 = vld [vmem:[#allocation7 + $0x28] sm:$0xf]
    %v1830 = vld [vmem:[#allocation7 + $0x2c] sm:$0xf]
    %v1831 = vld [vmem:[#allocation7 + $0x30] sm:$0xf]
    %v1832 = vld [vmem:[#allocation7 + $0x34] sm:$0xf]
    %v1833 = vld [vmem:[#allocation7 + $0x38] sm:$0xf]
    %v1834 = vld [vmem:[#allocation7 + $0x3c] sm:$0xf]
    %v1851 = vunpack.c.l.b16 %v1819
    %v1852 = vunpack.c.l.b16 %v1820
    %v1853 = vunpack.c.l.b16 %v1821
    %v1854 = vunpack.c.l.b16 %v1822
    %v1855 = vunpack.c.l.b16 %v1823
    %v1856 = vunpack.c.l.b16 %v1824
    %v1857 = vunpack.c.l.b16 %v1825
    %v1858 = vunpack.c.l.b16 %v1826
    %v1859 = vunpack.c.l.b16 %v1827
    %v1860 = vunpack.c.l.b16 %v1828
    %v1861 = vunpack.c.l.b16 %v1829
    %v1862 = vunpack.c.l.b16 %v1830
    %v1863 = vunpack.c.l.b16 %v1831
    %v1864 = vunpack.c.l.b16 %v1832
    %v1865 = vunpack.c.l.b16 %v1833
    %v1866 = vunpack.c.l.b16 %v1834
    %v1867 = vpack.c.b16 %v1852, %v1851
    %v1868 = vpack.c.b16 %v1854, %v1853
    %v1869 = vpack.c.b16 %v1856, %v1855
    %v1870 = vpack.c.b16 %v1858, %v1857
    %v1871 = vpack.c.b16 %v1860, %v1859
    %v1872 = vpack.c.b16 %v1862, %v1861
    %v1873 = vpack.c.b16 %v1864, %v1863
    %v1874 = vpack.c.b16 %v1866, %v1865
    %1883 = vmatprep.subr.bf16.mxu0 0
    %1884 = vmatpush1.bf16.msra.mxu0 %v1867
    %1885 = vmatprep.subr.bf16.mxu0 0
    %1886 = vmatpush1.bf16.msra.mxu0 %v1868
    %1887 = vmatprep.subr.bf16.mxu0 0
    %1888 = vmatpush1.bf16.msra.mxu0 %v1869
    %1889 = vmatprep.subr.bf16.mxu0 0
    %1890 = vmatpush1.bf16.msra.mxu0 %v1870
    %1891 = vmatprep.subr.bf16.mxu0 0
    %1892 = vmatpush1.bf16.msra.mxu0 %v1871
    %1893 = vmatprep.subr.bf16.mxu0 0
    %1894 = vmatpush1.bf16.msra.mxu0 %v1872
    %1895 = vmatprep.subr.bf16.mxu0 0
    %1896 = vmatpush1.bf16.msra.mxu0 %v1873
    %1897 = vmatprep.subr.bf16.mxu0 0
    %1898 = vmatpush1.bf16.msra.mxu0 %v1874
    %1899 = vmatprep.subr.bf16.mxu0 0
    %1900 = vmatpush1.bf16.msra.mxu0 0
    %1901 = vmatprep.subr.bf16.mxu0 0
    %1902 = vmatpush1.bf16.msra.mxu0 0
    %1903 = vmatprep.subr.bf16.mxu0 0
    %1904 = vmatpush1.bf16.msra.mxu0 0
    %1905 = vmatprep.subr.bf16.mxu0 0
    %1906 = vmatpush1.bf16.msra.mxu0 0
    %1907 = vmatprep.subr.bf16.mxu0 0
    %1908 = vmatpush1.bf16.msra.mxu0 0
    %1909 = vmatprep.subr.bf16.mxu0 0
    %1910 = vmatpush1.bf16.msra.mxu0 0
    %1911 = vmatprep.subr.bf16.mxu0 0
    %1912 = vmatpush1.bf16.msra.mxu0 0
    %1913 = vmatprep.subr.bf16.mxu0 0
    %1914 = vmatpush1.bf16.msra.mxu0 0
    %1915 = vmatprep.mubr.bf16.mxu0 0
    %1916 = vmatmul.mubr.bf16.gmra.mrb[0].mxu0 %v1787
    %v1917 = vpop.f32.mrb[0].mxu0
    %v1918 = vadd.f32 0.0, %v1917
    %v1919 = vpop.f32.mrb[0].mxu0
    %v1920 = vpop.f32.mrb[0].mxu0
    %v1921 = vadd.f32 0.0, %v1920
    %v1922 = vpop.f32.mrb[0].mxu0
    %1923 = vmatprep.mubr.bf16.mxu0 0
    %1924 = vmatmul.mubr.bf16.gmra.mrb[0].mxu0 %v1788
    %v1925 = vpop.f32.mrb[0].mxu0
    %v1926 = vadd.f32 0.0, %v1925
    %v1927 = vpop.f32.mrb[0].mxu0
    %v1928 = vpop.f32.mrb[0].mxu0
    %v1929 = vadd.f32 0.0, %v1928
    %v1930 = vpop.f32.mrb[0].mxu0
    %1931 = vmatprep.mubr.bf16.mxu0 0
    %1932 = vmatmul.mubr.bf16.gmra.mrb[0].mxu0 %v1789
    %v1933 = vpop.f32.mrb[0].mxu0
    %v1934 = vadd.f32 0.0, %v1933
    %v1935 = vpop.f32.mrb[0].mxu0
    %v1936 = vpop.f32.mrb[0].mxu0
    %v1937 = vadd.f32 0.0, %v1936
    %v1938 = vpop.f32.mrb[0].mxu0
    %1939 = vmatprep.mubr.bf16.mxu0 0
    %1940 = vmatmul.mubr.bf16.gmra.mrb[0].mxu0 %v1790
    %v1941 = vpop.f32.mrb[0].mxu0
    %v1942 = vadd.f32 0.0, %v1941
    %v1943 = vpop.f32.mrb[0].mxu0
    %v1944 = vpop.f32.mrb[0].mxu0
    %v1945 = vadd.f32 0.0, %v1944
    %v1946 = vpop.f32.mrb[0].mxu0
    %1947 = vmatprep.mubr.bf16.mxu0 0
    %1948 = vmatmul.mubr.bf16.gmra.mrb[0].mxu0 %v1791
    %v1949 = vpop.f32.mrb[0].mxu0
    %v1950 = vadd.f32 0.0, %v1949
    %v1951 = vpop.f32.mrb[0].mxu0
    %v1952 = vpop.f32.mrb[0].mxu0
    %v1953 = vadd.f32 0.0, %v1952
    %v1954 = vpop.f32.mrb[0].mxu0
    %1955 = vmatprep.mubr.bf16.mxu0 0
    %1956 = vmatmul.mubr.bf16.gmra.mrb[0].mxu0 %v1792
    %v1957 = vpop.f32.mrb[0].mxu0
    %v1958 = vadd.f32 0.0, %v1957
    %v1959 = vpop.f32.mrb[0].mxu0
    %v1960 = vpop.f32.mrb[0].mxu0
    %v1961 = vadd.f32 0.0, %v1960
    %v1962 = vpop.f32.mrb[0].mxu0
    %1963 = vmatprep.mubr.bf16.mxu0 0
    %1964 = vmatmul.mubr.bf16.gmra.mrb[0].mxu0 %v1793
    %v1965 = vpop.f32.mrb[0].mxu0
    %v1966 = vadd.f32 0.0, %v1965
    %v1967 = vpop.f32.mrb[0].mxu0
    %v1968 = vpop.f32.mrb[0].mxu0
    %v1969 = vadd.f32 0.0, %v1968
    %v1970 = vpop.f32.mrb[0].mxu0
    %1971 = vmatprep.mubr.bf16.mxu0 0
    %1972 = vmatmul.mubr.bf16.gmra.mrb[0].mxu0 %v1794
    %v1973 = vpop.f32.mrb[0].mxu0
    %v1974 = vadd.f32 0.0, %v1973
    %v1975 = vpop.f32.mrb[0].mxu0
    %v1976 = vpop.f32.mrb[0].mxu0
    %v1977 = vadd.f32 0.0, %v1976
    %v1978 = vpop.f32.mrb[0].mxu0
    %1979 = vmatprep.mubr.bf16.mxu0 0
    %1980 = vmatmul.mubr.bf16.gmra.mrb[0].mxu0 %v1795
    %v1981 = vpop.f32.mrb[0].mxu0
    %v1982 = vadd.f32 0.0, %v1981
    %v1983 = vpop.f32.mrb[0].mxu0
    %v1984 = vpop.f32.mrb[0].mxu0
    %v1985 = vadd.f32 0.0, %v1984
    %v1986 = vpop.f32.mrb[0].mxu0
    %1987 = vmatprep.mubr.bf16.mxu0 0
    %1988 = vmatmul.mubr.bf16.gmra.mrb[0].mxu0 %v1796
    %v1989 = vpop.f32.mrb[0].mxu0
    %v1990 = vadd.f32 0.0, %v1989
    %v1991 = vpop.f32.mrb[0].mxu0
    %v1992 = vpop.f32.mrb[0].mxu0
    %v1993 = vadd.f32 0.0, %v1992
    %v1994 = vpop.f32.mrb[0].mxu0
    %1995 = vmatprep.mubr.bf16.mxu0 0
    %1996 = vmatmul.mubr.bf16.gmra.mrb[0].mxu0 %v1797
    %v1997 = vpop.f32.mrb[0].mxu0
    %v1998 = vadd.f32 0.0, %v1997
    %v1999 = vpop.f32.mrb[0].mxu0
    %v2000 = vpop.f32.mrb[0].mxu0
    %v2001 = vadd.f32 0.0, %v2000
    %v2002 = vpop.f32.mrb[0].mxu0
    %2003 = vmatprep.mubr.bf16.mxu0 0
    %2004 = vmatmul.mubr.bf16.gmra.mrb[0].mxu0 %v1798
    %v2005 = vpop.f32.mrb[0].mxu0
    %v2006 = vadd.f32 0.0, %v2005
    %v2007 = vpop.f32.mrb[0].mxu0
    %v2008 = vpop.f32.mrb[0].mxu0
    %v2009 = vadd.f32 0.0, %v2008
    %v2010 = vpop.f32.mrb[0].mxu0
    %2011 = vmatprep.mubr.bf16.mxu0 0
    %2012 = vmatmul.mubr.bf16.gmra.mrb[0].mxu0 %v1799
    %v2013 = vpop.f32.mrb[0].mxu0
    %v2014 = vadd.f32 0.0, %v2013
    %v2015 = vpop.f32.mrb[0].mxu0
    %v2016 = vpop.f32.mrb[0].mxu0
    %v2017 = vadd.f32 0.0, %v2016
    %v2018 = vpop.f32.mrb[0].mxu0
    %2019 = vmatprep.mubr.bf16.mxu0 0
    %2020 = vmatmul.mubr.bf16.gmra.mrb[0].mxu0 %v1800
    %v2021 = vpop.f32.mrb[0].mxu0
    %v2022 = vadd.f32 0.0, %v2021
    %v2023 = vpop.f32.mrb[0].mxu0
    %v2024 = vpop.f32.mrb[0].mxu0
    %v2025 = vadd.f32 0.0, %v2024
    %v2026 = vpop.f32.mrb[0].mxu0
    %2027 = vmatprep.mubr.bf16.mxu0 0
    %2028 = vmatmul.mubr.bf16.gmra.mrb[0].mxu0 %v1801
    %v2029 = vpop.f32.mrb[0].mxu0
    %v2030 = vadd.f32 0.0, %v2029
    %v2031 = vpop.f32.mrb[0].mxu0
    %v2032 = vpop.f32.mrb[0].mxu0
    %v2033 = vadd.f32 0.0, %v2032
    %v2034 = vpop.f32.mrb[0].mxu0
    %2035 = vmatprep.mubr.bf16.mxu0 0
    %2036 = vmatmul.mubr.bf16.gmra.mrb[0].mxu0 %v1802
    %v2037 = vpop.f32.mrb[0].mxu0
    %v2038 = vadd.f32 0.0, %v2037
    %v2039 = vpop.f32.mrb[0].mxu0
    %v2040 = vpop.f32.mrb[0].mxu0
    %v2041 = vadd.f32 0.0, %v2040
    %v2042 = vpop.f32.mrb[0].mxu0
    %2043 = vmatprep.mubr.bf16.mxu0 0
    %2044 = vmatmul.mubr.bf16.gmra.mrb[0].mxu0 %v1803
    %v2045 = vpop.f32.mrb[0].mxu0
    %v2046 = vadd.f32 0.0, %v2045
    %v2047 = vpop.f32.mrb[0].mxu0
    %v2048 = vpop.f32.mrb[0].mxu0
    %v2049 = vadd.f32 0.0, %v2048
    %v2050 = vpop.f32.mrb[0].mxu0
    %2051 = vmatprep.mubr.bf16.mxu0 0
    %2052 = vmatmul.mubr.bf16.gmra.mrb[0].mxu0 %v1804
    %v2053 = vpop.f32.mrb[0].mxu0
    %v2054 = vadd.f32 0.0, %v2053
    %v2055 = vpop.f32.mrb[0].mxu0
    %v2056 = vpop.f32.mrb[0].mxu0
    %v2057 = vadd.f32 0.0, %v2056
    %v2058 = vpop.f32.mrb[0].mxu0
    %2059 = vmatprep.mubr.bf16.mxu0 0
    %2060 = vmatmul.mubr.bf16.gmra.mrb[0].mxu0 %v1805
    %v2061 = vpop.f32.mrb[0].mxu0
    %v2062 = vadd.f32 0.0, %v2061
    %v2063 = vpop.f32.mrb[0].mxu0
    %v2064 = vpop.f32.mrb[0].mxu0
    %v2065 = vadd.f32 0.0, %v2064
    %v2066 = vpop.f32.mrb[0].mxu0
    %2067 = vmatprep.mubr.bf16.mxu0 0
    %2068 = vmatmul.mubr.bf16.gmra.mrb[0].mxu0 %v1806
    %v2069 = vpop.f32.mrb[0].mxu0
    %v2070 = vadd.f32 0.0, %v2069
    %v2071 = vpop.f32.mrb[0].mxu0
    %v2072 = vpop.f32.mrb[0].mxu0
    %v2073 = vadd.f32 0.0, %v2072
    %v2074 = vpop.f32.mrb[0].mxu0
    %2075 = vmatprep.mubr.bf16.mxu0 0
    %2076 = vmatmul.mubr.bf16.gmra.mrb[0].mxu0 %v1807
    %v2077 = vpop.f32.mrb[0].mxu0
    %v2078 = vadd.f32 0.0, %v2077
    %v2079 = vpop.f32.mrb[0].mxu0
    %v2080 = vpop.f32.mrb[0].mxu0
    %v2081 = vadd.f32 0.0, %v2080
    %v2082 = vpop.f32.mrb[0].mxu0
    %2083 = vmatprep.mubr.bf16.mxu0 0
    %2084 = vmatmul.mubr.bf16.gmra.mrb[0].mxu0 %v1808
    %v2085 = vpop.f32.mrb[0].mxu0
    %v2086 = vadd.f32 0.0, %v2085
    %v2087 = vpop.f32.mrb[0].mxu0
    %v2088 = vpop.f32.mrb[0].mxu0
    %v2089 = vadd.f32 0.0, %v2088
    %v2090 = vpop.f32.mrb[0].mxu0
    %2091 = vmatprep.mubr.bf16.mxu0 0
    %2092 = vmatmul.mubr.bf16.gmra.mrb[0].mxu0 %v1809
    %v2093 = vpop.f32.mrb[0].mxu0
    %v2094 = vadd.f32 0.0, %v2093
    %v2095 = vpop.f32.mrb[0].mxu0
    %v2096 = vpop.f32.mrb[0].mxu0
    %v2097 = vadd.f32 0.0, %v2096
    %v2098 = vpop.f32.mrb[0].mxu0
    %2099 = vmatprep.mubr.bf16.mxu0 0
    %2100 = vmatmul.mubr.bf16.gmra.mrb[0].mxu0 %v1810
    %v2101 = vpop.f32.mrb[0].mxu0
    %v2102 = vadd.f32 0.0, %v2101
    %v2103 = vpop.f32.mrb[0].mxu0
    %v2104 = vpop.f32.mrb[0].mxu0
    %v2105 = vadd.f32 0.0, %v2104
    %v2106 = vpop.f32.mrb[0].mxu0
    %2107 = vmatprep.mubr.bf16.mxu0 0
    %2108 = vmatmul.mubr.bf16.gmra.mrb[0].mxu0 %v1811
    %v2109 = vpop.f32.mrb[0].mxu0
    %v2110 = vadd.f32 0.0, %v2109
    %v2111 = vpop.f32.mrb[0].mxu0
    %v2112 = vpop.f32.mrb[0].mxu0
    %v2113 = vadd.f32 0.0, %v2112
    %v2114 = vpop.f32.mrb[0].mxu0
    %2115 = vmatprep.mubr.bf16.mxu0 0
    %2116 = vmatmul.mubr.bf16.gmra.mrb[0].mxu0 %v1812
    %v2117 = vpop.f32.mrb[0].mxu0
    %v2118 = vadd.f32 0.0, %v2117
    %v2119 = vpop.f32.mrb[0].mxu0
    %v2120 = vpop.f32.mrb[0].mxu0
    %v2121 = vadd.f32 0.0, %v2120
    %v2122 = vpop.f32.mrb[0].mxu0
    %2123 = vmatprep.mubr.bf16.mxu0 0
    %2124 = vmatmul.mubr.bf16.gmra.mrb[0].mxu0 %v1813
    %v2125 = vpop.f32.mrb[0].mxu0
    %v2126 = vadd.f32 0.0, %v2125
    %v2127 = vpop.f32.mrb[0].mxu0
    %v2128 = vpop.f32.mrb[0].mxu0
    %v2129 = vadd.f32 0.0, %v2128
    %v2130 = vpop.f32.mrb[0].mxu0
    %2131 = vmatprep.mubr.bf16.mxu0 0
    %2132 = vmatmul.mubr.bf16.gmra.mrb[0].mxu0 %v1814
    %v2133 = vpop.f32.mrb[0].mxu0
    %v2134 = vadd.f32 0.0, %v2133
    %v2135 = vpop.f32.mrb[0].mxu0
    %v2136 = vpop.f32.mrb[0].mxu0
    %v2137 = vadd.f32 0.0, %v2136
    %v2138 = vpop.f32.mrb[0].mxu0
    %2139 = vmatprep.mubr.bf16.mxu0 0
    %2140 = vmatmul.mubr.bf16.gmra.mrb[0].mxu0 %v1815
    %v2141 = vpop.f32.mrb[0].mxu0
    %v2142 = vadd.f32 0.0, %v2141
    %v2143 = vpop.f32.mrb[0].mxu0
    %v2144 = vpop.f32.mrb[0].mxu0
    %v2145 = vadd.f32 0.0, %v2144
    %v2146 = vpop.f32.mrb[0].mxu0
    %2147 = vmatprep.mubr.bf16.mxu0 0
    %2148 = vmatmul.mubr.bf16.gmra.mrb[0].mxu0 %v1816
    %v2149 = vpop.f32.mrb[0].mxu0
    %v2150 = vadd.f32 0.0, %v2149
    %v2151 = vpop.f32.mrb[0].mxu0
    %v2152 = vpop.f32.mrb[0].mxu0
    %v2153 = vadd.f32 0.0, %v2152
    %v2154 = vpop.f32.mrb[0].mxu0
    %2155 = vmatprep.mubr.bf16.mxu0 0
    %2156 = vmatmul.mubr.bf16.gmra.mrb[0].mxu0 %v1817
    %v2157 = vpop.f32.mrb[0].mxu0
    %v2158 = vadd.f32 0.0, %v2157
    %v2159 = vpop.f32.mrb[0].mxu0
    %v2160 = vpop.f32.mrb[0].mxu0
    %v2161 = vadd.f32 0.0, %v2160
    %v2162 = vpop.f32.mrb[0].mxu0
    %2163 = vmatprep.mubr.bf16.mxu0 0
    %2164 = vmatmul.mubr.bf16.gmra.mrb[0].mxu0 %v1818
    %v2165 = vpop.f32.mrb[0].mxu0
    %v2166 = vadd.f32 0.0, %v2165
    %v2167 = vpop.f32.mrb[0].mxu0
    %v2168 = vpop.f32.mrb[0].mxu0
    %v2169 = vadd.f32 0.0, %v2168
    %v2170 = vpop.f32.mrb[0].mxu0
    %2171 = vdwg.mxu0
    %v2172 = vmul.f32 %v1918, %v1918
    %v2173 = vmul.f32 %v1921, %v1921
    %v2174 = vmul.f32 %v1926, %v1926
    %v2175 = vmul.f32 %v1929, %v1929
    %v2176 = vmul.f32 %v1934, %v1934
    %v2177 = vmul.f32 %v1937, %v1937
    %v2178 = vmul.f32 %v1942, %v1942
    %v2179 = vmul.f32 %v1945, %v1945
    %v2180 = vmul.f32 %v1950, %v1950
    %v2181 = vmul.f32 %v1953, %v1953
    %v2182 = vmul.f32 %v1958, %v1958
    %v2183 = vmul.f32 %v1961, %v1961
    %v2184 = vmul.f32 %v1966, %v1966
    %v2185 = vmul.f32 %v1969, %v1969
    %v2186 = vmul.f32 %v1974, %v1974
    %v2187 = vmul.f32 %v1977, %v1977
    %v2188 = vmul.f32 %v1982, %v1982
    %v2189 = vmul.f32 %v1985, %v1985
    %v2190 = vmul.f32 %v1990, %v1990
    %v2191 = vmul.f32 %v1993, %v1993
    %v2192 = vmul.f32 %v1998, %v1998
    %v2193 = vmul.f32 %v2001, %v2001
    %v2194 = vmul.f32 %v2006, %v2006
    %v2195 = vmul.f32 %v2009, %v2009
    %v2196 = vmul.f32 %v2014, %v2014
    %v2197 = vmul.f32 %v2017, %v2017
    %v2198 = vmul.f32 %v2022, %v2022
    %v2199 = vmul.f32 %v2025, %v2025
    %v2200 = vmul.f32 %v2030, %v2030
    %v2201 = vmul.f32 %v2033, %v2033
    %v2202 = vmul.f32 %v2038, %v2038
    %v2203 = vmul.f32 %v2041, %v2041
    %v2204 = vmul.f32 %v2046, %v2046
    %v2205 = vmul.f32 %v2049, %v2049
    %v2206 = vmul.f32 %v2054, %v2054
    %v2207 = vmul.f32 %v2057, %v2057
    %v2208 = vmul.f32 %v2062, %v2062
    %v2209 = vmul.f32 %v2065, %v2065
    %v2210 = vmul.f32 %v2070, %v2070
    %v2211 = vmul.f32 %v2073, %v2073
    %v2212 = vmul.f32 %v2078, %v2078
    %v2213 = vmul.f32 %v2081, %v2081
    %v2214 = vmul.f32 %v2086, %v2086
    %v2215 = vmul.f32 %v2089, %v2089
    %v2216 = vmul.f32 %v2094, %v2094
    %v2217 = vmul.f32 %v2097, %v2097
    %v2218 = vmul.f32 %v2102, %v2102
    %v2219 = vmul.f32 %v2105, %v2105
    %v2220 = vmul.f32 %v2110, %v2110
    %v2221 = vmul.f32 %v2113, %v2113
    %v2222 = vmul.f32 %v2118, %v2118
    %v2223 = vmul.f32 %v2121, %v2121
    %v2224 = vmul.f32 %v2126, %v2126
    %v2225 = vmul.f32 %v2129, %v2129
    %v2226 = vmul.f32 %v2134, %v2134
    %v2227 = vmul.f32 %v2137, %v2137
    %v2228 = vmul.f32 %v2142, %v2142
    %v2229 = vmul.f32 %v2145, %v2145
    %v2230 = vmul.f32 %v2150, %v2150
    %v2231 = vmul.f32 %v2153, %v2153
    %v2232 = vmul.f32 %v2158, %v2158
    %v2233 = vmul.f32 %v2161, %v2161
    %v2234 = vmul.f32 %v2166, %v2166
    %v2235 = vmul.f32 %v2169, %v2169
    %2300 = vrot.lane.b32.xlu0 %v2172, 64
    %v2301 = vpop.permute.xlu0 %2300
    %2302 = vrot.lane.b32.xlu0 %v2173, 64
    %v2303 = vpop.permute.xlu0 %2302
    %2304 = vrot.lane.b32.xlu0 %v2174, 64
    %v2305 = vpop.permute.xlu0 %2304
    %2306 = vrot.lane.b32.xlu0 %v2175, 64
    %v2307 = vpop.permute.xlu0 %2306
    %2308 = vrot.lane.b32.xlu0 %v2176, 64
    %v2309 = vpop.permute.xlu0 %2308
    %2310 = vrot.lane.b32.xlu0 %v2177, 64
    %v2311 = vpop.permute.xlu0 %2310
    %2312 = vrot.lane.b32.xlu0 %v2178, 64
    %v2313 = vpop.permute.xlu0 %2312
    %2314 = vrot.lane.b32.xlu0 %v2179, 64
    %v2315 = vpop.permute.xlu0 %2314
    %2316 = vrot.lane.b32.xlu0 %v2180, 64
    %v2317 = vpop.permute.xlu0 %2316
    %2318 = vrot.lane.b32.xlu0 %v2181, 64
    %v2319 = vpop.permute.xlu0 %2318
    %2320 = vrot.lane.b32.xlu0 %v2182, 64
    %v2321 = vpop.permute.xlu0 %2320
    %2322 = vrot.lane.b32.xlu0 %v2183, 64
    %v2323 = vpop.permute.xlu0 %2322
    %2324 = vrot.lane.b32.xlu0 %v2184, 64
    %v2325 = vpop.permute.xlu0 %2324
    %2326 = vrot.lane.b32.xlu0 %v2185, 64
    %v2327 = vpop.permute.xlu0 %2326
    %2328 = vrot.lane.b32.xlu0 %v2186, 64
    %v2329 = vpop.permute.xlu0 %2328
    %2330 = vrot.lane.b32.xlu0 %v2187, 64
    %v2331 = vpop.permute.xlu0 %2330
    %2332 = vrot.lane.b32.xlu0 %v2188, 64
    %v2333 = vpop.permute.xlu0 %2332
    %2334 = vrot.lane.b32.xlu0 %v2189, 64
    %v2335 = vpop.permute.xlu0 %2334
    %2336 = vrot.lane.b32.xlu0 %v2190, 64
    %v2337 = vpop.permute.xlu0 %2336
    %2338 = vrot.lane.b32.xlu0 %v2191, 64
    %v2339 = vpop.permute.xlu0 %2338
    %2340 = vrot.lane.b32.xlu0 %v2192, 64
    %v2341 = vpop.permute.xlu0 %2340
    %2342 = vrot.lane.b32.xlu0 %v2193, 64
    %v2343 = vpop.permute.xlu0 %2342
    %2344 = vrot.lane.b32.xlu0 %v2194, 64
    %v2345 = vpop.permute.xlu0 %2344
    %2346 = vrot.lane.b32.xlu0 %v2195, 64
    %v2347 = vpop.permute.xlu0 %2346
    %2348 = vrot.lane.b32.xlu0 %v2196, 64
    %v2349 = vpop.permute.xlu0 %2348
    %2350 = vrot.lane.b32.xlu0 %v2197, 64
    %v2351 = vpop.permute.xlu0 %2350
    %2352 = vrot.lane.b32.xlu0 %v2198, 64
    %v2353 = vpop.permute.xlu0 %2352
    %2354 = vrot.lane.b32.xlu0 %v2199, 64
    %v2355 = vpop.permute.xlu0 %2354
    %2356 = vrot.lane.b32.xlu0 %v2200, 64
    %v2357 = vpop.permute.xlu0 %2356
    %2358 = vrot.lane.b32.xlu0 %v2201, 64
    %v2359 = vpop.permute.xlu0 %2358
    %2360 = vrot.lane.b32.xlu0 %v2202, 64
    %v2361 = vpop.permute.xlu0 %2360
    %2362 = vrot.lane.b32.xlu0 %v2203, 64
    %v2363 = vpop.permute.xlu0 %2362
    %2364 = vrot.lane.b32.xlu0 %v2204, 64
    %v2365 = vpop.permute.xlu0 %2364
    %2366 = vrot.lane.b32.xlu0 %v2205, 64
    %v2367 = vpop.permute.xlu0 %2366
    %2368 = vrot.lane.b32.xlu0 %v2206, 64
    %v2369 = vpop.permute.xlu0 %2368
    %2370 = vrot.lane.b32.xlu0 %v2207, 64
    %v2371 = vpop.permute.xlu0 %2370
    %2372 = vrot.lane.b32.xlu0 %v2208, 64
    %v2373 = vpop.permute.xlu0 %2372
    %2374 = vrot.lane.b32.xlu0 %v2209, 64
    %v2375 = vpop.permute.xlu0 %2374
    %2376 = vrot.lane.b32.xlu0 %v2210, 64
    %v2377 = vpop.permute.xlu0 %2376
    %2378 = vrot.lane.b32.xlu0 %v2211, 64
    %v2379 = vpop.permute.xlu0 %2378
    %2380 = vrot.lane.b32.xlu0 %v2212, 64
    %v2381 = vpop.permute.xlu0 %2380
    %2382 = vrot.lane.b32.xlu0 %v2213, 64
    %v2383 = vpop.permute.xlu0 %2382
    %2384 = vrot.lane.b32.xlu0 %v2214, 64
    %v2385 = vpop.permute.xlu0 %2384
    %2386 = vrot.lane.b32.xlu0 %v2215, 64
    %v2387 = vpop.permute.xlu0 %2386
    %2388 = vrot.lane.b32.xlu0 %v2216, 64
    %v2389 = vpop.permute.xlu0 %2388
    %2390 = vrot.lane.b32.xlu0 %v2217, 64
    %v2391 = vpop.permute.xlu0 %2390
    %2392 = vrot.lane.b32.xlu0 %v2218, 64
    %v2393 = vpop.permute.xlu0 %2392
    %2394 = vrot.lane.b32.xlu0 %v2219, 64
    %v2395 = vpop.permute.xlu0 %2394
    %2396 = vrot.lane.b32.xlu0 %v2220, 64
    %v2397 = vpop.permute.xlu0 %2396
    %2398 = vrot.lane.b32.xlu0 %v2221, 64
    %v2399 = vpop.permute.xlu0 %2398
    %2400 = vrot.lane.b32.xlu0 %v2222, 64
    %v2401 = vpop.permute.xlu0 %2400
    %2402 = vrot.lane.b32.xlu0 %v2223, 64
    %v2403 = vpop.permute.xlu0 %2402
    %2404 = vrot.lane.b32.xlu0 %v2224, 64
    %v2405 = vpop.permute.xlu0 %2404
    %2406 = vrot.lane.b32.xlu0 %v2225, 64
    %v2407 = vpop.permute.xlu0 %2406
    %2408 = vrot.lane.b32.xlu0 %v2226, 64
    %v2409 = vpop.permute.xlu0 %2408
    %2410 = vrot.lane.b32.xlu0 %v2227, 64
    %v2411 = vpop.permute.xlu0 %2410
    %2412 = vrot.lane.b32.xlu0 %v2228, 64
    %v2413 = vpop.permute.xlu0 %2412
    %2414 = vrot.lane.b32.xlu0 %v2229, 64
    %v2415 = vpop.permute.xlu0 %2414
    %2416 = vrot.lane.b32.xlu0 %v2230, 64
    %v2417 = vpop.permute.xlu0 %2416
    %2418 = vrot.lane.b32.xlu0 %v2231, 64
    %v2419 = vpop.permute.xlu0 %2418
    %2420 = vrot.lane.b32.xlu0 %v2232, 64
    %v2421 = vpop.permute.xlu0 %2420
    %2422 = vrot.lane.b32.xlu0 %v2233, 64
    %v2423 = vpop.permute.xlu0 %2422
    %2424 = vrot.lane.b32.xlu0 %v2234, 64
    %v2425 = vpop.permute.xlu0 %2424
    %2426 = vrot.lane.b32.xlu0 %v2235, 64
    %v2427 = vpop.permute.xlu0 %2426
    %v2492 = vadd.f32 %v2172, %v2301
    %v2493 = vadd.f32 %v2173, %v2303
    %v2494 = vadd.f32 %v2174, %v2305
    %v2495 = vadd.f32 %v2175, %v2307
    %v2496 = vadd.f32 %v2176, %v2309
    %v2497 = vadd.f32 %v2177, %v2311
    %v2498 = vadd.f32 %v2178, %v2313
    %v2499 = vadd.f32 %v2179, %v2315
    %v2500 = vadd.f32 %v2180, %v2317
    %v2501 = vadd.f32 %v2181, %v2319
    %v2502 = vadd.f32 %v2182, %v2321
    %v2503 = vadd.f32 %v2183, %v2323
    %v2504 = vadd.f32 %v2184, %v2325
    %v2505 = vadd.f32 %v2185, %v2327
    %v2506 = vadd.f32 %v2186, %v2329
    %v2507 = vadd.f32 %v2187, %v2331
    %v2508 = vadd.f32 %v2188, %v2333
    %v2509 = vadd.f32 %v2189, %v2335
    %v2510 = vadd.f32 %v2190, %v2337
    %v2511 = vadd.f32 %v2191, %v2339
    %v2512 = vadd.f32 %v2192, %v2341
    %v2513 = vadd.f32 %v2193, %v2343
    %v2514 = vadd.f32 %v2194, %v2345
    %v2515 = vadd.f32 %v2195, %v2347
    %v2516 = vadd.f32 %v2196, %v2349
    %v2517 = vadd.f32 %v2197, %v2351
    %v2518 = vadd.f32 %v2198, %v2353
    %v2519 = vadd.f32 %v2199, %v2355
    %v2520 = vadd.f32 %v2200, %v2357
    %v2521 = vadd.f32 %v2201, %v2359
    %v2522 = vadd.f32 %v2202, %v2361
    %v2523 = vadd.f32 %v2203, %v2363
    %v2524 = vadd.f32 %v2204, %v2365
    %v2525 = vadd.f32 %v2205, %v2367
    %v2526 = vadd.f32 %v2206, %v2369
    %v2527 = vadd.f32 %v2207, %v2371
    %v2528 = vadd.f32 %v2208, %v2373
    %v2529 = vadd.f32 %v2209, %v2375
    %v2530 = vadd.f32 %v2210, %v2377
    %v2531 = vadd.f32 %v2211, %v2379
    %v2532 = vadd.f32 %v2212, %v2381
    %v2533 = vadd.f32 %v2213, %v2383
    %v2534 = vadd.f32 %v2214, %v2385
    %v2535 = vadd.f32 %v2215, %v2387
    %v2536 = vadd.f32 %v2216, %v2389
    %v2537 = vadd.f32 %v2217, %v2391
    %v2538 = vadd.f32 %v2218, %v2393
    %v2539 = vadd.f32 %v2219, %v2395
    %v2540 = vadd.f32 %v2220, %v2397
    %v2541 = vadd.f32 %v2221, %v2399
    %v2542 = vadd.f32 %v2222, %v2401
    %v2543 = vadd.f32 %v2223, %v2403
    %v2544 = vadd.f32 %v2224, %v2405
    %v2545 = vadd.f32 %v2225, %v2407
    %v2546 = vadd.f32 %v2226, %v2409
    %v2547 = vadd.f32 %v2227, %v2411
    %v2548 = vadd.f32 %v2228, %v2413
    %v2549 = vadd.f32 %v2229, %v2415
    %v2550 = vadd.f32 %v2230, %v2417
    %v2551 = vadd.f32 %v2231, %v2419
    %v2552 = vadd.f32 %v2232, %v2421
    %v2553 = vadd.f32 %v2233, %v2423
    %v2554 = vadd.f32 %v2234, %v2425
    %v2555 = vadd.f32 %v2235, %v2427
    %v2556 = vsel %vm313, %v2492, -inf
    %2557 = vmax.xlane.f32.xlu0 %v2556
    %v2558 = vpop.xlane.xlu0 %2557
    %v2559 = vsel %vm313, %v2493, -inf
    %2560 = vmax.xlane.f32.xlu0 %v2559
    %v2561 = vpop.xlane.xlu0 %2560
    %v2562 = vsel %vm313, %v2494, -inf
    %2563 = vmax.xlane.f32.xlu0 %v2562
    %v2564 = vpop.xlane.xlu0 %2563
    %v2565 = vsel %vm313, %v2495, -inf
    %2566 = vmax.xlane.f32.xlu0 %v2565
    %v2567 = vpop.xlane.xlu0 %2566
    %v2568 = vsel %vm313, %v2496, -inf
    %2569 = vmax.xlane.f32.xlu0 %v2568
    %v2570 = vpop.xlane.xlu0 %2569
    %v2571 = vsel %vm313, %v2497, -inf
    %2572 = vmax.xlane.f32.xlu0 %v2571
    %v2573 = vpop.xlane.xlu0 %2572
    %v2574 = vsel %vm313, %v2498, -inf
    %2575 = vmax.xlane.f32.xlu0 %v2574
    %v2576 = vpop.xlane.xlu0 %2575
    %v2577 = vsel %vm313, %v2499, -inf
    %2578 = vmax.xlane.f32.xlu0 %v2577
    %v2579 = vpop.xlane.xlu0 %2578
    %v2580 = vsel %vm313, %v2500, -inf
    %2581 = vmax.xlane.f32.xlu0 %v2580
    %v2582 = vpop.xlane.xlu0 %2581
    %v2583 = vsel %vm313, %v2501, -inf
    %2584 = vmax.xlane.f32.xlu0 %v2583
    %v2585 = vpop.xlane.xlu0 %2584
    %v2586 = vsel %vm313, %v2502, -inf
    %2587 = vmax.xlane.f32.xlu0 %v2586
    %v2588 = vpop.xlane.xlu0 %2587
    %v2589 = vsel %vm313, %v2503, -inf
    %2590 = vmax.xlane.f32.xlu0 %v2589
    %v2591 = vpop.xlane.xlu0 %2590
    %v2592 = vsel %vm313, %v2504, -inf
    %2593 = vmax.xlane.f32.xlu0 %v2592
    %v2594 = vpop.xlane.xlu0 %2593
    %v2595 = vsel %vm313, %v2505, -inf
    %2596 = vmax.xlane.f32.xlu0 %v2595
    %v2597 = vpop.xlane.xlu0 %2596
    %v2598 = vsel %vm313, %v2506, -inf
    %2599 = vmax.xlane.f32.xlu0 %v2598
    %v2600 = vpop.xlane.xlu0 %2599
    %v2601 = vsel %vm313, %v2507, -inf
    %2602 = vmax.xlane.f32.xlu0 %v2601
    %v2603 = vpop.xlane.xlu0 %2602
    %v2604 = vsel %vm313, %v2508, -inf
    %2605 = vmax.xlane.f32.xlu0 %v2604
    %v2606 = vpop.xlane.xlu0 %2605
    %v2607 = vsel %vm313, %v2509, -inf
    %2608 = vmax.xlane.f32.xlu0 %v2607
    %v2609 = vpop.xlane.xlu0 %2608
    %v2610 = vsel %vm313, %v2510, -inf
    %2611 = vmax.xlane.f32.xlu0 %v2610
    %v2612 = vpop.xlane.xlu0 %2611
    %v2613 = vsel %vm313, %v2511, -inf
    %2614 = vmax.xlane.f32.xlu0 %v2613
    %v2615 = vpop.xlane.xlu0 %2614
    %v2616 = vsel %vm313, %v2512, -inf
    %2617 = vmax.xlane.f32.xlu0 %v2616
    %v2618 = vpop.xlane.xlu0 %2617
    %v2619 = vsel %vm313, %v2513, -inf
    %2620 = vmax.xlane.f32.xlu0 %v2619
    %v2621 = vpop.xlane.xlu0 %2620
    %v2622 = vsel %vm313, %v2514, -inf
    %2623 = vmax.xlane.f32.xlu0 %v2622
    %v2624 = vpop.xlane.xlu0 %2623
    %v2625 = vsel %vm313, %v2515, -inf
    %2626 = vmax.xlane.f32.xlu0 %v2625
    %v2627 = vpop.xlane.xlu0 %2626
    %v2628 = vsel %vm313, %v2516, -inf
    %2629 = vmax.xlane.f32.xlu0 %v2628
    %v2630 = vpop.xlane.xlu0 %2629
    %v2631 = vsel %vm313, %v2517, -inf
    %2632 = vmax.xlane.f32.xlu0 %v2631
    %v2633 = vpop.xlane.xlu0 %2632
    %v2634 = vsel %vm313, %v2518, -inf
    %2635 = vmax.xlane.f32.xlu0 %v2634
    %v2636 = vpop.xlane.xlu0 %2635
    %v2637 = vsel %vm313, %v2519, -inf
    %2638 = vmax.xlane.f32.xlu0 %v2637
    %v2639 = vpop.xlane.xlu0 %2638
    %v2640 = vsel %vm313, %v2520, -inf
    %2641 = vmax.xlane.f32.xlu0 %v2640
    %v2642 = vpop.xlane.xlu0 %2641
    %v2643 = vsel %vm313, %v2521, -inf
    %2644 = vmax.xlane.f32.xlu0 %v2643
    %v2645 = vpop.xlane.xlu0 %2644
    %v2646 = vsel %vm313, %v2522, -inf
    %2647 = vmax.xlane.f32.xlu0 %v2646
    %v2648 = vpop.xlane.xlu0 %2647
    %v2649 = vsel %vm313, %v2523, -inf
    %2650 = vmax.xlane.f32.xlu0 %v2649
    %v2651 = vpop.xlane.xlu0 %2650
    %v2652 = vsel %vm313, %v2524, -inf
    %2653 = vmax.xlane.f32.xlu0 %v2652
    %v2654 = vpop.xlane.xlu0 %2653
    %v2655 = vsel %vm313, %v2525, -inf
    %2656 = vmax.xlane.f32.xlu0 %v2655
    %v2657 = vpop.xlane.xlu0 %2656
    %v2658 = vsel %vm313, %v2526, -inf
    %2659 = vmax.xlane.f32.xlu0 %v2658
    %v2660 = vpop.xlane.xlu0 %2659
    %v2661 = vsel %vm313, %v2527, -inf
    %2662 = vmax.xlane.f32.xlu0 %v2661
    %v2663 = vpop.xlane.xlu0 %2662
    %v2664 = vsel %vm313, %v2528, -inf
    %2665 = vmax.xlane.f32.xlu0 %v2664
    %v2666 = vpop.xlane.xlu0 %2665
    %v2667 = vsel %vm313, %v2529, -inf
    %2668 = vmax.xlane.f32.xlu0 %v2667
    %v2669 = vpop.xlane.xlu0 %2668
    %v2670 = vsel %vm313, %v2530, -inf
    %2671 = vmax.xlane.f32.xlu0 %v2670
    %v2672 = vpop.xlane.xlu0 %2671
    %v2673 = vsel %vm313, %v2531, -inf
    %2674 = vmax.xlane.f32.xlu0 %v2673
    %v2675 = vpop.xlane.xlu0 %2674
    %v2676 = vsel %vm313, %v2532, -inf
    %2677 = vmax.xlane.f32.xlu0 %v2676
    %v2678 = vpop.xlane.xlu0 %2677
    %v2679 = vsel %vm313, %v2533, -inf
    %2680 = vmax.xlane.f32.xlu0 %v2679
    %v2681 = vpop.xlane.xlu0 %2680
    %v2682 = vsel %vm313, %v2534, -inf
    %2683 = vmax.xlane.f32.xlu0 %v2682
    %v2684 = vpop.xlane.xlu0 %2683
    %v2685 = vsel %vm313, %v2535, -inf
    %2686 = vmax.xlane.f32.xlu0 %v2685
    %v2687 = vpop.xlane.xlu0 %2686
    %v2688 = vsel %vm313, %v2536, -inf
    %2689 = vmax.xlane.f32.xlu0 %v2688
    %v2690 = vpop.xlane.xlu0 %2689
    %v2691 = vsel %vm313, %v2537, -inf
    %2692 = vmax.xlane.f32.xlu0 %v2691
    %v2693 = vpop.xlane.xlu0 %2692
    %v2694 = vsel %vm313, %v2538, -inf
    %2695 = vmax.xlane.f32.xlu0 %v2694
    %v2696 = vpop.xlane.xlu0 %2695
    %v2697 = vsel %vm313, %v2539, -inf
    %2698 = vmax.xlane.f32.xlu0 %v2697
    %v2699 = vpop.xlane.xlu0 %2698
    %v2700 = vsel %vm313, %v2540, -inf
    %2701 = vmax.xlane.f32.xlu0 %v2700
    %v2702 = vpop.xlane.xlu0 %2701
    %v2703 = vsel %vm313, %v2541, -inf
    %2704 = vmax.xlane.f32.xlu0 %v2703
    %v2705 = vpop.xlane.xlu0 %2704
    %v2706 = vsel %vm313, %v2542, -inf
    %2707 = vmax.xlane.f32.xlu0 %v2706
    %v2708 = vpop.xlane.xlu0 %2707
    %v2709 = vsel %vm313, %v2543, -inf
    %2710 = vmax.xlane.f32.xlu0 %v2709
    %v2711 = vpop.xlane.xlu0 %2710
    %v2712 = vsel %vm313, %v2544, -inf
    %2713 = vmax.xlane.f32.xlu0 %v2712
    %v2714 = vpop.xlane.xlu0 %2713
    %v2715 = vsel %vm313, %v2545, -inf
    %2716 = vmax.xlane.f32.xlu0 %v2715
    %v2717 = vpop.xlane.xlu0 %2716
    %v2718 = vsel %vm313, %v2546, -inf
    %2719 = vmax.xlane.f32.xlu0 %v2718
    %v2720 = vpop.xlane.xlu0 %2719
    %v2721 = vsel %vm313, %v2547, -inf
    %2722 = vmax.xlane.f32.xlu0 %v2721
    %v2723 = vpop.xlane.xlu0 %2722
    %v2724 = vsel %vm313, %v2548, -inf
    %2725 = vmax.xlane.f32.xlu0 %v2724
    %v2726 = vpop.xlane.xlu0 %2725
    %v2727 = vsel %vm313, %v2549, -inf
    %2728 = vmax.xlane.f32.xlu0 %v2727
    %v2729 = vpop.xlane.xlu0 %2728
    %v2730 = vsel %vm313, %v2550, -inf
    %2731 = vmax.xlane.f32.xlu0 %v2730
    %v2732 = vpop.xlane.xlu0 %2731
    %v2733 = vsel %vm313, %v2551, -inf
    %2734 = vmax.xlane.f32.xlu0 %v2733
    %v2735 = vpop.xlane.xlu0 %2734
    %v2736 = vsel %vm313, %v2552, -inf
    %2737 = vmax.xlane.f32.xlu0 %v2736
    %v2738 = vpop.xlane.xlu0 %2737
    %v2739 = vsel %vm313, %v2553, -inf
    %2740 = vmax.xlane.f32.xlu0 %v2739
    %v2741 = vpop.xlane.xlu0 %2740
    %v2742 = vsel %vm313, %v2554, -inf
    %2743 = vmax.xlane.f32.xlu0 %v2742
    %v2744 = vpop.xlane.xlu0 %2743
    %v2745 = vsel %vm313, %v2555, -inf
    %2746 = vmax.xlane.f32.xlu0 %v2745
    %v2747 = vpop.xlane.xlu0 %2746
    %v2748 = vmax.f32 %v2558, %v2561
    %v2749 = vmax.f32 %v2748, %v2564
    %v2750 = vmax.f32 %v2749, %v2567
    %v2751 = vmax.f32 %v2750, %v2570
    %v2752 = vmax.f32 %v2751, %v2573
    %v2753 = vmax.f32 %v2752, %v2576
    %v2754 = vmax.f32 %v2753, %v2579
    %v2755 = vrot.slane %v2754, 4
    %v2756 = vmax.f32 %v2754, %v2755
    %v2757 = vrot.slane %v2756, 2
    %v2758 = vmax.f32 %v2756, %v2757
    %v2759 = vrot.slane %v2758, 1
    %v2760 = vmax.f32 %v2758, %v2759
    %v2761 = vmax.f32 %v2582, %v2585
    %v2762 = vmax.f32 %v2761, %v2588
    %v2763 = vmax.f32 %v2762, %v2591
    %v2764 = vmax.f32 %v2763, %v2594
    %v2765 = vmax.f32 %v2764, %v2597
    %v2766 = vmax.f32 %v2765, %v2600
    %v2767 = vmax.f32 %v2766, %v2603
    %v2768 = vrot.slane %v2767, 4
    %v2769 = vmax.f32 %v2767, %v2768
    %v2770 = vrot.slane %v2769, 2
    %v2771 = vmax.f32 %v2769, %v2770
    %v2772 = vrot.slane %v2771, 1
    %v2773 = vmax.f32 %v2771, %v2772
    %v2774 = vmax.f32 %v2606, %v2609
    %v2775 = vmax.f32 %v2774, %v2612
    %v2776 = vmax.f32 %v2775, %v2615
    %v2777 = vmax.f32 %v2776, %v2618
    %v2778 = vmax.f32 %v2777, %v2621
    %v2779 = vmax.f32 %v2778, %v2624
    %v2780 = vmax.f32 %v2779, %v2627
    %v2781 = vrot.slane %v2780, 4
    %v2782 = vmax.f32 %v2780, %v2781
    %v2783 = vrot.slane %v2782, 2
    %v2784 = vmax.f32 %v2782, %v2783
    %v2785 = vrot.slane %v2784, 1
    %v2786 = vmax.f32 %v2784, %v2785
    %v2787 = vmax.f32 %v2630, %v2633
    %v2788 = vmax.f32 %v2787, %v2636
    %v2789 = vmax.f32 %v2788, %v2639
    %v2790 = vmax.f32 %v2789, %v2642
    %v2791 = vmax.f32 %v2790, %v2645
    %v2792 = vmax.f32 %v2791, %v2648
    %v2793 = vmax.f32 %v2792, %v2651
    %v2794 = vrot.slane %v2793, 4
    %v2795 = vmax.f32 %v2793, %v2794
    %v2796 = vrot.slane %v2795, 2
    %v2797 = vmax.f32 %v2795, %v2796
    %v2798 = vrot.slane %v2797, 1
    %v2799 = vmax.f32 %v2797, %v2798
    %v2800 = vmax.f32 %v2654, %v2657
    %v2801 = vmax.f32 %v2800, %v2660
    %v2802 = vmax.f32 %v2801, %v2663
    %v2803 = vmax.f32 %v2802, %v2666
    %v2804 = vmax.f32 %v2803, %v2669
    %v2805 = vmax.f32 %v2804, %v2672
    %v2806 = vmax.f32 %v2805, %v2675
    %v2807 = vrot.slane %v2806, 4
    %v2808 = vmax.f32 %v2806, %v2807
    %v2809 = vrot.slane %v2808, 2
    %v2810 = vmax.f32 %v2808, %v2809
    %v2811 = vrot.slane %v2810, 1
    %v2812 = vmax.f32 %v2810, %v2811
    %v2813 = vmax.f32 %v2678, %v2681
    %v2814 = vmax.f32 %v2813, %v2684
    %v2815 = vmax.f32 %v2814, %v2687
    %v2816 = vmax.f32 %v2815, %v2690
    %v2817 = vmax.f32 %v2816, %v2693
    %v2818 = vmax.f32 %v2817, %v2696
    %v2819 = vmax.f32 %v2818, %v2699
    %v2820 = vrot.slane %v2819, 4
    %v2821 = vmax.f32 %v2819, %v2820
    %v2822 = vrot.slane %v2821, 2
    %v2823 = vmax.f32 %v2821, %v2822
    %v2824 = vrot.slane %v2823, 1
    %v2825 = vmax.f32 %v2823, %v2824
    %v2826 = vmax.f32 %v2702, %v2705
    %v2827 = vmax.f32 %v2826, %v2708
    %v2828 = vmax.f32 %v2827, %v2711
    %v2829 = vmax.f32 %v2828, %v2714
    %v2830 = vmax.f32 %v2829, %v2717
    %v2831 = vmax.f32 %v2830, %v2720
    %v2832 = vmax.f32 %v2831, %v2723
    %v2833 = vrot.slane %v2832, 4
    %v2834 = vmax.f32 %v2832, %v2833
    %v2835 = vrot.slane %v2834, 2
    %v2836 = vmax.f32 %v2834, %v2835
    %v2837 = vrot.slane %v2836, 1
    %v2838 = vmax.f32 %v2836, %v2837
    %v2839 = vmax.f32 %v2726, %v2729
    %v2840 = vmax.f32 %v2839, %v2732
    %v2841 = vmax.f32 %v2840, %v2735
    %v2842 = vmax.f32 %v2841, %v2738
    %v2843 = vmax.f32 %v2842, %v2741
    %v2844 = vmax.f32 %v2843, %v2744
    %v2845 = vmax.f32 %v2844, %v2747
    %v2846 = vrot.slane %v2845, 4
    %v2847 = vmax.f32 %v2845, %v2846
    %v2848 = vrot.slane %v2847, 2
    %v2849 = vmax.f32 %v2847, %v2848
    %v2850 = vrot.slane %v2849, 1
    %v2851 = vmax.f32 %v2849, %v2850
    %vm2852 = vcmp.gt.f32.partialorder %v2760, 0.0
    %vm2853 = vcmp.gt.f32.partialorder %v2773, 0.0
    %vm2854 = vcmp.gt.f32.partialorder %v2786, 0.0
    %vm2855 = vcmp.gt.f32.partialorder %v2799, 0.0
    %vm2856 = vcmp.gt.f32.partialorder %v2812, 0.0
    %vm2857 = vcmp.gt.f32.partialorder %v2825, 0.0
    %vm2858 = vcmp.gt.f32.partialorder %v2838, 0.0
    %vm2859 = vcmp.gt.f32.partialorder %v2851, 0.0
    %v2860 = vrcp.pop %v2760
    %v2861 = vrcp.pop %v2773
    %v2862 = vrcp.pop %v2786
    %v2863 = vrcp.pop %v2799
    %v2864 = vrcp.pop %v2812
    %v2865 = vrcp.pop %v2825
    %v2866 = vrcp.pop %v2838
    %v2867 = vrcp.pop %v2851
    %v2868 = vsel %vm2852, %v2860, 0.0
    %v2869 = vsel %vm2853, %v2861, 0.0
    %v2870 = vsel %vm2854, %v2862, 0.0
    %v2871 = vsel %vm2855, %v2863, 0.0
    %v2872 = vsel %vm2856, %v2864, 0.0
    %v2873 = vsel %vm2857, %v2865, 0.0
    %v2874 = vsel %vm2858, %v2866, 0.0
    %v2875 = vsel %vm2859, %v2867, 0.0
    %v2876 = vmul.f32 %v2492, %v2868
    %v2877 = vmul.f32 %v2493, %v2868
    %v2878 = vmul.f32 %v2494, %v2868
    %v2879 = vmul.f32 %v2495, %v2868
    %v2880 = vmul.f32 %v2496, %v2868
    %v2881 = vmul.f32 %v2497, %v2868
    %v2882 = vmul.f32 %v2498, %v2868
    %v2883 = vmul.f32 %v2499, %v2868
    %v2884 = vmul.f32 %v2500, %v2869
    %v2885 = vmul.f32 %v2501, %v2869
    %v2886 = vmul.f32 %v2502, %v2869
    %v2887 = vmul.f32 %v2503, %v2869
    %v2888 = vmul.f32 %v2504, %v2869
    %v2889 = vmul.f32 %v2505, %v2869
    %v2890 = vmul.f32 %v2506, %v2869
    %v2891 = vmul.f32 %v2507, %v2869
    %v2892 = vmul.f32 %v2508, %v2870
    %v2893 = vmul.f32 %v2509, %v2870
    %v2894 = vmul.f32 %v2510, %v2870
    %v2895 = vmul.f32 %v2511, %v2870
    %v2896 = vmul.f32 %v2512, %v2870
    %v2897 = vmul.f32 %v2513, %v2870
    %v2898 = vmul.f32 %v2514, %v2870
    %v2899 = vmul.f32 %v2515, %v2870
    %v2900 = vmul.f32 %v2516, %v2871
    %v2901 = vmul.f32 %v2517, %v2871
    %v2902 = vmul.f32 %v2518, %v2871
    %v2903 = vmul.f32 %v2519, %v2871
    %v2904 = vmul.f32 %v2520, %v2871
    %v2905 = vmul.f32 %v2521, %v2871
    %v2906 = vmul.f32 %v2522, %v2871
    %v2907 = vmul.f32 %v2523, %v2871
    %v2908 = vmul.f32 %v2524, %v2872
    %v2909 = vmul.f32 %v2525, %v2872
    %v2910 = vmul.f32 %v2526, %v2872
    %v2911 = vmul.f32 %v2527, %v2872
    %v2912 = vmul.f32 %v2528, %v2872
    %v2913 = vmul.f32 %v2529, %v2872
    %v2914 = vmul.f32 %v2530, %v2872
    %v2915 = vmul.f32 %v2531, %v2872
    %v2916 = vmul.f32 %v2532, %v2873
    %v2917 = vmul.f32 %v2533, %v2873
    %v2918 = vmul.f32 %v2534, %v2873
    %v2919 = vmul.f32 %v2535, %v2873
    %v2920 = vmul.f32 %v2536, %v2873
    %v2921 = vmul.f32 %v2537, %v2873
    %v2922 = vmul.f32 %v2538, %v2873
    %v2923 = vmul.f32 %v2539, %v2873
    %v2924 = vmul.f32 %v2540, %v2874
    %v2925 = vmul.f32 %v2541, %v2874
    %v2926 = vmul.f32 %v2542, %v2874
    %v2927 = vmul.f32 %v2543, %v2874
    %v2928 = vmul.f32 %v2544, %v2874
    %v2929 = vmul.f32 %v2545, %v2874
    %v2930 = vmul.f32 %v2546, %v2874
    %v2931 = vmul.f32 %v2547, %v2874
    %v2932 = vmul.f32 %v2548, %v2875
    %v2933 = vmul.f32 %v2549, %v2875
    %v2934 = vmul.f32 %v2550, %v2875
    %v2935 = vmul.f32 %v2551, %v2875
    %v2936 = vmul.f32 %v2552, %v2875
    %v2937 = vmul.f32 %v2553, %v2875
    %v2938 = vmul.f32 %v2554, %v2875
    %v2939 = vmul.f32 %v2555, %v2875
    %v2940 = vrsqrt.pop %v2876
    %v2941 = vmul.f32 %v2876, %v2940
    %vm2942 = vcmp.eq.f32.partialorder %v2876, inf
    %v2943 = vsel %vm2942, %v2876, %v2941
    %vm2944 = vcmp.eq.f32.partialorder %v2876, 0.0
    %v2945 = vand.u32 %v2876, 2147483648
    %v2946 = vsel %vm2944, %v2945, %v2943
    %v2947 = vrsqrt.pop %v2877
    %v2948 = vmul.f32 %v2877, %v2947
    %vm2949 = vcmp.eq.f32.partialorder %v2877, inf
    %v2950 = vsel %vm2949, %v2877, %v2948
    %vm2951 = vcmp.eq.f32.partialorder %v2877, 0.0
    %v2952 = vand.u32 %v2877, 2147483648
    %v2953 = vsel %vm2951, %v2952, %v2950
    %v2954 = vrsqrt.pop %v2878
    %v2955 = vmul.f32 %v2878, %v2954
    %vm2956 = vcmp.eq.f32.partialorder %v2878, inf
    %v2957 = vsel %vm2956, %v2878, %v2955
    %vm2958 = vcmp.eq.f32.partialorder %v2878, 0.0
    %v2959 = vand.u32 %v2878, 2147483648
    %v2960 = vsel %vm2958, %v2959, %v2957
    %v2961 = vrsqrt.pop %v2879
    %v2962 = vmul.f32 %v2879, %v2961
    %vm2963 = vcmp.eq.f32.partialorder %v2879, inf
    %v2964 = vsel %vm2963, %v2879, %v2962
    %vm2965 = vcmp.eq.f32.partialorder %v2879, 0.0
    %v2966 = vand.u32 %v2879, 2147483648
    %v2967 = vsel %vm2965, %v2966, %v2964
    %v2968 = vrsqrt.pop %v2880
    %v2969 = vmul.f32 %v2880, %v2968
    %vm2970 = vcmp.eq.f32.partialorder %v2880, inf
    %v2971 = vsel %vm2970, %v2880, %v2969
    %vm2972 = vcmp.eq.f32.partialorder %v2880, 0.0
    %v2973 = vand.u32 %v2880, 2147483648
    %v2974 = vsel %vm2972, %v2973, %v2971
    %v2975 = vrsqrt.pop %v2881
    %v2976 = vmul.f32 %v2881, %v2975
    %vm2977 = vcmp.eq.f32.partialorder %v2881, inf
    %v2978 = vsel %vm2977, %v2881, %v2976
    %vm2979 = vcmp.eq.f32.partialorder %v2881, 0.0
    %v2980 = vand.u32 %v2881, 2147483648
    %v2981 = vsel %vm2979, %v2980, %v2978
    %v2982 = vrsqrt.pop %v2882
    %v2983 = vmul.f32 %v2882, %v2982
    %vm2984 = vcmp.eq.f32.partialorder %v2882, inf
    %v2985 = vsel %vm2984, %v2882, %v2983
    %vm2986 = vcmp.eq.f32.partialorder %v2882, 0.0
    %v2987 = vand.u32 %v2882, 2147483648
    %v2988 = vsel %vm2986, %v2987, %v2985
    %v2989 = vrsqrt.pop %v2883
    %v2990 = vmul.f32 %v2883, %v2989
    %vm2991 = vcmp.eq.f32.partialorder %v2883, inf
    %v2992 = vsel %vm2991, %v2883, %v2990
    %vm2993 = vcmp.eq.f32.partialorder %v2883, 0.0
    %v2994 = vand.u32 %v2883, 2147483648
    %v2995 = vsel %vm2993, %v2994, %v2992
    %v2996 = vrsqrt.pop %v2884
    %v2997 = vmul.f32 %v2884, %v2996
    %vm2998 = vcmp.eq.f32.partialorder %v2884, inf
    %v2999 = vsel %vm2998, %v2884, %v2997
    %vm3000 = vcmp.eq.f32.partialorder %v2884, 0.0
    %v3001 = vand.u32 %v2884, 2147483648
    %v3002 = vsel %vm3000, %v3001, %v2999
    %v3003 = vrsqrt.pop %v2885
    %v3004 = vmul.f32 %v2885, %v3003
    %vm3005 = vcmp.eq.f32.partialorder %v2885, inf
    %v3006 = vsel %vm3005, %v2885, %v3004
    %vm3007 = vcmp.eq.f32.partialorder %v2885, 0.0
    %v3008 = vand.u32 %v2885, 2147483648
    %v3009 = vsel %vm3007, %v3008, %v3006
    %v3010 = vrsqrt.pop %v2886
    %v3011 = vmul.f32 %v2886, %v3010
    %vm3012 = vcmp.eq.f32.partialorder %v2886, inf
    %v3013 = vsel %vm3012, %v2886, %v3011
    %vm3014 = vcmp.eq.f32.partialorder %v2886, 0.0
    %v3015 = vand.u32 %v2886, 2147483648
    %v3016 = vsel %vm3014, %v3015, %v3013
    %v3017 = vrsqrt.pop %v2887
    %v3018 = vmul.f32 %v2887, %v3017
    %vm3019 = vcmp.eq.f32.partialorder %v2887, inf
    %v3020 = vsel %vm3019, %v2887, %v3018
    %vm3021 = vcmp.eq.f32.partialorder %v2887, 0.0
    %v3022 = vand.u32 %v2887, 2147483648
    %v3023 = vsel %vm3021, %v3022, %v3020
    %v3024 = vrsqrt.pop %v2888
    %v3025 = vmul.f32 %v2888, %v3024
    %vm3026 = vcmp.eq.f32.partialorder %v2888, inf
    %v3027 = vsel %vm3026, %v2888, %v3025
    %vm3028 = vcmp.eq.f32.partialorder %v2888, 0.0
    %v3029 = vand.u32 %v2888, 2147483648
    %v3030 = vsel %vm3028, %v3029, %v3027
    %v3031 = vrsqrt.pop %v2889
    %v3032 = vmul.f32 %v2889, %v3031
    %vm3033 = vcmp.eq.f32.partialorder %v2889, inf
    %v3034 = vsel %vm3033, %v2889, %v3032
    %vm3035 = vcmp.eq.f32.partialorder %v2889, 0.0
    %v3036 = vand.u32 %v2889, 2147483648
    %v3037 = vsel %vm3035, %v3036, %v3034
    %v3038 = vrsqrt.pop %v2890
    %v3039 = vmul.f32 %v2890, %v3038
    %vm3040 = vcmp.eq.f32.partialorder %v2890, inf
    %v3041 = vsel %vm3040, %v2890, %v3039
    %vm3042 = vcmp.eq.f32.partialorder %v2890, 0.0
    %v3043 = vand.u32 %v2890, 2147483648
    %v3044 = vsel %vm3042, %v3043, %v3041
    %v3045 = vrsqrt.pop %v2891
    %v3046 = vmul.f32 %v2891, %v3045
    %vm3047 = vcmp.eq.f32.partialorder %v2891, inf
    %v3048 = vsel %vm3047, %v2891, %v3046
    %vm3049 = vcmp.eq.f32.partialorder %v2891, 0.0
    %v3050 = vand.u32 %v2891, 2147483648
    %v3051 = vsel %vm3049, %v3050, %v3048
    %v3052 = vrsqrt.pop %v2892
    %v3053 = vmul.f32 %v2892, %v3052
    %vm3054 = vcmp.eq.f32.partialorder %v2892, inf
    %v3055 = vsel %vm3054, %v2892, %v3053
    %vm3056 = vcmp.eq.f32.partialorder %v2892, 0.0
    %v3057 = vand.u32 %v2892, 2147483648
    %v3058 = vsel %vm3056, %v3057, %v3055
    %v3059 = vrsqrt.pop %v2893
    %v3060 = vmul.f32 %v2893, %v3059
    %vm3061 = vcmp.eq.f32.partialorder %v2893, inf
    %v3062 = vsel %vm3061, %v2893, %v3060
    %vm3063 = vcmp.eq.f32.partialorder %v2893, 0.0
    %v3064 = vand.u32 %v2893, 2147483648
    %v3065 = vsel %vm3063, %v3064, %v3062
    %v3066 = vrsqrt.pop %v2894
    %v3067 = vmul.f32 %v2894, %v3066
    %vm3068 = vcmp.eq.f32.partialorder %v2894, inf
    %v3069 = vsel %vm3068, %v2894, %v3067
    %vm3070 = vcmp.eq.f32.partialorder %v2894, 0.0
    %v3071 = vand.u32 %v2894, 2147483648
    %v3072 = vsel %vm3070, %v3071, %v3069
    %v3073 = vrsqrt.pop %v2895
    %v3074 = vmul.f32 %v2895, %v3073
    %vm3075 = vcmp.eq.f32.partialorder %v2895, inf
    %v3076 = vsel %vm3075, %v2895, %v3074
    %vm3077 = vcmp.eq.f32.partialorder %v2895, 0.0
    %v3078 = vand.u32 %v2895, 2147483648
    %v3079 = vsel %vm3077, %v3078, %v3076
    %v3080 = vrsqrt.pop %v2896
    %v3081 = vmul.f32 %v2896, %v3080
    %vm3082 = vcmp.eq.f32.partialorder %v2896, inf
    %v3083 = vsel %vm3082, %v2896, %v3081
    %vm3084 = vcmp.eq.f32.partialorder %v2896, 0.0
    %v3085 = vand.u32 %v2896, 2147483648
    %v3086 = vsel %vm3084, %v3085, %v3083
    %v3087 = vrsqrt.pop %v2897
    %v3088 = vmul.f32 %v2897, %v3087
    %vm3089 = vcmp.eq.f32.partialorder %v2897, inf
    %v3090 = vsel %vm3089, %v2897, %v3088
    %vm3091 = vcmp.eq.f32.partialorder %v2897, 0.0
    %v3092 = vand.u32 %v2897, 2147483648
    %v3093 = vsel %vm3091, %v3092, %v3090
    %v3094 = vrsqrt.pop %v2898
    %v3095 = vmul.f32 %v2898, %v3094
    %vm3096 = vcmp.eq.f32.partialorder %v2898, inf
    %v3097 = vsel %vm3096, %v2898, %v3095
    %vm3098 = vcmp.eq.f32.partialorder %v2898, 0.0
    %v3099 = vand.u32 %v2898, 2147483648
    %v3100 = vsel %vm3098, %v3099, %v3097
    %v3101 = vrsqrt.pop %v2899
    %v3102 = vmul.f32 %v2899, %v3101
    %vm3103 = vcmp.eq.f32.partialorder %v2899, inf
    %v3104 = vsel %vm3103, %v2899, %v3102
    %vm3105 = vcmp.eq.f32.partialorder %v2899, 0.0
    %v3106 = vand.u32 %v2899, 2147483648
    %v3107 = vsel %vm3105, %v3106, %v3104
    %v3108 = vrsqrt.pop %v2900
    %v3109 = vmul.f32 %v2900, %v3108
    %vm3110 = vcmp.eq.f32.partialorder %v2900, inf
    %v3111 = vsel %vm3110, %v2900, %v3109
    %vm3112 = vcmp.eq.f32.partialorder %v2900, 0.0
    %v3113 = vand.u32 %v2900, 2147483648
    %v3114 = vsel %vm3112, %v3113, %v3111
    %v3115 = vrsqrt.pop %v2901
    %v3116 = vmul.f32 %v2901, %v3115
    %vm3117 = vcmp.eq.f32.partialorder %v2901, inf
    %v3118 = vsel %vm3117, %v2901, %v3116
    %vm3119 = vcmp.eq.f32.partialorder %v2901, 0.0
    %v3120 = vand.u32 %v2901, 2147483648
    %v3121 = vsel %vm3119, %v3120, %v3118
    %v3122 = vrsqrt.pop %v2902
    %v3123 = vmul.f32 %v2902, %v3122
    %vm3124 = vcmp.eq.f32.partialorder %v2902, inf
    %v3125 = vsel %vm3124, %v2902, %v3123
    %vm3126 = vcmp.eq.f32.partialorder %v2902, 0.0
    %v3127 = vand.u32 %v2902, 2147483648
    %v3128 = vsel %vm3126, %v3127, %v3125
    %v3129 = vrsqrt.pop %v2903
    %v3130 = vmul.f32 %v2903, %v3129
    %vm3131 = vcmp.eq.f32.partialorder %v2903, inf
    %v3132 = vsel %vm3131, %v2903, %v3130
    %vm3133 = vcmp.eq.f32.partialorder %v2903, 0.0
    %v3134 = vand.u32 %v2903, 2147483648
    %v3135 = vsel %vm3133, %v3134, %v3132
    %v3136 = vrsqrt.pop %v2904
    %v3137 = vmul.f32 %v2904, %v3136
    %vm3138 = vcmp.eq.f32.partialorder %v2904, inf
    %v3139 = vsel %vm3138, %v2904, %v3137
    %vm3140 = vcmp.eq.f32.partialorder %v2904, 0.0
    %v3141 = vand.u32 %v2904, 2147483648
    %v3142 = vsel %vm3140, %v3141, %v3139
    %v3143 = vrsqrt.pop %v2905
    %v3144 = vmul.f32 %v2905, %v3143
    %vm3145 = vcmp.eq.f32.partialorder %v2905, inf
    %v3146 = vsel %vm3145, %v2905, %v3144
    %vm3147 = vcmp.eq.f32.partialorder %v2905, 0.0
    %v3148 = vand.u32 %v2905, 2147483648
    %v3149 = vsel %vm3147, %v3148, %v3146
    %v3150 = vrsqrt.pop %v2906
    %v3151 = vmul.f32 %v2906, %v3150
    %vm3152 = vcmp.eq.f32.partialorder %v2906, inf
    %v3153 = vsel %vm3152, %v2906, %v3151
    %vm3154 = vcmp.eq.f32.partialorder %v2906, 0.0
    %v3155 = vand.u32 %v2906, 2147483648
    %v3156 = vsel %vm3154, %v3155, %v3153
    %v3157 = vrsqrt.pop %v2907
    %v3158 = vmul.f32 %v2907, %v3157
    %vm3159 = vcmp.eq.f32.partialorder %v2907, inf
    %v3160 = vsel %vm3159, %v2907, %v3158
    %vm3161 = vcmp.eq.f32.partialorder %v2907, 0.0
    %v3162 = vand.u32 %v2907, 2147483648
    %v3163 = vsel %vm3161, %v3162, %v3160
    %v3164 = vrsqrt.pop %v2908
    %v3165 = vmul.f32 %v2908, %v3164
    %vm3166 = vcmp.eq.f32.partialorder %v2908, inf
    %v3167 = vsel %vm3166, %v2908, %v3165
    %vm3168 = vcmp.eq.f32.partialorder %v2908, 0.0
    %v3169 = vand.u32 %v2908, 2147483648
    %v3170 = vsel %vm3168, %v3169, %v3167
    %v3171 = vrsqrt.pop %v2909
    %v3172 = vmul.f32 %v2909, %v3171
    %vm3173 = vcmp.eq.f32.partialorder %v2909, inf
    %v3174 = vsel %vm3173, %v2909, %v3172
    %vm3175 = vcmp.eq.f32.partialorder %v2909, 0.0
    %v3176 = vand.u32 %v2909, 2147483648
    %v3177 = vsel %vm3175, %v3176, %v3174
    %v3178 = vrsqrt.pop %v2910
    %v3179 = vmul.f32 %v2910, %v3178
    %vm3180 = vcmp.eq.f32.partialorder %v2910, inf
    %v3181 = vsel %vm3180, %v2910, %v3179
    %vm3182 = vcmp.eq.f32.partialorder %v2910, 0.0
    %v3183 = vand.u32 %v2910, 2147483648
    %v3184 = vsel %vm3182, %v3183, %v3181
    %v3185 = vrsqrt.pop %v2911
    %v3186 = vmul.f32 %v2911, %v3185
    %vm3187 = vcmp.eq.f32.partialorder %v2911, inf
    %v3188 = vsel %vm3187, %v2911, %v3186
    %vm3189 = vcmp.eq.f32.partialorder %v2911, 0.0
    %v3190 = vand.u32 %v2911, 2147483648
    %v3191 = vsel %vm3189, %v3190, %v3188
    %v3192 = vrsqrt.pop %v2912
    %v3193 = vmul.f32 %v2912, %v3192
    %vm3194 = vcmp.eq.f32.partialorder %v2912, inf
    %v3195 = vsel %vm3194, %v2912, %v3193
    %vm3196 = vcmp.eq.f32.partialorder %v2912, 0.0
    %v3197 = vand.u32 %v2912, 2147483648
    %v3198 = vsel %vm3196, %v3197, %v3195
    %v3199 = vrsqrt.pop %v2913
    %v3200 = vmul.f32 %v2913, %v3199
    %vm3201 = vcmp.eq.f32.partialorder %v2913, inf
    %v3202 = vsel %vm3201, %v2913, %v3200
    %vm3203 = vcmp.eq.f32.partialorder %v2913, 0.0
    %v3204 = vand.u32 %v2913, 2147483648
    %v3205 = vsel %vm3203, %v3204, %v3202
    %v3206 = vrsqrt.pop %v2914
    %v3207 = vmul.f32 %v2914, %v3206
    %vm3208 = vcmp.eq.f32.partialorder %v2914, inf
    %v3209 = vsel %vm3208, %v2914, %v3207
    %vm3210 = vcmp.eq.f32.partialorder %v2914, 0.0
    %v3211 = vand.u32 %v2914, 2147483648
    %v3212 = vsel %vm3210, %v3211, %v3209
    %v3213 = vrsqrt.pop %v2915
    %v3214 = vmul.f32 %v2915, %v3213
    %vm3215 = vcmp.eq.f32.partialorder %v2915, inf
    %v3216 = vsel %vm3215, %v2915, %v3214
    %vm3217 = vcmp.eq.f32.partialorder %v2915, 0.0
    %v3218 = vand.u32 %v2915, 2147483648
    %v3219 = vsel %vm3217, %v3218, %v3216
    %v3220 = vrsqrt.pop %v2916
    %v3221 = vmul.f32 %v2916, %v3220
    %vm3222 = vcmp.eq.f32.partialorder %v2916, inf
    %v3223 = vsel %vm3222, %v2916, %v3221
    %vm3224 = vcmp.eq.f32.partialorder %v2916, 0.0
    %v3225 = vand.u32 %v2916, 2147483648
    %v3226 = vsel %vm3224, %v3225, %v3223
    %v3227 = vrsqrt.pop %v2917
    %v3228 = vmul.f32 %v2917, %v3227
    %vm3229 = vcmp.eq.f32.partialorder %v2917, inf
    %v3230 = vsel %vm3229, %v2917, %v3228
    %vm3231 = vcmp.eq.f32.partialorder %v2917, 0.0
    %v3232 = vand.u32 %v2917, 2147483648
    %v3233 = vsel %vm3231, %v3232, %v3230
    %v3234 = vrsqrt.pop %v2918
    %v3235 = vmul.f32 %v2918, %v3234
    %vm3236 = vcmp.eq.f32.partialorder %v2918, inf
    %v3237 = vsel %vm3236, %v2918, %v3235
    %vm3238 = vcmp.eq.f32.partialorder %v2918, 0.0
    %v3239 = vand.u32 %v2918, 2147483648
    %v3240 = vsel %vm3238, %v3239, %v3237
    %v3241 = vrsqrt.pop %v2919
    %v3242 = vmul.f32 %v2919, %v3241
    %vm3243 = vcmp.eq.f32.partialorder %v2919, inf
    %v3244 = vsel %vm3243, %v2919, %v3242
    %vm3245 = vcmp.eq.f32.partialorder %v2919, 0.0
    %v3246 = vand.u32 %v2919, 2147483648
    %v3247 = vsel %vm3245, %v3246, %v3244
    %v3248 = vrsqrt.pop %v2920
    %v3249 = vmul.f32 %v2920, %v3248
    %vm3250 = vcmp.eq.f32.partialorder %v2920, inf
    %v3251 = vsel %vm3250, %v2920, %v3249
    %vm3252 = vcmp.eq.f32.partialorder %v2920, 0.0
    %v3253 = vand.u32 %v2920, 2147483648
    %v3254 = vsel %vm3252, %v3253, %v3251
    %v3255 = vrsqrt.pop %v2921
    %v3256 = vmul.f32 %v2921, %v3255
    %vm3257 = vcmp.eq.f32.partialorder %v2921, inf
    %v3258 = vsel %vm3257, %v2921, %v3256
    %vm3259 = vcmp.eq.f32.partialorder %v2921, 0.0
    %v3260 = vand.u32 %v2921, 2147483648
    %v3261 = vsel %vm3259, %v3260, %v3258
    %v3262 = vrsqrt.pop %v2922
    %v3263 = vmul.f32 %v2922, %v3262
    %vm3264 = vcmp.eq.f32.partialorder %v2922, inf
    %v3265 = vsel %vm3264, %v2922, %v3263
    %vm3266 = vcmp.eq.f32.partialorder %v2922, 0.0
    %v3267 = vand.u32 %v2922, 2147483648
    %v3268 = vsel %vm3266, %v3267, %v3265
    %v3269 = vrsqrt.pop %v2923
    %v3270 = vmul.f32 %v2923, %v3269
    %vm3271 = vcmp.eq.f32.partialorder %v2923, inf
    %v3272 = vsel %vm3271, %v2923, %v3270
    %vm3273 = vcmp.eq.f32.partialorder %v2923, 0.0
    %v3274 = vand.u32 %v2923, 2147483648
    %v3275 = vsel %vm3273, %v3274, %v3272
    %v3276 = vrsqrt.pop %v2924
    %v3277 = vmul.f32 %v2924, %v3276
    %vm3278 = vcmp.eq.f32.partialorder %v2924, inf
    %v3279 = vsel %vm3278, %v2924, %v3277
    %vm3280 = vcmp.eq.f32.partialorder %v2924, 0.0
    %v3281 = vand.u32 %v2924, 2147483648
    %v3282 = vsel %vm3280, %v3281, %v3279
    %v3283 = vrsqrt.pop %v2925
    %v3284 = vmul.f32 %v2925, %v3283
    %vm3285 = vcmp.eq.f32.partialorder %v2925, inf
    %v3286 = vsel %vm3285, %v2925, %v3284
    %vm3287 = vcmp.eq.f32.partialorder %v2925, 0.0
    %v3288 = vand.u32 %v2925, 2147483648
    %v3289 = vsel %vm3287, %v3288, %v3286
    %v3290 = vrsqrt.pop %v2926
    %v3291 = vmul.f32 %v2926, %v3290
    %vm3292 = vcmp.eq.f32.partialorder %v2926, inf
    %v3293 = vsel %vm3292, %v2926, %v3291
    %vm3294 = vcmp.eq.f32.partialorder %v2926, 0.0
    %v3295 = vand.u32 %v2926, 2147483648
    %v3296 = vsel %vm3294, %v3295, %v3293
    %v3297 = vrsqrt.pop %v2927
    %v3298 = vmul.f32 %v2927, %v3297
    %vm3299 = vcmp.eq.f32.partialorder %v2927, inf
    %v3300 = vsel %vm3299, %v2927, %v3298
    %vm3301 = vcmp.eq.f32.partialorder %v2927, 0.0
    %v3302 = vand.u32 %v2927, 2147483648
    %v3303 = vsel %vm3301, %v3302, %v3300
    %v3304 = vrsqrt.pop %v2928
    %v3305 = vmul.f32 %v2928, %v3304
    %vm3306 = vcmp.eq.f32.partialorder %v2928, inf
    %v3307 = vsel %vm3306, %v2928, %v3305
    %vm3308 = vcmp.eq.f32.partialorder %v2928, 0.0
    %v3309 = vand.u32 %v2928, 2147483648
    %v3310 = vsel %vm3308, %v3309, %v3307
    %v3311 = vrsqrt.pop %v2929
    %v3312 = vmul.f32 %v2929, %v3311
    %vm3313 = vcmp.eq.f32.partialorder %v2929, inf
    %v3314 = vsel %vm3313, %v2929, %v3312
    %vm3315 = vcmp.eq.f32.partialorder %v2929, 0.0
    %v3316 = vand.u32 %v2929, 2147483648
    %v3317 = vsel %vm3315, %v3316, %v3314
    %v3318 = vrsqrt.pop %v2930
    %v3319 = vmul.f32 %v2930, %v3318
    %vm3320 = vcmp.eq.f32.partialorder %v2930, inf
    %v3321 = vsel %vm3320, %v2930, %v3319
    %vm3322 = vcmp.eq.f32.partialorder %v2930, 0.0
    %v3323 = vand.u32 %v2930, 2147483648
    %v3324 = vsel %vm3322, %v3323, %v3321
    %v3325 = vrsqrt.pop %v2931
    %v3326 = vmul.f32 %v2931, %v3325
    %vm3327 = vcmp.eq.f32.partialorder %v2931, inf
    %v3328 = vsel %vm3327, %v2931, %v3326
    %vm3329 = vcmp.eq.f32.partialorder %v2931, 0.0
    %v3330 = vand.u32 %v2931, 2147483648
    %v3331 = vsel %vm3329, %v3330, %v3328
    %v3332 = vrsqrt.pop %v2932
    %v3333 = vmul.f32 %v2932, %v3332
    %vm3334 = vcmp.eq.f32.partialorder %v2932, inf
    %v3335 = vsel %vm3334, %v2932, %v3333
    %vm3336 = vcmp.eq.f32.partialorder %v2932, 0.0
    %v3337 = vand.u32 %v2932, 2147483648
    %v3338 = vsel %vm3336, %v3337, %v3335
    %v3339 = vrsqrt.pop %v2933
    %v3340 = vmul.f32 %v2933, %v3339
    %vm3341 = vcmp.eq.f32.partialorder %v2933, inf
    %v3342 = vsel %vm3341, %v2933, %v3340
    %vm3343 = vcmp.eq.f32.partialorder %v2933, 0.0
    %v3344 = vand.u32 %v2933, 2147483648
    %v3345 = vsel %vm3343, %v3344, %v3342
    %v3346 = vrsqrt.pop %v2934
    %v3347 = vmul.f32 %v2934, %v3346
    %vm3348 = vcmp.eq.f32.partialorder %v2934, inf
    %v3349 = vsel %vm3348, %v2934, %v3347
    %vm3350 = vcmp.eq.f32.partialorder %v2934, 0.0
    %v3351 = vand.u32 %v2934, 2147483648
    %v3352 = vsel %vm3350, %v3351, %v3349
    %v3353 = vrsqrt.pop %v2935
    %v3354 = vmul.f32 %v2935, %v3353
    %vm3355 = vcmp.eq.f32.partialorder %v2935, inf
    %v3356 = vsel %vm3355, %v2935, %v3354
    %vm3357 = vcmp.eq.f32.partialorder %v2935, 0.0
    %v3358 = vand.u32 %v2935, 2147483648
    %v3359 = vsel %vm3357, %v3358, %v3356
    %v3360 = vrsqrt.pop %v2936
    %v3361 = vmul.f32 %v2936, %v3360
    %vm3362 = vcmp.eq.f32.partialorder %v2936, inf
    %v3363 = vsel %vm3362, %v2936, %v3361
    %vm3364 = vcmp.eq.f32.partialorder %v2936, 0.0
    %v3365 = vand.u32 %v2936, 2147483648
    %v3366 = vsel %vm3364, %v3365, %v3363
    %v3367 = vrsqrt.pop %v2937
    %v3368 = vmul.f32 %v2937, %v3367
    %vm3369 = vcmp.eq.f32.partialorder %v2937, inf
    %v3370 = vsel %vm3369, %v2937, %v3368
    %vm3371 = vcmp.eq.f32.partialorder %v2937, 0.0
    %v3372 = vand.u32 %v2937, 2147483648
    %v3373 = vsel %vm3371, %v3372, %v3370
    %v3374 = vrsqrt.pop %v2938
    %v3375 = vmul.f32 %v2938, %v3374
    %vm3376 = vcmp.eq.f32.partialorder %v2938, inf
    %v3377 = vsel %vm3376, %v2938, %v3375
    %vm3378 = vcmp.eq.f32.partialorder %v2938, 0.0
    %v3379 = vand.u32 %v2938, 2147483648
    %v3380 = vsel %vm3378, %v3379, %v3377
    %v3381 = vrsqrt.pop %v2939
    %v3382 = vmul.f32 %v2939, %v3381
    %vm3383 = vcmp.eq.f32.partialorder %v2939, inf
    %v3384 = vsel %vm3383, %v2939, %v3382
    %vm3385 = vcmp.eq.f32.partialorder %v2939, 0.0
    %v3386 = vand.u32 %v2939, 2147483648
    %v3387 = vsel %vm3385, %v3386, %v3384
    %v3388 = vmin.f32 %v2946, 1.0
    %v3389 = vmin.f32 %v2953, 1.0
    %v3390 = vmin.f32 %v2960, 1.0
    %v3391 = vmin.f32 %v2967, 1.0
    %v3392 = vmin.f32 %v2974, 1.0
    %v3393 = vmin.f32 %v2981, 1.0
    %v3394 = vmin.f32 %v2988, 1.0
    %v3395 = vmin.f32 %v2995, 1.0
    %v3396 = vmin.f32 %v3002, 1.0
    %v3397 = vmin.f32 %v3009, 1.0
    %v3398 = vmin.f32 %v3016, 1.0
    %v3399 = vmin.f32 %v3023, 1.0
    %v3400 = vmin.f32 %v3030, 1.0
    %v3401 = vmin.f32 %v3037, 1.0
    %v3402 = vmin.f32 %v3044, 1.0
    %v3403 = vmin.f32 %v3051, 1.0
    %v3404 = vmin.f32 %v3058, 1.0
    %v3405 = vmin.f32 %v3065, 1.0
    %v3406 = vmin.f32 %v3072, 1.0
    %v3407 = vmin.f32 %v3079, 1.0
    %v3408 = vmin.f32 %v3086, 1.0
    %v3409 = vmin.f32 %v3093, 1.0
    %v3410 = vmin.f32 %v3100, 1.0
    %v3411 = vmin.f32 %v3107, 1.0
    %v3412 = vmin.f32 %v3114, 1.0
    %v3413 = vmin.f32 %v3121, 1.0
    %v3414 = vmin.f32 %v3128, 1.0
    %v3415 = vmin.f32 %v3135, 1.0
    %v3416 = vmin.f32 %v3142, 1.0
    %v3417 = vmin.f32 %v3149, 1.0
    %v3418 = vmin.f32 %v3156, 1.0
    %v3419 = vmin.f32 %v3163, 1.0
    %v3420 = vmin.f32 %v3170, 1.0
    %v3421 = vmin.f32 %v3177, 1.0
    %v3422 = vmin.f32 %v3184, 1.0
    %v3423 = vmin.f32 %v3191, 1.0
    %v3424 = vmin.f32 %v3198, 1.0
    %v3425 = vmin.f32 %v3205, 1.0
    %v3426 = vmin.f32 %v3212, 1.0
    %v3427 = vmin.f32 %v3219, 1.0
    %v3428 = vmin.f32 %v3226, 1.0
    %v3429 = vmin.f32 %v3233, 1.0
    %v3430 = vmin.f32 %v3240, 1.0
    %v3431 = vmin.f32 %v3247, 1.0
    %v3432 = vmin.f32 %v3254, 1.0
    %v3433 = vmin.f32 %v3261, 1.0
    %v3434 = vmin.f32 %v3268, 1.0
    %v3435 = vmin.f32 %v3275, 1.0
    %v3436 = vmin.f32 %v3282, 1.0
    %v3437 = vmin.f32 %v3289, 1.0
    %v3438 = vmin.f32 %v3296, 1.0
    %v3439 = vmin.f32 %v3303, 1.0
    %v3440 = vmin.f32 %v3310, 1.0
    %v3441 = vmin.f32 %v3317, 1.0
    %v3442 = vmin.f32 %v3324, 1.0
    %v3443 = vmin.f32 %v3331, 1.0
    %v3444 = vmin.f32 %v3338, 1.0
    %v3445 = vmin.f32 %v3345, 1.0
    %v3446 = vmin.f32 %v3352, 1.0
    %v3447 = vmin.f32 %v3359, 1.0
    %v3448 = vmin.f32 %v3366, 1.0
    %v3449 = vmin.f32 %v3373, 1.0
    %v3450 = vmin.f32 %v3380, 1.0
    %v3451 = vmin.f32 %v3387, 1.0
    %v3452 = vmul.f32 %v3388, %v2492
    %v3453 = vmul.f32 %v3389, %v2493
    %v3454 = vmul.f32 %v3390, %v2494
    %v3455 = vmul.f32 %v3391, %v2495
    %v3456 = vmul.f32 %v3392, %v2496
    %v3457 = vmul.f32 %v3393, %v2497
    %v3458 = vmul.f32 %v3394, %v2498
    %v3459 = vmul.f32 %v3395, %v2499
    %v3460 = vmul.f32 %v3396, %v2500
    %v3461 = vmul.f32 %v3397, %v2501
    %v3462 = vmul.f32 %v3398, %v2502
    %v3463 = vmul.f32 %v3399, %v2503
    %v3464 = vmul.f32 %v3400, %v2504
    %v3465 = vmul.f32 %v3401, %v2505
    %v3466 = vmul.f32 %v3402, %v2506
    %v3467 = vmul.f32 %v3403, %v2507
    %v3468 = vmul.f32 %v3404, %v2508
    %v3469 = vmul.f32 %v3405, %v2509
    %v3470 = vmul.f32 %v3406, %v2510
    %v3471 = vmul.f32 %v3407, %v2511
    %v3472 = vmul.f32 %v3408, %v2512
    %v3473 = vmul.f32 %v3409, %v2513
    %v3474 = vmul.f32 %v3410, %v2514
    %v3475 = vmul.f32 %v3411, %v2515
    %v3476 = vmul.f32 %v3412, %v2516
    %v3477 = vmul.f32 %v3413, %v2517
    %v3478 = vmul.f32 %v3414, %v2518
    %v3479 = vmul.f32 %v3415, %v2519
    %v3480 = vmul.f32 %v3416, %v2520
    %v3481 = vmul.f32 %v3417, %v2521
    %v3482 = vmul.f32 %v3418, %v2522
    %v3483 = vmul.f32 %v3419, %v2523
    %v3484 = vmul.f32 %v3420, %v2524
    %v3485 = vmul.f32 %v3421, %v2525
    %v3486 = vmul.f32 %v3422, %v2526
    %v3487 = vmul.f32 %v3423, %v2527
    %v3488 = vmul.f32 %v3424, %v2528
    %v3489 = vmul.f32 %v3425, %v2529
    %v3490 = vmul.f32 %v3426, %v2530
    %v3491 = vmul.f32 %v3427, %v2531
    %v3492 = vmul.f32 %v3428, %v2532
    %v3493 = vmul.f32 %v3429, %v2533
    %v3494 = vmul.f32 %v3430, %v2534
    %v3495 = vmul.f32 %v3431, %v2535
    %v3496 = vmul.f32 %v3432, %v2536
    %v3497 = vmul.f32 %v3433, %v2537
    %v3498 = vmul.f32 %v3434, %v2538
    %v3499 = vmul.f32 %v3435, %v2539
    %v3500 = vmul.f32 %v3436, %v2540
    %v3501 = vmul.f32 %v3437, %v2541
    %v3502 = vmul.f32 %v3438, %v2542
    %v3503 = vmul.f32 %v3439, %v2543
    %v3504 = vmul.f32 %v3440, %v2544
    %v3505 = vmul.f32 %v3441, %v2545
    %v3506 = vmul.f32 %v3442, %v2546
    %v3507 = vmul.f32 %v3443, %v2547
    %v3508 = vmul.f32 %v3444, %v2548
    %v3509 = vmul.f32 %v3445, %v2549
    %v3510 = vmul.f32 %v3446, %v2550
    %v3511 = vmul.f32 %v3447, %v2551
    %v3512 = vmul.f32 %v3448, %v2552
    %v3513 = vmul.f32 %v3449, %v2553
    %v3514 = vmul.f32 %v3450, %v2554
    %v3515 = vmul.f32 %v3451, %v2555
    %v3516 = vsel %vm313, %v3452, 0.0
    %v3517 = vsel %vm313, %v3453, 0.0
    %v3518 = vadd.f32 %v3516, %v3517
    %v3519 = vsel %vm313, %v3454, 0.0
    %v3520 = vadd.f32 %v3518, %v3519
    %v3521 = vsel %vm313, %v3455, 0.0
    %v3522 = vadd.f32 %v3520, %v3521
    %v3523 = vsel %vm313, %v3456, 0.0
    %v3524 = vadd.f32 %v3522, %v3523
    %v3525 = vsel %vm313, %v3457, 0.0
    %v3526 = vadd.f32 %v3524, %v3525
    %v3527 = vsel %vm313, %v3458, 0.0
    %v3528 = vadd.f32 %v3526, %v3527
    %v3529 = vsel %vm313, %v3459, 0.0
    %v3530 = vadd.f32 %v3528, %v3529
    %v3531 = vsel %vm313, %v3460, 0.0
    %v3532 = vadd.f32 %v3530, %v3531
    %v3533 = vsel %vm313, %v3461, 0.0
    %v3534 = vadd.f32 %v3532, %v3533
    %v3535 = vsel %vm313, %v3462, 0.0
    %v3536 = vadd.f32 %v3534, %v3535
    %v3537 = vsel %vm313, %v3463, 0.0
    %v3538 = vadd.f32 %v3536, %v3537
    %v3539 = vsel %vm313, %v3464, 0.0
    %v3540 = vadd.f32 %v3538, %v3539
    %v3541 = vsel %vm313, %v3465, 0.0
    %v3542 = vadd.f32 %v3540, %v3541
    %v3543 = vsel %vm313, %v3466, 0.0
    %v3544 = vadd.f32 %v3542, %v3543
    %v3545 = vsel %vm313, %v3467, 0.0
    %v3546 = vadd.f32 %v3544, %v3545
    %v3547 = vsel %vm313, %v3468, 0.0
    %v3548 = vadd.f32 %v3546, %v3547
    %v3549 = vsel %vm313, %v3469, 0.0
    %v3550 = vadd.f32 %v3548, %v3549
    %v3551 = vsel %vm313, %v3470, 0.0
    %v3552 = vadd.f32 %v3550, %v3551
    %v3553 = vsel %vm313, %v3471, 0.0
    %v3554 = vadd.f32 %v3552, %v3553
    %v3555 = vsel %vm313, %v3472, 0.0
    %v3556 = vadd.f32 %v3554, %v3555
    %v3557 = vsel %vm313, %v3473, 0.0
    %v3558 = vadd.f32 %v3556, %v3557
    %v3559 = vsel %vm313, %v3474, 0.0
    %v3560 = vadd.f32 %v3558, %v3559
    %v3561 = vsel %vm313, %v3475, 0.0
    %v3562 = vadd.f32 %v3560, %v3561
    %v3563 = vsel %vm313, %v3476, 0.0
    %v3564 = vadd.f32 %v3562, %v3563
    %v3565 = vsel %vm313, %v3477, 0.0
    %v3566 = vadd.f32 %v3564, %v3565
    %v3567 = vsel %vm313, %v3478, 0.0
    %v3568 = vadd.f32 %v3566, %v3567
    %v3569 = vsel %vm313, %v3479, 0.0
    %v3570 = vadd.f32 %v3568, %v3569
    %v3571 = vsel %vm313, %v3480, 0.0
    %v3572 = vadd.f32 %v3570, %v3571
    %v3573 = vsel %vm313, %v3481, 0.0
    %v3574 = vadd.f32 %v3572, %v3573
    %v3575 = vsel %vm313, %v3482, 0.0
    %v3576 = vadd.f32 %v3574, %v3575
    %v3577 = vsel %vm313, %v3483, 0.0
    %v3578 = vadd.f32 %v3576, %v3577
    %v3579 = vsel %vm313, %v3484, 0.0
    %v3580 = vadd.f32 %v3578, %v3579
    %v3581 = vsel %vm313, %v3485, 0.0
    %v3582 = vadd.f32 %v3580, %v3581
    %v3583 = vsel %vm313, %v3486, 0.0
    %v3584 = vadd.f32 %v3582, %v3583
    %v3585 = vsel %vm313, %v3487, 0.0
    %v3586 = vadd.f32 %v3584, %v3585
    %v3587 = vsel %vm313, %v3488, 0.0
    %v3588 = vadd.f32 %v3586, %v3587
    %v3589 = vsel %vm313, %v3489, 0.0
    %v3590 = vadd.f32 %v3588, %v3589
    %v3591 = vsel %vm313, %v3490, 0.0
    %v3592 = vadd.f32 %v3590, %v3591
    %v3593 = vsel %vm313, %v3491, 0.0
    %v3594 = vadd.f32 %v3592, %v3593
    %v3595 = vsel %vm313, %v3492, 0.0
    %v3596 = vadd.f32 %v3594, %v3595
    %v3597 = vsel %vm313, %v3493, 0.0
    %v3598 = vadd.f32 %v3596, %v3597
    %v3599 = vsel %vm313, %v3494, 0.0
    %v3600 = vadd.f32 %v3598, %v3599
    %v3601 = vsel %vm313, %v3495, 0.0
    %v3602 = vadd.f32 %v3600, %v3601
    %v3603 = vsel %vm313, %v3496, 0.0
    %v3604 = vadd.f32 %v3602, %v3603
    %v3605 = vsel %vm313, %v3497, 0.0
    %v3606 = vadd.f32 %v3604, %v3605
    %v3607 = vsel %vm313, %v3498, 0.0
    %v3608 = vadd.f32 %v3606, %v3607
    %v3609 = vsel %vm313, %v3499, 0.0
    %v3610 = vadd.f32 %v3608, %v3609
    %v3611 = vsel %vm313, %v3500, 0.0
    %v3612 = vadd.f32 %v3610, %v3611
    %v3613 = vsel %vm313, %v3501, 0.0
    %v3614 = vadd.f32 %v3612, %v3613
    %v3615 = vsel %vm313, %v3502, 0.0
    %v3616 = vadd.f32 %v3614, %v3615
    %v3617 = vsel %vm313, %v3503, 0.0
    %v3618 = vadd.f32 %v3616, %v3617
    %v3619 = vsel %vm313, %v3504, 0.0
    %v3620 = vadd.f32 %v3618, %v3619
    %v3621 = vsel %vm313, %v3505, 0.0
    %v3622 = vadd.f32 %v3620, %v3621
    %v3623 = vsel %vm313, %v3506, 0.0
    %v3624 = vadd.f32 %v3622, %v3623
    %v3625 = vsel %vm313, %v3507, 0.0
    %v3626 = vadd.f32 %v3624, %v3625
    %v3627 = vsel %vm313, %v3508, 0.0
    %v3628 = vadd.f32 %v3626, %v3627
    %v3629 = vsel %vm313, %v3509, 0.0
    %v3630 = vadd.f32 %v3628, %v3629
    %v3631 = vsel %vm313, %v3510, 0.0
    %v3632 = vadd.f32 %v3630, %v3631
    %v3633 = vsel %vm313, %v3511, 0.0
    %v3634 = vadd.f32 %v3632, %v3633
    %v3635 = vsel %vm313, %v3512, 0.0
    %v3636 = vadd.f32 %v3634, %v3635
    %v3637 = vsel %vm313, %v3513, 0.0
    %v3638 = vadd.f32 %v3636, %v3637
    %v3639 = vsel %vm313, %v3514, 0.0
    %v3640 = vadd.f32 %v3638, %v3639
    %v3641 = vsel %vm313, %v3515, 0.0
    %v3642 = vadd.f32 %v3640, %v3641
    %v3643 = vrot.slane %v3642, 4
    %v3644 = vadd.f32 %v3642, %v3643
    %v3645 = vrot.slane %v3644, 2
    %v3646 = vadd.f32 %v3644, %v3645
    %v3647 = vrot.slane %v3646, 1
    %v3648 = vadd.f32 %v3646, %v3647
    %vm3649 = vcmask 516096
    %3650 = vst.msk [vmem:[#allocation8] sm:$0x1] %vm3649, %v3648
    // Predicated region
    $region26: #{tpu_custom_call.1} parent=1 // pred_check
      _
    $region27: #{tpu_custom_call.1} parent=1 // pred_check_branch
      %3652 = sbr.rel (0) target = $region29
    $region28: #{tpu_custom_call.1} parent=1 // pred_region
      %s3654 = ssub.s32 16, 16
      %3655 = vsyncadd [#allocation4], %s3654
      %s3657 = sshll.u32 [#allocation8], 4
      %s3658 = int_to_ptr.vmem [resolvable:$true] %s3657
      %3660 = dma.vmem_to_hbm [thread:$0]  %s3658, 16, %s3, [#allocation4]
    $region29: #{tpu_custom_call.1} parent=1 // pred_fallthru
      _
    // Predicated region
    $region30: #{tpu_custom_call.1} parent=1 // pred_check
      _
    $region31: #{tpu_custom_call.1} parent=1 // pred_check_branch
      %3662 = sbr.rel (0) target = $region33
    $region32: #{tpu_custom_call.1} parent=1 // pred_region
      %3663 = dma.done [#allocation4], 16
    $region33: #{tpu_custom_call.1} parent=1 // pred_fallthru
      _
    %3664 = vsyncpa [#allocation3], 1
    %3665 = vsyncpa [#allocation6], 1
    %3666 = vsyncpa [#allocation4], 1

</llo_original>
